<compile_context>
chip_gen: v7x
topology: tpu7x:2x2x1
jax: 0.10.0
libtpu: 0.0.40
codegen_flags: <defaults>
</compile_context>

<pallas_src>
import functools

import jax
import jax.numpy as jnp
import numpy as np
from jax.experimental import pallas as pl
from jax.experimental.pallas import tpu as pltpu


def _round_up(x, m):
    return (x + m - 1) // m * m


def _cell_kernel(i0_ref, i1_ref, xu_ref, eps_p_ref, eps_q_ref,
                 ab_ref, logstd_p_ref,
                 we0_ref, we1_ref, be_ref,
                 wmu_ref, bmu_ref, wls_ref, bls_ref,
                 wd0_ref, bd0_ref, wd1_ref, bd1_ref,
                 xq_ref, rec0_ref, rec1_ref, part_ref,
                 *, b_actual, padded):
    f32 = jnp.float32
    bf16 = jnp.bfloat16
    bt = i0_ref.shape[0]

    # Validity mask for batch-padding rows of this tile (only built when Bp != B).
    if padded:
        row = pl.program_id(0) * bt + jax.lax.broadcasted_iota(jnp.int32, (bt, 1), 0)
        mask = (row < b_actual).astype(f32)

    def masked_total(x):                      # sum of all valid elements of a (bt, n) array
        s = jnp.sum(x, axis=-1, keepdims=True)
        if padded:
            s = s * mask
        return jnp.sum(s)

    # ---- p_transition.given(x_q_tn1, u_tn1).rsample():  mu_p = [x|u] @ [A; B] ----
    mu_p = jnp.dot(xu_ref[...], ab_ref[...], preferred_element_type=f32)   # (bt, dx)
    logstd_p = logstd_p_ref[...]                                           # (1, dx)
    std_p = jnp.exp(logstd_p)
    x_p = mu_p + std_p * eps_p_ref[...]

    # ---- q_encoder.given([I0, I1]): per-camera linear -> ReLU -> (mu, logstd) heads ----
    i0 = i0_ref[...]                          # f32; reused below for the MSE
    i1 = i1_ref[...]
    feat = (jnp.dot(i0.astype(bf16), we0_ref[...], preferred_element_type=f32)
            + jnp.dot(i1.astype(bf16), we1_ref[...], preferred_element_type=f32)
            + be_ref[...])
    feat = jnp.maximum(feat, 0.0)
    mu_q = jnp.dot(feat, wmu_ref[...], preferred_element_type=f32) + bmu_ref[...]
    logstd_q = jnp.dot(feat, wls_ref[...], preferred_element_type=f32) + bls_ref[...]
    std_q = jnp.exp(logstd_q)

    # x_q_t = q_encoder.rsample()
    xq_ref[...] = mu_q + std_q * eps_q_ref[...]

    # ---- p_decoder(x_p_t) per camera + masked sum-of-squared-error partials ----
    x_p_b = x_p.astype(bf16)
    rec0 = jnp.dot(x_p_b, wd0_ref[...], preferred_element_type=f32) + bd0_ref[...]
    rec0_ref[...] = rec0.astype(rec0_ref.dtype)
    d0 = rec0 - i0
    sq0 = masked_total(d0 * d0)

    rec1 = jnp.dot(x_p_b, wd1_ref[...], preferred_element_type=f32) + bd1_ref[...]
    rec1_ref[...] = rec1.astype(rec1_ref.dtype)
    d1 = rec1 - i1
    sq1 = masked_total(d1 * d1)

    # ---- KLdiv(q_encoder || p_transition), diagonal Gaussians ----
    kl = (logstd_p - logstd_q
          + (std_q * std_q + (mu_q - mu_p) ** 2) / (2.0 * std_p * std_p)
          - 0.5)
    klsum = masked_total(kl)

    # ---- per-tile partial sums written as a lane-dense (8,128) block; wrapper finalizes ----
    rowi = jax.lax.broadcasted_iota(jnp.int32, (8, 128), 0)
    lanei = jax.lax.broadcasted_iota(jnp.int32, (8, 128), 1)
    part = jnp.where((rowi == 0) & (lanei == 0), sq0, jnp.zeros((8, 128), f32))
    part = jnp.where((rowi == 0) & (lanei == 1), sq1, part)
    part = jnp.where((rowi == 0) & (lanei == 2), klsum, part)
    part_ref[...] = part


def _select_tiling(dimg, dx):
    """VMEM-budget-derived batch-tile cap + generation-aware VMEM limit."""
    try:
        vmem_cap = int(pltpu.get_tpu_info().vmem_capacity_bytes)
    except Exception:
        vmem_cap = 64 * 1024 * 1024        # conservative default (v7x per-core VMEM)
    # Per-row VMEM: double-buffered tiled I/O (f32 images in, bf16 recons out, xu/eps/x_q)
    # plus in-kernel f32 temps (per-camera rec + diff + headroom).
    io_row = 2 * dimg * 4 + 2 * dimg * 2 + (2 * dx + 3 * dx) * 4
    row_bytes = 2 * io_row + 3 * dimg * 4
    budget = int(vmem_cap * 0.45)
    bt_cap = max(128, min(1024, (budget // row_bytes) // 128 * 128))
    vmem_limit = int(min(int(vmem_cap * 0.75), 96 * 1024 * 1024))
    return bt_cap, vmem_limit


def linear_dynamical_cell(I_t, x_q_tn1, u_tn1, eps_p, eps_q, params,
                          *, alpha=1.0, kl_beta=1.0):
    """Wrapper: tiles the batch, keeps weights at natural shapes, calls the Pallas kernel."""
    f32, bf16 = jnp.float32, jnp.bfloat16
    B = x_q_tn1.shape[0]
    C, H, W = I_t[0].shape[1:]
    dimg = C * H * W
    dx = x_q_tn1.shape[1]
    hid = params["We0"].shape[1]

    bt_cap, vmem_limit = _select_tiling(dimg, dx)
    if B <= bt_cap:
        Bt = Bp = B                      # single tile, no padding, no output slicing
    else:
        Bt = bt_cap
        Bp = _round_up(B, Bt)
    grid = (Bp // Bt,)
    padded = Bp != B

    def pad_batch(x):
        return jnp.pad(x, ((0, Bp - B), (0, 0))) if padded else x

    # ---- activations (tiled per grid step); images stay f32, cast to bf16 in-kernel ----
    i0 = pad_batch(I_t[0].reshape(B, dimg))
    i1 = pad_batch(I_t[1].reshape(B, dimg))
    xu = pad_batch(jnp.concatenate([x_q_tn1, u_tn1], axis=1).astype(f32))   # (Bp, 2*dx)
    epsp = pad_batch(eps_p.astype(f32))                                     # (Bp, dx)
    epsq = pad_batch(eps_q.astype(f32))

    # ---- resident weights (natural shapes; bf16 only on the image-sized matrices) ----
    ab = jnp.concatenate([params["A"], params["Bm"]], axis=0).astype(f32)   # (2*dx, dx)
    logstd_p = params["logstd_p"].astype(f32)                               # (1, dx)
    we0 = params["We0"].astype(bf16)                                        # (dimg, hid)
    we1 = params["We1"].astype(bf16)
    be = params["be"].astype(f32)                                           # (1, hid)
    wmu, bmu = params["Wmu"].astype(f32), params["bmu"].astype(f32)         # (hid, dx)
    wls, bls = params["Wls"].astype(f32), params["bls"].astype(f32)
    wd0, bd0 = params["Wd0"].astype(bf16), params["bd0"].astype(f32)        # (dx, dimg)
    wd1, bd1 = params["Wd1"].astype(bf16), params["bd1"].astype(f32)

    inputs = (i0, i1, xu, epsp, epsq, ab, logstd_p, we0, we1, be,
              wmu, bmu, wls, bls, wd0, bd0, wd1, bd1)

    out_shape = (
        jax.ShapeDtypeStruct((Bp, dx), f32),            # x_q_t
        jax.ShapeDtypeStruct((Bp, dimg), bf16),         # rec0
        jax.ShapeDtypeStruct((Bp, dimg), bf16),         # rec1
        jax.ShapeDtypeStruct((grid[0] * 8, 128), f32),  # per-tile loss partial sums
    )

    flops = int(2 * Bp * (2 * dimg * hid + 2 * hid * dx + 2 * dx * dx + 2 * dx * dimg))
    bytes_accessed = int(
        Bp * (2 * dimg * 4 + 2 * dimg * 2 + 2 * dx * 4 + 3 * dx * 4)
        + (2 * dimg * hid + 2 * dx * dimg) * 2 + (2 * dx * dx + 2 * hid * dx) * 4
        + grid[0] * 8 * 128 * 4)
    cost = pl.CostEstimate(flops=flops, transcendentals=int((Bp + grid[0]) * dx),
                           bytes_accessed=bytes_accessed)

    kernel = functools.partial(_cell_kernel, b_actual=B, padded=padded)

    def run(single_buffer_weights):
        def tiled(cols):
            return pl.BlockSpec((Bt, cols), lambda i: (i, 0))

        def resident(shape):
            idx = lambda i, _n=len(shape): (0,) * _n
            if single_buffer_weights:
                return pl.BlockSpec(shape, idx, pipeline_mode=pl.Buffered(1))
            return pl.BlockSpec(shape, idx)

        in_specs = [
            tiled(dimg), tiled(dimg),                        # I0, I1 (f32)
            tiled(2 * dx),                                   # [x | u]
            tiled(dx), tiled(dx),                            # eps_p, eps_q
            resident((2 * dx, dx)), resident((1, dx)),       # [A; B], logstd_p
            resident((dimg, hid)), resident((dimg, hid)),    # We0, We1
            resident((1, hid)),                              # be
            resident((hid, dx)), resident((1, dx)),          # Wmu, bmu
            resident((hid, dx)), resident((1, dx)),          # Wls, bls
            resident((dx, dimg)), resident((1, dimg)),       # Wd0, bd0
            resident((dx, dimg)), resident((1, dimg)),       # Wd1, bd1
        ]
        out_specs = (
            tiled(dx),                                       # x_q_t
            tiled(dimg), tiled(dimg),                        # rec0, rec1 (lane-dense)
            pl.BlockSpec((8, 128), lambda i: (i, 0)),        # one partial-sum block per tile
        )
        return pl.pallas_call(
            kernel,
            out_shape=out_shape,
            grid_spec=pltpu.PrefetchScalarGridSpec(
                num_scalar_prefetch=0, grid=grid,
                in_specs=in_specs, out_specs=out_specs),
            compiler_params=pltpu.CompilerParams(
                dimension_semantics=("parallel",),           # per-tile partials -> no reduction
                vmem_limit_bytes=vmem_limit),
            cost_estimate=cost,
        )(*inputs)

    try:
        xq_t, rec0, rec1, partials = run(True)
    except Exception:
        # pl.Buffered(1) (single-buffered resident weights) rejected on this jax version:
        # fall back to default double buffering (small VMEM cost, identical results).
        xq_t, rec0, rec1, partials = run(False)

    # ---- finalize the scalars from per-tile partial sums (tiny wrapper-side ops) ----
    totals = jnp.sum(partials, axis=0)          # (128,), lanes 0..2 are meaningful
    loss0 = totals[0] / B
    loss1 = totals[1] / B
    e_kl = totals[2] / B
    beta_kl = kl_beta * e_kl
    E = alpha * (-(loss0 + loss1)) - beta_kl

    if padded:
        xq_t, rec0, rec1 = xq_t[:B], rec0[:B], rec1[:B]

    return {
        "E": E,
        "x_q_t": xq_t,
        "KL_loss": e_kl,
        "beta_kl": beta_kl,
        "image_losses": [loss0, loss1],
        "I_t_recs": [rec0.reshape(B, C, H, W), rec1.reshape(B, C, H, W)],
    }


def _reference(I_t, x_q_tn1, u_tn1, eps_p, eps_q, p):
    """Pure-JAX f32 reference of the same forward math for a sanity check."""
    B = x_q_tn1.shape[0]
    i0 = I_t[0].reshape(B, -1)
    i1 = I_t[1].reshape(B, -1)
    hp = jax.lax.Precision.HIGHEST
    mu_p = x_q_tn1 @ p["A"] + u_tn1 @ p["Bm"]
    std_p = jnp.exp(p["logstd_p"])
    x_p_t = mu_p + std_p * eps_p
    feat = jnp.maximum(
        jnp.dot(i0, p["We0"], precision=hp) + jnp.dot(i1, p["We1"], precision=hp) + p["be"], 0.0)
    mu_q = feat @ p["Wmu"] + p["bmu"]
    logstd_q = feat @ p["Wls"] + p["bls"]
    std_q = jnp.exp(logstd_q)
    x_q_t = mu_q + std_q * eps_q
    rec0 = x_p_t @ p["Wd0"] + p["bd0"]
    rec1 = x_p_t @ p["Wd1"] + p["bd1"]
    loss0 = jnp.sum((rec0 - i0) ** 2) / B
    loss1 = jnp.sum((rec1 - i1) ** 2) / B
    kl = (p["logstd_p"] - logstd_q
          + (std_q ** 2 + (mu_q - mu_p) ** 2) / (2.0 * std_p ** 2) - 0.5)
    E_kl = jnp.sum(kl) / B
    E = -(loss0 + loss1) - E_kl
    return E, E_kl, x_q_t


if __name__ == "__main__":
    key = jax.random.PRNGKey(0)
    B, C, H, W = 2, 4, 16, 16          # two-camera NCHW inputs
    dim_x, hidden = 8, 32
    dimg = C * H * W
    ks = jax.random.split(key, 16)

    I0 = jax.random.normal(ks[0], (B, C, H, W), jnp.float32)
    I1 = jax.random.normal(ks[1], (B, C, H, W), jnp.float32)
    x_q_tn1 = jax.random.normal(ks[2], (B, dim_x), jnp.float32)
    u_tn1 = jax.random.normal(ks[3], (B, dim_x), jnp.float32)
    eps_p = jax.random.normal(ks[4], (B, dim_x), jnp.float32)
    eps_q = jax.random.normal(ks[5], (B, dim_x), jnp.float32)

    def init(k, shape, scale):
        return scale * jax.random.normal(k, shape, jnp.float32)

    params = {
        "A": init(ks[6], (dim_x, dim_x), 0.1),
        "Bm": init(ks[7], (dim_x, dim_x), 0.1),
        "logstd_p": init(ks[8], (1, dim_x), 0.1),
        "We0": init(ks[9], (dimg, hidden), 0.02),
        "We1": init(ks[10], (dimg, hidden), 0.02),
        "be": jnp.zeros((1, hidden), jnp.float32),
        "Wmu": init(ks[11], (hidden, dim_x), 0.1),
        "bmu": jnp.zeros((1, dim_x), jnp.float32),
        "Wls": init(ks[12], (hidden, dim_x), 0.1),
        "bls": jnp.zeros((1, dim_x), jnp.float32),
        "Wd0": init(ks[13], (dim_x, dimg), 0.1),
        "bd0": jnp.zeros((1, dimg), jnp.float32),
        "Wd1": init(ks[14], (dim_x, dimg), 0.1),
        "bd1": jnp.zeros((1, dimg), jnp.float32),
    }

    out = linear_dynamical_cell([I0, I1], x_q_tn1, u_tn1, eps_p, eps_q, params)
    out = jax.tree_util.tree_map(jax.block_until_ready, out)

    E_ref, E_kl_ref, x_q_ref = _reference([I0, I1], x_q_tn1, u_tn1, eps_p, eps_q, params)
    # bf16 image/weight matmul path vs f32 HIGHEST reference -> tolerances cover bf16 rounding.
    np.testing.assert_allclose(np.asarray(out["E"]), np.asarray(E_ref), rtol=2e-2, atol=5e-2)
    np.testing.assert_allclose(np.asarray(out["KL_loss"]), np.asarray(E_kl_ref), rtol=2e-2, atol=5e-2)
    np.testing.assert_allclose(np.asarray(out["x_q_t"]), np.asarray(x_q_ref), rtol=2e-2, atol=5e-2)
    assert out["I_t_recs"][0].shape == (B, C, H, W)
    assert out["I_t_recs"][1].shape == (B, C, H, W)

    print("KERNEL_OK")
</pallas_src>

<mosaic_0001>
module attributes {stable_mosaic.version = 11 : i64} {
  func.func @_cell_kernel(%arg0: i32, %arg1: memref<2x1024xf32, #tpu.memory_space<vmem>>, %arg2: memref<2x1024xf32, #tpu.memory_space<vmem>>, %arg3: memref<2x16xf32, #tpu.memory_space<vmem>>, %arg4: memref<2x8xf32, #tpu.memory_space<vmem>>, %arg5: memref<2x8xf32, #tpu.memory_space<vmem>>, %arg6: memref<16x8xf32, #tpu.memory_space<vmem>>, %arg7: memref<1x8xf32, #tpu.memory_space<vmem>>, %arg8: memref<1024x32xbf16, #tpu.memory_space<vmem>>, %arg9: memref<1024x32xbf16, #tpu.memory_space<vmem>>, %arg10: memref<1x32xf32, #tpu.memory_space<vmem>>, %arg11: memref<32x8xf32, #tpu.memory_space<vmem>>, %arg12: memref<1x8xf32, #tpu.memory_space<vmem>>, %arg13: memref<32x8xf32, #tpu.memory_space<vmem>>, %arg14: memref<1x8xf32, #tpu.memory_space<vmem>>, %arg15: memref<8x1024xbf16, #tpu.memory_space<vmem>>, %arg16: memref<1x1024xf32, #tpu.memory_space<vmem>>, %arg17: memref<8x1024xbf16, #tpu.memory_space<vmem>>, %arg18: memref<1x1024xf32, #tpu.memory_space<vmem>>, %arg19: memref<2x8xf32, #tpu.memory_space<vmem>>, %arg20: memref<2x1024xbf16, #tpu.memory_space<vmem>>, %arg21: memref<2x1024xbf16, #tpu.memory_space<vmem>>, %arg22: memref<8x128xf32, #tpu.memory_space<vmem>>) attributes {dimension_semantics = [#tpu.dimension_semantics<parallel>], iteration_bounds = array<i64: 1>, scalar_prefetch = 0 : i64, scratch_operands = 0 : i64, tpu.core_type = #tpu.core_type<tc>, window_params = [{transform_indices = @transform_0, window_bounds = array<i64: 2, 1024>}, {transform_indices = @transform_1, window_bounds = array<i64: 2, 1024>}, {transform_indices = @transform_2, window_bounds = array<i64: 2, 16>}, {transform_indices = @transform_3, window_bounds = array<i64: 2, 8>}, {transform_indices = @transform_4, window_bounds = array<i64: 2, 8>}, {pipeline_mode = #tpu.pipeline_mode<synchronous>, transform_indices = @transform_5, window_bounds = array<i64: 16, 8>}, {pipeline_mode = #tpu.pipeline_mode<synchronous>, transform_indices = @transform_6, window_bounds = array<i64: 1, 8>}, {pipeline_mode = #tpu.pipeline_mode<synchronous>, transform_indices = @transform_7, window_bounds = array<i64: 1024, 32>}, {pipeline_mode = #tpu.pipeline_mode<synchronous>, transform_indices = @transform_8, window_bounds = array<i64: 1024, 32>}, {pipeline_mode = #tpu.pipeline_mode<synchronous>, transform_indices = @transform_9, window_bounds = array<i64: 1, 32>}, {pipeline_mode = #tpu.pipeline_mode<synchronous>, transform_indices = @transform_10, window_bounds = array<i64: 32, 8>}, {pipeline_mode = #tpu.pipeline_mode<synchronous>, transform_indices = @transform_11, window_bounds = array<i64: 1, 8>}, {pipeline_mode = #tpu.pipeline_mode<synchronous>, transform_indices = @transform_12, window_bounds = array<i64: 32, 8>}, {pipeline_mode = #tpu.pipeline_mode<synchronous>, transform_indices = @transform_13, window_bounds = array<i64: 1, 8>}, {pipeline_mode = #tpu.pipeline_mode<synchronous>, transform_indices = @transform_14, window_bounds = array<i64: 8, 1024>}, {pipeline_mode = #tpu.pipeline_mode<synchronous>, transform_indices = @transform_15, window_bounds = array<i64: 1, 1024>}, {pipeline_mode = #tpu.pipeline_mode<synchronous>, transform_indices = @transform_16, window_bounds = array<i64: 8, 1024>}, {pipeline_mode = #tpu.pipeline_mode<synchronous>, transform_indices = @transform_17, window_bounds = array<i64: 1, 1024>}, {transform_indices = @transform_18, window_bounds = array<i64: 2, 8>}, {transform_indices = @transform_19, window_bounds = array<i64: 2, 1024>}, {transform_indices = @transform_20, window_bounds = array<i64: 2, 1024>}, {transform_indices = @transform_21, window_bounds = array<i64: 8, 128>}]} {
    %c0 = arith.constant 0 : index
    %c0_0 = arith.constant 0 : index
    %0 = vector.load %arg3[%c0, %c0_0] : memref<2x16xf32, #tpu.memory_space<vmem>>, vector<2x16xf32>
    %c0_1 = arith.constant 0 : index
    %c0_2 = arith.constant 0 : index
    %1 = vector.load %arg6[%c0_1, %c0_2] : memref<16x8xf32, #tpu.memory_space<vmem>>, vector<16x8xf32>
    %cst = arith.constant dense<0.000000e+00> : vector<2x8xf32>
    %2 = tpu.matmul %0, %1, %cst {dimension_numbers = #tpu.dot_dimension_numbers<[1], [0], [0], [1], [0, 0, 1, 1], [], []>} : vector<2x16xf32>, vector<16x8xf32>, vector<2x8xf32> -> vector<2x8xf32>
    %c0_3 = arith.constant 0 : index
    %c0_4 = arith.constant 0 : index
    %3 = vector.load %arg7[%c0_3, %c0_4] : memref<1x8xf32, #tpu.memory_space<vmem>>, vector<1x8xf32>
    %4 = math.exp %3 : vector<1x8xf32>
    %c0_5 = arith.constant 0 : index
    %c0_6 = arith.constant 0 : index
    %5 = vector.load %arg4[%c0_5, %c0_6] : memref<2x8xf32, #tpu.memory_space<vmem>>, vector<2x8xf32>
    %6 = vector.broadcast %4 : vector<1x8xf32> to vector<2x8xf32>
    %7 = arith.mulf %6, %5 : vector<2x8xf32>
    %8 = arith.addf %2, %7 : vector<2x8xf32>
    %c0_7 = arith.constant 0 : index
    %c0_8 = arith.constant 0 : index
    %9 = vector.load %arg1[%c0_7, %c0_8] : memref<2x1024xf32, #tpu.memory_space<vmem>>, vector<2x1024xf32>
    %c0_9 = arith.constant 0 : index
    %c0_10 = arith.constant 0 : index
    %10 = vector.load %arg2[%c0_9, %c0_10] : memref<2x1024xf32, #tpu.memory_space<vmem>>, vector<2x1024xf32>
    %11 = arith.truncf %9 : vector<2x1024xf32> to vector<2x1024xbf16>
    %c0_11 = arith.constant 0 : index
    %c0_12 = arith.constant 0 : index
    %12 = vector.load %arg8[%c0_11, %c0_12] : memref<1024x32xbf16, #tpu.memory_space<vmem>>, vector<1024x32xbf16>
    %cst_13 = arith.constant dense<0.000000e+00> : vector<2x32xf32>
    %13 = tpu.matmul %11, %12, %cst_13 {dimension_numbers = #tpu.dot_dimension_numbers<[1], [0], [0], [1], [0, 0, 1, 1], [], []>} : vector<2x1024xbf16>, vector<1024x32xbf16>, vector<2x32xf32> -> vector<2x32xf32>
    %14 = arith.truncf %10 : vector<2x1024xf32> to vector<2x1024xbf16>
    %c0_14 = arith.constant 0 : index
    %c0_15 = arith.constant 0 : index
    %15 = vector.load %arg9[%c0_14, %c0_15] : memref<1024x32xbf16, #tpu.memory_space<vmem>>, vector<1024x32xbf16>
    %cst_16 = arith.constant dense<0.000000e+00> : vector<2x32xf32>
    %16 = tpu.matmul %14, %15, %cst_16 {dimension_numbers = #tpu.dot_dimension_numbers<[1], [0], [0], [1], [0, 0, 1, 1], [], []>} : vector<2x1024xbf16>, vector<1024x32xbf16>, vector<2x32xf32> -> vector<2x32xf32>
    %17 = arith.addf %13, %16 : vector<2x32xf32>
    %c0_17 = arith.constant 0 : index
    %c0_18 = arith.constant 0 : index
    %18 = vector.load %arg10[%c0_17, %c0_18] : memref<1x32xf32, #tpu.memory_space<vmem>>, vector<1x32xf32>
    %19 = vector.broadcast %18 : vector<1x32xf32> to vector<2x32xf32>
    %20 = arith.addf %17, %19 : vector<2x32xf32>
    %cst_19 = arith.constant 0.000000e+00 : f32
    %21 = vector.broadcast %cst_19 : f32 to vector<2x32xf32>
    %22 = arith.maximumf %20, %21 : vector<2x32xf32>
    %c0_20 = arith.constant 0 : index
    %c0_21 = arith.constant 0 : index
    %23 = vector.load %arg11[%c0_20, %c0_21] : memref<32x8xf32, #tpu.memory_space<vmem>>, vector<32x8xf32>
    %cst_22 = arith.constant dense<0.000000e+00> : vector<2x8xf32>
    %24 = tpu.matmul %22, %23, %cst_22 {dimension_numbers = #tpu.dot_dimension_numbers<[1], [0], [0], [1], [0, 0, 1, 1], [], []>} : vector<2x32xf32>, vector<32x8xf32>, vector<2x8xf32> -> vector<2x8xf32>
    %c0_23 = arith.constant 0 : index
    %c0_24 = arith.constant 0 : index
    %25 = vector.load %arg12[%c0_23, %c0_24] : memref<1x8xf32, #tpu.memory_space<vmem>>, vector<1x8xf32>
    %26 = vector.broadcast %25 : vector<1x8xf32> to vector<2x8xf32>
    %27 = arith.addf %24, %26 : vector<2x8xf32>
    %c0_25 = arith.constant 0 : index
    %c0_26 = arith.constant 0 : index
    %28 = vector.load %arg13[%c0_25, %c0_26] : memref<32x8xf32, #tpu.memory_space<vmem>>, vector<32x8xf32>
    %cst_27 = arith.constant dense<0.000000e+00> : vector<2x8xf32>
    %29 = tpu.matmul %22, %28, %cst_27 {dimension_numbers = #tpu.dot_dimension_numbers<[1], [0], [0], [1], [0, 0, 1, 1], [], []>} : vector<2x32xf32>, vector<32x8xf32>, vector<2x8xf32> -> vector<2x8xf32>
    %c0_28 = arith.constant 0 : index
    %c0_29 = arith.constant 0 : index
    %30 = vector.load %arg14[%c0_28, %c0_29] : memref<1x8xf32, #tpu.memory_space<vmem>>, vector<1x8xf32>
    %31 = vector.broadcast %30 : vector<1x8xf32> to vector<2x8xf32>
    %32 = arith.addf %29, %31 : vector<2x8xf32>
    %33 = math.exp %32 : vector<2x8xf32>
    %c0_30 = arith.constant 0 : index
    %c0_31 = arith.constant 0 : index
    %34 = vector.load %arg5[%c0_30, %c0_31] : memref<2x8xf32, #tpu.memory_space<vmem>>, vector<2x8xf32>
    %35 = arith.mulf %33, %34 : vector<2x8xf32>
    %36 = arith.addf %27, %35 : vector<2x8xf32>
    %c0_32 = arith.constant 0 : index
    %c0_33 = arith.constant 0 : index
    %37 = vector.load %arg19[%c0_32, %c0_33] : memref<2x8xf32, #tpu.memory_space<vmem>>, vector<2x8xf32>
    tpu.vector_store %arg19[%c0_32, %c0_33], %36 {strides = array<i32>} : memref<2x8xf32, #tpu.memory_space<vmem>>, vector<2x8xf32>,
    %38 = arith.truncf %8 : vector<2x8xf32> to vector<2x8xbf16>
    %c0_34 = arith.constant 0 : index
    %c0_35 = arith.constant 0 : index
    %39 = vector.load %arg15[%c0_34, %c0_35] : memref<8x1024xbf16, #tpu.memory_space<vmem>>, vector<8x1024xbf16>
    %cst_36 = arith.constant dense<0.000000e+00> : vector<2x1024xf32>
    %40 = tpu.matmul %38, %39, %cst_36 {dimension_numbers = #tpu.dot_dimension_numbers<[1], [0], [0], [1], [0, 0, 1, 1], [], []>} : vector<2x8xbf16>, vector<8x1024xbf16>, vector<2x1024xf32> -> vector<2x1024xf32>
    %c0_37 = arith.constant 0 : index
    %c0_38 = arith.constant 0 : index
    %41 = vector.load %arg16[%c0_37, %c0_38] : memref<1x1024xf32, #tpu.memory_space<vmem>>, vector<1x1024xf32>
    %42 = vector.broadcast %41 : vector<1x1024xf32> to vector<2x1024xf32>
    %43 = arith.addf %40, %42 : vector<2x1024xf32>
    %44 = arith.truncf %43 : vector<2x1024xf32> to vector<2x1024xbf16>
    %c0_39 = arith.constant 0 : index
    %c0_40 = arith.constant 0 : index
    %45 = vector.load %arg20[%c0_39, %c0_40] : memref<2x1024xbf16, #tpu.memory_space<vmem>>, vector<2x1024xbf16>
    tpu.vector_store %arg20[%c0_39, %c0_40], %44 {strides = array<i32>} : memref<2x1024xbf16, #tpu.memory_space<vmem>>, vector<2x1024xbf16>,
    %46 = arith.subf %43, %9 : vector<2x1024xf32>
    %47 = arith.mulf %46, %46 : vector<2x1024xf32>
    %cst_41 = arith.constant dense<0.000000e+00> : vector<2xf32>
    %48 = vector.multi_reduction <add>, %47, %cst_41 [1] : vector<2x1024xf32> to vector<2xf32>
    %49 = vector.shape_cast %48 : vector<2xf32> to vector<2x1xf32>
    %50 = vector.shape_cast %49 : vector<2x1xf32> to vector<1x2x1xf32>
    %cst_42 = arith.constant dense<0.000000e+00> : vector<1xf32>
    %51 = vector.multi_reduction <add>, %50, %cst_42 [1, 2] : vector<1x2x1xf32> to vector<1xf32>
    %52 = vector.shape_cast %51 : vector<1xf32> to vector<1x1x1xf32>
    %53 = vector.extract %52[0, 0, 0] : f32 from vector<1x1x1xf32>
    %c0_43 = arith.constant 0 : index
    %c0_44 = arith.constant 0 : index
    %54 = vector.load %arg17[%c0_43, %c0_44] : memref<8x1024xbf16, #tpu.memory_space<vmem>>, vector<8x1024xbf16>
    %cst_45 = arith.constant dense<0.000000e+00> : vector<2x1024xf32>
    %55 = tpu.matmul %38, %54, %cst_45 {dimension_numbers = #tpu.dot_dimension_numbers<[1], [0], [0], [1], [0, 0, 1, 1], [], []>} : vector<2x8xbf16>, vector<8x1024xbf16>, vector<2x1024xf32> -> vector<2x1024xf32>
    %c0_46 = arith.constant 0 : index
    %c0_47 = arith.constant 0 : index
    %56 = vector.load %arg18[%c0_46, %c0_47] : memref<1x1024xf32, #tpu.memory_space<vmem>>, vector<1x1024xf32>
    %57 = vector.broadcast %56 : vector<1x1024xf32> to vector<2x1024xf32>
    %58 = arith.addf %55, %57 : vector<2x1024xf32>
    %59 = arith.truncf %58 : vector<2x1024xf32> to vector<2x1024xbf16>
    %c0_48 = arith.constant 0 : index
    %c0_49 = arith.constant 0 : index
    %60 = vector.load %arg21[%c0_48, %c0_49] : memref<2x1024xbf16, #tpu.memory_space<vmem>>, vector<2x1024xbf16>
    tpu.vector_store %arg21[%c0_48, %c0_49], %59 {strides = array<i32>} : memref<2x1024xbf16, #tpu.memory_space<vmem>>, vector<2x1024xbf16>,
    %61 = arith.subf %58, %10 : vector<2x1024xf32>
    %62 = arith.mulf %61, %61 : vector<2x1024xf32>
    %cst_50 = arith.constant dense<0.000000e+00> : vector<2xf32>
    %63 = vector.multi_reduction <add>, %62, %cst_50 [1] : vector<2x1024xf32> to vector<2xf32>
    %64 = vector.shape_cast %63 : vector<2xf32> to vector<2x1xf32>
    %65 = vector.shape_cast %64 : vector<2x1xf32> to vector<1x2x1xf32>
    %cst_51 = arith.constant dense<0.000000e+00> : vector<1xf32>
    %66 = vector.multi_reduction <add>, %65, %cst_51 [1, 2] : vector<1x2x1xf32> to vector<1xf32>
    %67 = vector.shape_cast %66 : vector<1xf32> to vector<1x1x1xf32>
    %68 = vector.extract %67[0, 0, 0] : f32 from vector<1x1x1xf32>
    %69 = vector.broadcast %3 : vector<1x8xf32> to vector<2x8xf32>
    %70 = arith.subf %69, %32 : vector<2x8xf32>
    %71 = arith.mulf %33, %33 : vector<2x8xf32>
    %72 = arith.subf %27, %2 : vector<2x8xf32>
    %73 = arith.mulf %72, %72 : vector<2x8xf32>
    %74 = arith.addf %71, %73 : vector<2x8xf32>
    %cst_52 = arith.constant 2.000000e+00 : f32
    %75 = vector.broadcast %cst_52 : f32 to vector<1x8xf32>
    %76 = arith.mulf %75, %4 : vector<1x8xf32>
    %77 = arith.mulf %76, %4 : vector<1x8xf32>
    %78 = vector.broadcast %77 : vector<1x8xf32> to vector<2x8xf32>
    %79 = arith.divf %74, %78 : vector<2x8xf32>
    %80 = arith.addf %70, %79 : vector<2x8xf32>
    %cst_53 = arith.constant 5.000000e-01 : f32
    %81 = vector.broadcast %cst_53 : f32 to vector<2x8xf32>
    %82 = arith.subf %80, %81 : vector<2x8xf32>
    %cst_54 = arith.constant dense<0.000000e+00> : vector<2xf32>
    %83 = vector.multi_reduction <add>, %82, %cst_54 [1] : vector<2x8xf32> to vector<2xf32>
    %84 = vector.shape_cast %83 : vector<2xf32> to vector<2x1xf32>
    %85 = vector.shape_cast %84 : vector<2x1xf32> to vector<1x2x1xf32>
    %cst_55 = arith.constant dense<0.000000e+00> : vector<1xf32>
    %86 = vector.multi_reduction <add>, %85, %cst_55 [1, 2] : vector<1x2x1xf32> to vector<1xf32>
    %87 = vector.shape_cast %86 : vector<1xf32> to vector<1x1x1xf32>
    %88 = vector.extract %87[0, 0, 0] : f32 from vector<1x1x1xf32>
    %89 = tpu.iota {dimensions = array<i32: 0>} : vector<8x128xi32>
    %90 = tpu.iota {dimensions = array<i32: 1>} : vector<8x128xi32>
    %c0_i32 = arith.constant 0 : i32
    %91 = vector.broadcast %c0_i32 : i32 to vector<8x128xi32>
    %92 = arith.cmpi eq, %89, %91 : vector<8x128xi32>
    %c0_i32_56 = arith.constant 0 : i32
    %93 = vector.broadcast %c0_i32_56 : i32 to vector<8x128xi32>
    %94 = arith.cmpi eq, %90, %93 : vector<8x128xi32>
    %95 = arith.andi %92, %94 : vector<8x128xi1>
    %cst_57 = arith.constant 0.000000e+00 : f32
    %96 = vector.broadcast %cst_57 : f32 to vector<8x128xf32>
    %97 = vector.broadcast %53 : f32 to vector<8x128xf32>
    %98 = arith.select %95, %97, %96 : vector<8x128xi1>, vector<8x128xf32>
    %c0_i32_58 = arith.constant 0 : i32
    %99 = vector.broadcast %c0_i32_58 : i32 to vector<8x128xi32>
    %100 = arith.cmpi eq, %89, %99 : vector<8x128xi32>
    %c1_i32 = arith.constant 1 : i32
    %101 = vector.broadcast %c1_i32 : i32 to vector<8x128xi32>
    %102 = arith.cmpi eq, %90, %101 : vector<8x128xi32>
    %103 = arith.andi %100, %102 : vector<8x128xi1>
    %104 = vector.broadcast %68 : f32 to vector<8x128xf32>
    %105 = arith.select %103, %104, %98 : vector<8x128xi1>, vector<8x128xf32>
    %c0_i32_59 = arith.constant 0 : i32
    %106 = vector.broadcast %c0_i32_59 : i32 to vector<8x128xi32>
    %107 = arith.cmpi eq, %89, %106 : vector<8x128xi32>
    %c2_i32 = arith.constant 2 : i32
    %108 = vector.broadcast %c2_i32 : i32 to vector<8x128xi32>
    %109 = arith.cmpi eq, %90, %108 : vector<8x128xi32>
    %110 = arith.andi %107, %109 : vector<8x128xi1>
    %111 = vector.broadcast %88 : f32 to vector<8x128xf32>
    %112 = arith.select %110, %111, %105 : vector<8x128xi1>, vector<8x128xf32>
    %c0_60 = arith.constant 0 : index
    %c0_61 = arith.constant 0 : index
    %113 = vector.load %arg22[%c0_60, %c0_61] : memref<8x128xf32, #tpu.memory_space<vmem>>, vector<8x128xf32>
    tpu.vector_store %arg22[%c0_60, %c0_61], %112 {strides = array<i32>} : memref<8x128xf32, #tpu.memory_space<vmem>>, vector<8x128xf32>,
    return
  }
  func.func @transform_0(%arg0: i32) -> (i32, i32) {
    %c0_i32 = arith.constant 0 : i32
    %c0_i32_0 = arith.constant 0 : i32
    return %arg0, %c0_i32 : i32, i32
  }
  func.func @transform_1(%arg0: i32) -> (i32, i32) {
    %c0_i32 = arith.constant 0 : i32
    %c0_i32_0 = arith.constant 0 : i32
    return %arg0, %c0_i32 : i32, i32
  }
  func.func @transform_2(%arg0: i32) -> (i32, i32) {
    %c0_i32 = arith.constant 0 : i32
    %c0_i32_0 = arith.constant 0 : i32
    return %arg0, %c0_i32 : i32, i32
  }
  func.func @transform_3(%arg0: i32) -> (i32, i32) {
    %c0_i32 = arith.constant 0 : i32
    %c0_i32_0 = arith.constant 0 : i32
    return %arg0, %c0_i32 : i32, i32
  }
  func.func @transform_4(%arg0: i32) -> (i32, i32) {
    %c0_i32 = arith.constant 0 : i32
    %c0_i32_0 = arith.constant 0 : i32
    return %arg0, %c0_i32 : i32, i32
  }
  func.func @transform_5(%arg0: i32) -> (i32, i32) {
    %c0_i32 = arith.constant 0 : i32
    %c0_i32_0 = arith.constant 0 : i32
    %c0_i32_1 = arith.constant 0 : i32
    return %c0_i32, %c0_i32_0 : i32, i32
  }
  func.func @transform_6(%arg0: i32) -> (i32, i32) {
    %c0_i32 = arith.constant 0 : i32
    %c0_i32_0 = arith.constant 0 : i32
    %c0_i32_1 = arith.constant 0 : i32
    return %c0_i32, %c0_i32_0 : i32, i32
  }
  func.func @transform_7(%arg0: i32) -> (i32, i32) {
    %c0_i32 = arith.constant 0 : i32
    %c0_i32_0 = arith.constant 0 : i32
    %c0_i32_1 = arith.constant 0 : i32
    return %c0_i32, %c0_i32_0 : i32, i32
  }
  func.func @transform_8(%arg0: i32) -> (i32, i32) {
    %c0_i32 = arith.constant 0 : i32
    %c0_i32_0 = arith.constant 0 : i32
    %c0_i32_1 = arith.constant 0 : i32
    return %c0_i32, %c0_i32_0 : i32, i32
  }
  func.func @transform_9(%arg0: i32) -> (i32, i32) {
    %c0_i32 = arith.constant 0 : i32
    %c0_i32_0 = arith.constant 0 : i32
    %c0_i32_1 = arith.constant 0 : i32
    return %c0_i32, %c0_i32_0 : i32, i32
  }
  func.func @transform_10(%arg0: i32) -> (i32, i32) {
    %c0_i32 = arith.constant 0 : i32
    %c0_i32_0 = arith.constant 0 : i32
    %c0_i32_1 = arith.constant 0 : i32
    return %c0_i32, %c0_i32_0 : i32, i32
  }
  func.func @transform_11(%arg0: i32) -> (i32, i32) {
    %c0_i32 = arith.constant 0 : i32
    %c0_i32_0 = arith.constant 0 : i32
    %c0_i32_1 = arith.constant 0 : i32
    return %c0_i32, %c0_i32_0 : i32, i32
  }
  func.func @transform_12(%arg0: i32) -> (i32, i32) {
    %c0_i32 = arith.constant 0 : i32
    %c0_i32_0 = arith.constant 0 : i32
    %c0_i32_1 = arith.constant 0 : i32
    return %c0_i32, %c0_i32_0 : i32, i32
  }
  func.func @transform_13(%arg0: i32) -> (i32, i32) {
    %c0_i32 = arith.constant 0 : i32
    %c0_i32_0 = arith.constant 0 : i32
    %c0_i32_1 = arith.constant 0 : i32
    return %c0_i32, %c0_i32_0 : i32, i32
  }
  func.func @transform_14(%arg0: i32) -> (i32, i32) {
    %c0_i32 = arith.constant 0 : i32
    %c0_i32_0 = arith.constant 0 : i32
    %c0_i32_1 = arith.constant 0 : i32
    return %c0_i32, %c0_i32_0 : i32, i32
  }
  func.func @transform_15(%arg0: i32) -> (i32, i32) {
    %c0_i32 = arith.constant 0 : i32
    %c0_i32_0 = arith.constant 0 : i32
    %c0_i32_1 = arith.constant 0 : i32
    return %c0_i32, %c0_i32_0 : i32, i32
  }
  func.func @transform_16(%arg0: i32) -> (i32, i32) {
    %c0_i32 = arith.constant 0 : i32
    %c0_i32_0 = arith.constant 0 : i32
    %c0_i32_1 = arith.constant 0 : i32
    return %c0_i32, %c0_i32_0 : i32, i32
  }
  func.func @transform_17(%arg0: i32) -> (i32, i32) {
    %c0_i32 = arith.constant 0 : i32
    %c0_i32_0 = arith.constant 0 : i32
    %c0_i32_1 = arith.constant 0 : i32
    return %c0_i32, %c0_i32_0 : i32, i32
  }
  func.func @transform_18(%arg0: i32) -> (i32, i32) {
    %c0_i32 = arith.constant 0 : i32
    %c0_i32_0 = arith.constant 0 : i32
    return %arg0, %c0_i32 : i32, i32
  }
  func.func @transform_19(%arg0: i32) -> (i32, i32) {
    %c0_i32 = arith.constant 0 : i32
    %c0_i32_0 = arith.constant 0 : i32
    return %arg0, %c0_i32 : i32, i32
  }
  func.func @transform_20(%arg0: i32) -> (i32, i32) {
    %c0_i32 = arith.constant 0 : i32
    %c0_i32_0 = arith.constant 0 : i32
    return %arg0, %c0_i32 : i32, i32
  }
  func.func @transform_21(%arg0: i32) -> (i32, i32) {
    %c0_i32 = arith.constant 0 : i32
    %c0_i32_0 = arith.constant 0 : i32
    return %arg0, %c0_i32 : i32, i32
  }
}

module attributes {stable_mosaic.version = 11 : i64} {
  func.func @_cell_kernel(%arg0: i32, %arg1: memref<2x1024xf32, #tpu.memory_space<vmem>>, %arg2: memref<2x1024xf32, #tpu.memory_space<vmem>>, %arg3: memref<2x16xf32, #tpu.memory_space<vmem>>, %arg4: memref<2x8xf32, #tpu.memory_space<vmem>>, %arg5: memref<2x8xf32, #tpu.memory_space<vmem>>, %arg6: memref<16x8xf32, #tpu.memory_space<vmem>>, %arg7: memref<1x8xf32, #tpu.memory_space<vmem>>, %arg8: memref<1024x32xbf16, #tpu.memory_space<vmem>>, %arg9: memref<1024x32xbf16, #tpu.memory_space<vmem>>, %arg10: memref<1x32xf32, #tpu.memory_space<vmem>>, %arg11: memref<32x8xf32, #tpu.memory_space<vmem>>, %arg12: memref<1x8xf32, #tpu.memory_space<vmem>>, %arg13: memref<32x8xf32, #tpu.memory_space<vmem>>, %arg14: memref<1x8xf32, #tpu.memory_space<vmem>>, %arg15: memref<8x1024xbf16, #tpu.memory_space<vmem>>, %arg16: memref<1x1024xf32, #tpu.memory_space<vmem>>, %arg17: memref<8x1024xbf16, #tpu.memory_space<vmem>>, %arg18: memref<1x1024xf32, #tpu.memory_space<vmem>>, %arg19: memref<2x8xf32, #tpu.memory_space<vmem>>, %arg20: memref<2x1024xbf16, #tpu.memory_space<vmem>>, %arg21: memref<2x1024xbf16, #tpu.memory_space<vmem>>, %arg22: memref<8x128xf32, #tpu.memory_space<vmem>>) attributes {dimension_semantics = [#tpu.dimension_semantics<parallel>], iteration_bounds = array<i64: 1>, scalar_prefetch = 0 : i64, scratch_operands = 0 : i64, tpu.core_type = #tpu.core_type<tc>, window_params = [{transform_indices = @transform_0, window_bounds = array<i64: 2, 1024>}, {transform_indices = @transform_1, window_bounds = array<i64: 2, 1024>}, {transform_indices = @transform_2, window_bounds = array<i64: 2, 16>}, {transform_indices = @transform_3, window_bounds = array<i64: 2, 8>}, {transform_indices = @transform_4, window_bounds = array<i64: 2, 8>}, {pipeline_mode = #tpu.pipeline_mode<synchronous>, transform_indices = @transform_5, window_bounds = array<i64: 16, 8>}, {pipeline_mode = #tpu.pipeline_mode<synchronous>, transform_indices = @transform_6, window_bounds = array<i64: 1, 8>}, {pipeline_mode = #tpu.pipeline_mode<synchronous>, transform_indices = @transform_7, window_bounds = array<i64: 1024, 32>}, {pipeline_mode = #tpu.pipeline_mode<synchronous>, transform_indices = @transform_8, window_bounds = array<i64: 1024, 32>}, {pipeline_mode = #tpu.pipeline_mode<synchronous>, transform_indices = @transform_9, window_bounds = array<i64: 1, 32>}, {pipeline_mode = #tpu.pipeline_mode<synchronous>, transform_indices = @transform_10, window_bounds = array<i64: 32, 8>}, {pipeline_mode = #tpu.pipeline_mode<synchronous>, transform_indices = @transform_11, window_bounds = array<i64: 1, 8>}, {pipeline_mode = #tpu.pipeline_mode<synchronous>, transform_indices = @transform_12, window_bounds = array<i64: 32, 8>}, {pipeline_mode = #tpu.pipeline_mode<synchronous>, transform_indices = @transform_13, window_bounds = array<i64: 1, 8>}, {pipeline_mode = #tpu.pipeline_mode<synchronous>, transform_indices = @transform_14, window_bounds = array<i64: 8, 1024>}, {pipeline_mode = #tpu.pipeline_mode<synchronous>, transform_indices = @transform_15, window_bounds = array<i64: 1, 1024>}, {pipeline_mode = #tpu.pipeline_mode<synchronous>, transform_indices = @transform_16, window_bounds = array<i64: 8, 1024>}, {pipeline_mode = #tpu.pipeline_mode<synchronous>, transform_indices = @transform_17, window_bounds = array<i64: 1, 1024>}, {transform_indices = @transform_18, window_bounds = array<i64: 2, 8>}, {transform_indices = @transform_19, window_bounds = array<i64: 2, 1024>}, {transform_indices = @transform_20, window_bounds = array<i64: 2, 1024>}, {transform_indices = @transform_21, window_bounds = array<i64: 8, 128>}]} {
    %c0 = arith.constant 0 : index
    %c0_0 = arith.constant 0 : index
    %0 = vector.load %arg3[%c0, %c0_0] : memref<2x16xf32, #tpu.memory_space<vmem>>, vector<2x16xf32>
    %c0_1 = arith.constant 0 : index
    %c0_2 = arith.constant 0 : index
    %1 = vector.load %arg6[%c0_1, %c0_2] : memref<16x8xf32, #tpu.memory_space<vmem>>, vector<16x8xf32>
    %cst = arith.constant dense<0.000000e+00> : vector<2x8xf32>
    %2 = tpu.matmul %0, %1, %cst {dimension_numbers = #tpu.dot_dimension_numbers<[1], [0], [0], [1], [0, 0, 1, 1], [], []>} : vector<2x16xf32>, vector<16x8xf32>, vector<2x8xf32> -> vector<2x8xf32>
    %c0_3 = arith.constant 0 : index
    %c0_4 = arith.constant 0 : index
    %3 = vector.load %arg7[%c0_3, %c0_4] : memref<1x8xf32, #tpu.memory_space<vmem>>, vector<1x8xf32>
    %4 = math.exp %3 : vector<1x8xf32>
    %c0_5 = arith.constant 0 : index
    %c0_6 = arith.constant 0 : index
    %5 = vector.load %arg4[%c0_5, %c0_6] : memref<2x8xf32, #tpu.memory_space<vmem>>, vector<2x8xf32>
    %6 = vector.broadcast %4 : vector<1x8xf32> to vector<2x8xf32>
    %7 = arith.mulf %6, %5 : vector<2x8xf32>
    %8 = arith.addf %2, %7 : vector<2x8xf32>
    %c0_7 = arith.constant 0 : index
    %c0_8 = arith.constant 0 : index
    %9 = vector.load %arg1[%c0_7, %c0_8] : memref<2x1024xf32, #tpu.memory_space<vmem>>, vector<2x1024xf32>
    %c0_9 = arith.constant 0 : index
    %c0_10 = arith.constant 0 : index
    %10 = vector.load %arg2[%c0_9, %c0_10] : memref<2x1024xf32, #tpu.memory_space<vmem>>, vector<2x1024xf32>
    %11 = arith.truncf %9 : vector<2x1024xf32> to vector<2x1024xbf16>
    %c0_11 = arith.constant 0 : index
    %c0_12 = arith.constant 0 : index
    %12 = vector.load %arg8[%c0_11, %c0_12] : memref<1024x32xbf16, #tpu.memory_space<vmem>>, vector<1024x32xbf16>
    %cst_13 = arith.constant dense<0.000000e+00> : vector<2x32xf32>
    %13 = tpu.matmul %11, %12, %cst_13 {dimension_numbers = #tpu.dot_dimension_numbers<[1], [0], [0], [1], [0, 0, 1, 1], [], []>} : vector<2x1024xbf16>, vector<1024x32xbf16>, vector<2x32xf32> -> vector<2x32xf32>
    %14 = arith.truncf %10 : vector<2x1024xf32> to vector<2x1024xbf16>
    %c0_14 = arith.constant 0 : index
    %c0_15 = arith.constant 0 : index
    %15 = vector.load %arg9[%c0_14, %c0_15] : memref<1024x32xbf16, #tpu.memory_space<vmem>>, vector<1024x32xbf16>
    %cst_16 = arith.constant dense<0.000000e+00> : vector<2x32xf32>
    %16 = tpu.matmul %14, %15, %cst_16 {dimension_numbers = #tpu.dot_dimension_numbers<[1], [0], [0], [1], [0, 0, 1, 1], [], []>} : vector<2x1024xbf16>, vector<1024x32xbf16>, vector<2x32xf32> -> vector<2x32xf32>
    %17 = arith.addf %13, %16 : vector<2x32xf32>
    %c0_17 = arith.constant 0 : index
    %c0_18 = arith.constant 0 : index
    %18 = vector.load %arg10[%c0_17, %c0_18] : memref<1x32xf32, #tpu.memory_space<vmem>>, vector<1x32xf32>
    %19 = vector.broadcast %18 : vector<1x32xf32> to vector<2x32xf32>
    %20 = arith.addf %17, %19 : vector<2x32xf32>
    %cst_19 = arith.constant 0.000000e+00 : f32
    %21 = vector.broadcast %cst_19 : f32 to vector<2x32xf32>
    %22 = arith.maximumf %20, %21 : vector<2x32xf32>
    %c0_20 = arith.constant 0 : index
    %c0_21 = arith.constant 0 : index
    %23 = vector.load %arg11[%c0_20, %c0_21] : memref<32x8xf32, #tpu.memory_space<vmem>>, vector<32x8xf32>
    %cst_22 = arith.constant dense<0.000000e+00> : vector<2x8xf32>
    %24 = tpu.matmul %22, %23, %cst_22 {dimension_numbers = #tpu.dot_dimension_numbers<[1], [0], [0], [1], [0, 0, 1, 1], [], []>} : vector<2x32xf32>, vector<32x8xf32>, vector<2x8xf32> -> vector<2x8xf32>
    %c0_23 = arith.constant 0 : index
    %c0_24 = arith.constant 0 : index
    %25 = vector.load %arg12[%c0_23, %c0_24] : memref<1x8xf32, #tpu.memory_space<vmem>>, vector<1x8xf32>
    %26 = vector.broadcast %25 : vector<1x8xf32> to vector<2x8xf32>
    %27 = arith.addf %24, %26 : vector<2x8xf32>
    %c0_25 = arith.constant 0 : index
    %c0_26 = arith.constant 0 : index
    %28 = vector.load %arg13[%c0_25, %c0_26] : memref<32x8xf32, #tpu.memory_space<vmem>>, vector<32x8xf32>
    %cst_27 = arith.constant dense<0.000000e+00> : vector<2x8xf32>
    %29 = tpu.matmul %22, %28, %cst_27 {dimension_numbers = #tpu.dot_dimension_numbers<[1], [0], [0], [1], [0, 0, 1, 1], [], []>} : vector<2x32xf32>, vector<32x8xf32>, vector<2x8xf32> -> vector<2x8xf32>
    %c0_28 = arith.constant 0 : index
    %c0_29 = arith.constant 0 : index
    %30 = vector.load %arg14[%c0_28, %c0_29] : memref<1x8xf32, #tpu.memory_space<vmem>>, vector<1x8xf32>
    %31 = vector.broadcast %30 : vector<1x8xf32> to vector<2x8xf32>
    %32 = arith.addf %29, %31 : vector<2x8xf32>
    %33 = math.exp %32 : vector<2x8xf32>
    %c0_30 = arith.constant 0 : index
    %c0_31 = arith.constant 0 : index
    %34 = vector.load %arg5[%c0_30, %c0_31] : memref<2x8xf32, #tpu.memory_space<vmem>>, vector<2x8xf32>
    %35 = arith.mulf %33, %34 : vector<2x8xf32>
    %36 = arith.addf %27, %35 : vector<2x8xf32>
    %c0_32 = arith.constant 0 : index
    %c0_33 = arith.constant 0 : index
    %37 = vector.load %arg19[%c0_32, %c0_33] : memref<2x8xf32, #tpu.memory_space<vmem>>, vector<2x8xf32>
    tpu.vector_store %arg19[%c0_32, %c0_33], %36 {strides = array<i32>} : memref<2x8xf32, #tpu.memory_space<vmem>>, vector<2x8xf32>,
    %38 = arith.truncf %8 : vector<2x8xf32> to vector<2x8xbf16>
    %c0_34 = arith.constant 0 : index
    %c0_35 = arith.constant 0 : index
    %39 = vector.load %arg15[%c0_34, %c0_35] : memref<8x1024xbf16, #tpu.memory_space<vmem>>, vector<8x1024xbf16>
    %cst_36 = arith.constant dense<0.000000e+00> : vector<2x1024xf32>
    %40 = tpu.matmul %38, %39, %cst_36 {dimension_numbers = #tpu.dot_dimension_numbers<[1], [0], [0], [1], [0, 0, 1, 1], [], []>} : vector<2x8xbf16>, vector<8x1024xbf16>, vector<2x1024xf32> -> vector<2x1024xf32>
    %c0_37 = arith.constant 0 : index
    %c0_38 = arith.constant 0 : index
    %41 = vector.load %arg16[%c0_37, %c0_38] : memref<1x1024xf32, #tpu.memory_space<vmem>>, vector<1x1024xf32>
    %42 = vector.broadcast %41 : vector<1x1024xf32> to vector<2x1024xf32>
    %43 = arith.addf %40, %42 : vector<2x1024xf32>
    %44 = arith.truncf %43 : vector<2x1024xf32> to vector<2x1024xbf16>
    %c0_39 = arith.constant 0 : index
    %c0_40 = arith.constant 0 : index
    %45 = vector.load %arg20[%c0_39, %c0_40] : memref<2x1024xbf16, #tpu.memory_space<vmem>>, vector<2x1024xbf16>
    tpu.vector_store %arg20[%c0_39, %c0_40], %44 {strides = array<i32>} : memref<2x1024xbf16, #tpu.memory_space<vmem>>, vector<2x1024xbf16>,
    %46 = arith.subf %43, %9 : vector<2x1024xf32>
    %47 = arith.mulf %46, %46 : vector<2x1024xf32>
    %cst_41 = arith.constant dense<0.000000e+00> : vector<2xf32>
    %48 = vector.multi_reduction <add>, %47, %cst_41 [1] : vector<2x1024xf32> to vector<2xf32>
    %49 = vector.shape_cast %48 : vector<2xf32> to vector<2x1xf32>
    %50 = vector.shape_cast %49 : vector<2x1xf32> to vector<1x2x1xf32>
    %cst_42 = arith.constant dense<0.000000e+00> : vector<1xf32>
    %51 = vector.multi_reduction <add>, %50, %cst_42 [1, 2] : vector<1x2x1xf32> to vector<1xf32>
    %52 = vector.shape_cast %51 : vector<1xf32> to vector<1x1x1xf32>
    %53 = vector.extract %52[0, 0, 0] : f32 from vector<1x1x1xf32>
    %c0_43 = arith.constant 0 : index
    %c0_44 = arith.constant 0 : index
    %54 = vector.load %arg17[%c0_43, %c0_44] : memref<8x1024xbf16, #tpu.memory_space<vmem>>, vector<8x1024xbf16>
    %cst_45 = arith.constant dense<0.000000e+00> : vector<2x1024xf32>
    %55 = tpu.matmul %38, %54, %cst_45 {dimension_numbers = #tpu.dot_dimension_numbers<[1], [0], [0], [1], [0, 0, 1, 1], [], []>} : vector<2x8xbf16>, vector<8x1024xbf16>, vector<2x1024xf32> -> vector<2x1024xf32>
    %c0_46 = arith.constant 0 : index
    %c0_47 = arith.constant 0 : index
    %56 = vector.load %arg18[%c0_46, %c0_47] : memref<1x1024xf32, #tpu.memory_space<vmem>>, vector<1x1024xf32>
    %57 = vector.broadcast %56 : vector<1x1024xf32> to vector<2x1024xf32>
    %58 = arith.addf %55, %57 : vector<2x1024xf32>
    %59 = arith.truncf %58 : vector<2x1024xf32> to vector<2x1024xbf16>
    %c0_48 = arith.constant 0 : index
    %c0_49 = arith.constant 0 : index
    %60 = vector.load %arg21[%c0_48, %c0_49] : memref<2x1024xbf16, #tpu.memory_space<vmem>>, vector<2x1024xbf16>
    tpu.vector_store %arg21[%c0_48, %c0_49], %59 {strides = array<i32>} : memref<2x1024xbf16, #tpu.memory_space<vmem>>, vector<2x1024xbf16>,
    %61 = arith.subf %58, %10 : vector<2x1024xf32>
    %62 = arith.mulf %61, %61 : vector<2x1024xf32>
    %cst_50 = arith.constant dense<0.000000e+00> : vector<2xf32>
    %63 = vector.multi_reduction <add>, %62, %cst_50 [1] : vector<2x1024xf32> to vector<2xf32>
    %64 = vector.shape_cast %63 : vector<2xf32> to vector<2x1xf32>
    %65 = vector.shape_cast %64 : vector<2x1xf32> to vector<1x2x1xf32>
    %cst_51 = arith.constant dense<0.000000e+00> : vector<1xf32>
    %66 = vector.multi_reduction <add>, %65, %cst_51 [1, 2] : vector<1x2x1xf32> to vector<1xf32>
    %67 = vector.shape_cast %66 : vector<1xf32> to vector<1x1x1xf32>
    %68 = vector.extract %67[0, 0, 0] : f32 from vector<1x1x1xf32>
    %69 = vector.broadcast %3 : vector<1x8xf32> to vector<2x8xf32>
    %70 = arith.subf %69, %32 : vector<2x8xf32>
    %71 = arith.mulf %33, %33 : vector<2x8xf32>
    %72 = arith.subf %27, %2 : vector<2x8xf32>
    %73 = arith.mulf %72, %72 : vector<2x8xf32>
    %74 = arith.addf %71, %73 : vector<2x8xf32>
    %cst_52 = arith.constant 2.000000e+00 : f32
    %75 = vector.broadcast %cst_52 : f32 to vector<1x8xf32>
    %76 = arith.mulf %75, %4 : vector<1x8xf32>
    %77 = arith.mulf %76, %4 : vector<1x8xf32>
    %78 = vector.broadcast %77 : vector<1x8xf32> to vector<2x8xf32>
    %79 = arith.divf %74, %78 : vector<2x8xf32>
    %80 = arith.addf %70, %79 : vector<2x8xf32>
    %cst_53 = arith.constant 5.000000e-01 : f32
    %81 = vector.broadcast %cst_53 : f32 to vector<2x8xf32>
    %82 = arith.subf %80, %81 : vector<2x8xf32>
    %cst_54 = arith.constant dense<0.000000e+00> : vector<2xf32>
    %83 = vector.multi_reduction <add>, %82, %cst_54 [1] : vector<2x8xf32> to vector<2xf32>
    %84 = vector.shape_cast %83 : vector<2xf32> to vector<2x1xf32>
    %85 = vector.shape_cast %84 : vector<2x1xf32> to vector<1x2x1xf32>
    %cst_55 = arith.constant dense<0.000000e+00> : vector<1xf32>
    %86 = vector.multi_reduction <add>, %85, %cst_55 [1, 2] : vector<1x2x1xf32> to vector<1xf32>
    %87 = vector.shape_cast %86 : vector<1xf32> to vector<1x1x1xf32>
    %88 = vector.extract %87[0, 0, 0] : f32 from vector<1x1x1xf32>
    %89 = tpu.iota {dimensions = array<i32: 0>} : vector<8x128xi32>
    %90 = tpu.iota {dimensions = array<i32: 1>} : vector<8x128xi32>
    %c0_i32 = arith.constant 0 : i32
    %91 = vector.broadcast %c0_i32 : i32 to vector<8x128xi32>
    %92 = arith.cmpi eq, %89, %91 : vector<8x128xi32>
    %c0_i32_56 = arith.constant 0 : i32
    %93 = vector.broadcast %c0_i32_56 : i32 to vector<8x128xi32>
    %94 = arith.cmpi eq, %90, %93 : vector<8x128xi32>
    %95 = arith.andi %92, %94 : vector<8x128xi1>
    %cst_57 = arith.constant 0.000000e+00 : f32
    %96 = vector.broadcast %cst_57 : f32 to vector<8x128xf32>
    %97 = vector.broadcast %53 : f32 to vector<8x128xf32>
    %98 = arith.select %95, %97, %96 : vector<8x128xi1>, vector<8x128xf32>
    %c0_i32_58 = arith.constant 0 : i32
    %99 = vector.broadcast %c0_i32_58 : i32 to vector<8x128xi32>
    %100 = arith.cmpi eq, %89, %99 : vector<8x128xi32>
    %c1_i32 = arith.constant 1 : i32
    %101 = vector.broadcast %c1_i32 : i32 to vector<8x128xi32>
    %102 = arith.cmpi eq, %90, %101 : vector<8x128xi32>
    %103 = arith.andi %100, %102 : vector<8x128xi1>
    %104 = vector.broadcast %68 : f32 to vector<8x128xf32>
    %105 = arith.select %103, %104, %98 : vector<8x128xi1>, vector<8x128xf32>
    %c0_i32_59 = arith.constant 0 : i32
    %106 = vector.broadcast %c0_i32_59 : i32 to vector<8x128xi32>
    %107 = arith.cmpi eq, %89, %106 : vector<8x128xi32>
    %c2_i32 = arith.constant 2 : i32
    %108 = vector.broadcast %c2_i32 : i32 to vector<8x128xi32>
    %109 = arith.cmpi eq, %90, %108 : vector<8x128xi32>
    %110 = arith.andi %107, %109 : vector<8x128xi1>
    %111 = vector.broadcast %88 : f32 to vector<8x128xf32>
    %112 = arith.select %110, %111, %105 : vector<8x128xi1>, vector<8x128xf32>
    %c0_60 = arith.constant 0 : index
    %c0_61 = arith.constant 0 : index
    %113 = vector.load %arg22[%c0_60, %c0_61] : memref<8x128xf32, #tpu.memory_space<vmem>>, vector<8x128xf32>
    tpu.vector_store %arg22[%c0_60, %c0_61], %112 {strides = array<i32>} : memref<8x128xf32, #tpu.memory_space<vmem>>, vector<8x128xf32>,
    return
  }
  func.func @transform_0(%arg0: i32) -> (i32, i32) {
    %c0_i32 = arith.constant 0 : i32
    %c0_i32_0 = arith.constant 0 : i32
    return %arg0, %c0_i32 : i32, i32
  }
  func.func @transform_1(%arg0: i32) -> (i32, i32) {
    %c0_i32 = arith.constant 0 : i32
    %c0_i32_0 = arith.constant 0 : i32
    return %arg0, %c0_i32 : i32, i32
  }
  func.func @transform_2(%arg0: i32) -> (i32, i32) {
    %c0_i32 = arith.constant 0 : i32
    %c0_i32_0 = arith.constant 0 : i32
    return %arg0, %c0_i32 : i32, i32
  }
  func.func @transform_3(%arg0: i32) -> (i32, i32) {
    %c0_i32 = arith.constant 0 : i32
    %c0_i32_0 = arith.constant 0 : i32
    return %arg0, %c0_i32 : i32, i32
  }
  func.func @transform_4(%arg0: i32) -> (i32, i32) {
    %c0_i32 = arith.constant 0 : i32
    %c0_i32_0 = arith.constant 0 : i32
    return %arg0, %c0_i32 : i32, i32
  }
  func.func @transform_5(%arg0: i32) -> (i32, i32) {
    %c0_i32 = arith.constant 0 : i32
    %c0_i32_0 = arith.constant 0 : i32
    %c0_i32_1 = arith.constant 0 : i32
    return %c0_i32, %c0_i32_0 : i32, i32
  }
  func.func @transform_6(%arg0: i32) -> (i32, i32) {
    %c0_i32 = arith.constant 0 : i32
    %c0_i32_0 = arith.constant 0 : i32
    %c0_i32_1 = arith.constant 0 : i32
    return %c0_i32, %c0_i32_0 : i32, i32
  }
  func.func @transform_7(%arg0: i32) -> (i32, i32) {
    %c0_i32 = arith.constant 0 : i32
    %c0_i32_0 = arith.constant 0 : i32
    %c0_i32_1 = arith.constant 0 : i32
    return %c0_i32, %c0_i32_0 : i32, i32
  }
  func.func @transform_8(%arg0: i32) -> (i32, i32) {
    %c0_i32 = arith.constant 0 : i32
    %c0_i32_0 = arith.constant 0 : i32
    %c0_i32_1 = arith.constant 0 : i32
    return %c0_i32, %c0_i32_0 : i32, i32
  }
  func.func @transform_9(%arg0: i32) -> (i32, i32) {
    %c0_i32 = arith.constant 0 : i32
    %c0_i32_0 = arith.constant 0 : i32
    %c0_i32_1 = arith.constant 0 : i32
    return %c0_i32, %c0_i32_0 : i32, i32
  }
  func.func @transform_10(%arg0: i32) -> (i32, i32) {
    %c0_i32 = arith.constant 0 : i32
    %c0_i32_0 = arith.constant 0 : i32
    %c0_i32_1 = arith.constant 0 : i32
    return %c0_i32, %c0_i32_0 : i32, i32
  }
  func.func @transform_11(%arg0: i32) -> (i32, i32) {
    %c0_i32 = arith.constant 0 : i32
    %c0_i32_0 = arith.constant 0 : i32
    %c0_i32_1 = arith.constant 0 : i32
    return %c0_i32, %c0_i32_0 : i32, i32
  }
  func.func @transform_12(%arg0: i32) -> (i32, i32) {
    %c0_i32 = arith.constant 0 : i32
    %c0_i32_0 = arith.constant 0 : i32
    %c0_i32_1 = arith.constant 0 : i32
    return %c0_i32, %c0_i32_0 : i32, i32
  }
  func.func @transform_13(%arg0: i32) -> (i32, i32) {
    %c0_i32 = arith.constant 0 : i32
    %c0_i32_0 = arith.constant 0 : i32
    %c0_i32_1 = arith.constant 0 : i32
    return %c0_i32, %c0_i32_0 : i32, i32
  }
  func.func @transform_14(%arg0: i32) -> (i32, i32) {
    %c0_i32 = arith.constant 0 : i32
    %c0_i32_0 = arith.constant 0 : i32
    %c0_i32_1 = arith.constant 0 : i32
    return %c0_i32, %c0_i32_0 : i32, i32
  }
  func.func @transform_15(%arg0: i32) -> (i32, i32) {
    %c0_i32 = arith.constant 0 : i32
    %c0_i32_0 = arith.constant 0 : i32
    %c0_i32_1 = arith.constant 0 : i32
    return %c0_i32, %c0_i32_0 : i32, i32
  }
  func.func @transform_16(%arg0: i32) -> (i32, i32) {
    %c0_i32 = arith.constant 0 : i32
    %c0_i32_0 = arith.constant 0 : i32
    %c0_i32_1 = arith.constant 0 : i32
    return %c0_i32, %c0_i32_0 : i32, i32
  }
  func.func @transform_17(%arg0: i32) -> (i32, i32) {
    %c0_i32 = arith.constant 0 : i32
    %c0_i32_0 = arith.constant 0 : i32
    %c0_i32_1 = arith.constant 0 : i32
    return %c0_i32, %c0_i32_0 : i32, i32
  }
  func.func @transform_18(%arg0: i32) -> (i32, i32) {
    %c0_i32 = arith.constant 0 : i32
    %c0_i32_0 = arith.constant 0 : i32
    return %arg0, %c0_i32 : i32, i32
  }
  func.func @transform_19(%arg0: i32) -> (i32, i32) {
    %c0_i32 = arith.constant 0 : i32
    %c0_i32_0 = arith.constant 0 : i32
    return %arg0, %c0_i32 : i32, i32
  }
  func.func @transform_20(%arg0: i32) -> (i32, i32) {
    %c0_i32 = arith.constant 0 : i32
    %c0_i32_0 = arith.constant 0 : i32
    return %arg0, %c0_i32 : i32, i32
  }
  func.func @transform_21(%arg0: i32) -> (i32, i32) {
    %c0_i32 = arith.constant 0 : i32
    %c0_i32_0 = arith.constant 0 : i32
    return %arg0, %c0_i32 : i32, i32
  }
}

</mosaic_0001>

<llo_original>
// kernel: tpu_custom_call.1
$region0: #{tpu_custom_call.1}
  #allocation0 [shape = 'u32[]', space=smem, size = 0x4, offset = 0x4, fixed_abs, tag = 'smem constant byte address 0x4 - core index']
  #allocation1 [shape = 'u32[144,128]{1,0:T(1,128)}', space=vmem, size = 0x12000, scoped, tag = 'internal scratch']
  %s0 = inlined_call_operand.vmem [shape: f32[2,1024], index: 0, kind: input, shape index: {}]
  %s1 = inlined_call_operand.vmem [shape: f32[2,1024], index: 1, kind: input, shape index: {}]
  %s2 = inlined_call_operand.vmem [shape: f32[2,16], index: 2, kind: input, shape index: {}]
  %s3 = inlined_call_operand.vmem [shape: f32[2,8], index: 3, kind: input, shape index: {}]
  %s4 = inlined_call_operand.vmem [shape: f32[2,8], index: 4, kind: input, shape index: {}]
  %s5 = inlined_call_operand.vmem [shape: f32[16,8], index: 5, kind: input, shape index: {}]
  %s6 = inlined_call_operand.vmem [shape: f32[1,8], index: 6, kind: input, shape index: {}]
  %s7 = inlined_call_operand.vmem [shape: bf16[1024,32], index: 7, kind: input, shape index: {}]
  %s8 = inlined_call_operand.vmem [shape: bf16[1024,32], index: 8, kind: input, shape index: {}]
  %s9 = inlined_call_operand.vmem [shape: f32[1,32], index: 9, kind: input, shape index: {}]
  %s10 = inlined_call_operand.vmem [shape: f32[32,8], index: 10, kind: input, shape index: {}]
  %s11 = inlined_call_operand.vmem [shape: f32[1,8], index: 11, kind: input, shape index: {}]
  %s12 = inlined_call_operand.vmem [shape: f32[32,8], index: 12, kind: input, shape index: {}]
  %s13 = inlined_call_operand.vmem [shape: f32[1,8], index: 13, kind: input, shape index: {}]
  %s14 = inlined_call_operand.vmem [shape: bf16[8,1024], index: 14, kind: input, shape index: {}]
  %s15 = inlined_call_operand.vmem [shape: f32[1,1024], index: 15, kind: input, shape index: {}]
  %s16 = inlined_call_operand.vmem [shape: bf16[8,1024], index: 16, kind: input, shape index: {}]
  %s17 = inlined_call_operand.vmem [shape: f32[1,1024], index: 17, kind: input, shape index: {}]
  %s18 = inlined_call_operand.hbm [shape: f32[2,8], index: 18, kind: output, shape index: {0}]
  %s19 = inlined_call_operand.hbm [shape: bf16[2,1024], index: 19, kind: output, shape index: {1}]
  %s20 = inlined_call_operand.hbm [shape: bf16[2,1024], index: 20, kind: output, shape index: {2}]
  %s21 = inlined_call_operand.hbm [shape: f32[8,128], index: 21, kind: output, shape index: {3}]
  %22 = xla_tuple %s18, %s19, %s20, %s21
  %s23 = sld [smem:[#allocation0]]
  $region106: #{tpu_custom_call.1} parent=0
    _
  %s25 = ssub.s32 1, %s23
  %s26 = scalar_select 0, %s25, %s23
  $region1: #{tpu_custom_call.1} parent=0
    #allocation2 [shape = 'u8[1024]{0}', space=vmem, size = 0x400, scoped, tag = 'output window, operand 0, single buffered']
    #allocation3 [shape = 's32[1]{0}', space=sflag, size = 0x4, scoped, tag = 'scoped memory for tpu_custom_call.1']
    #allocation4 [shape = 'u8[4096]{0}', space=vmem, size = 0x1000, scoped, tag = 'output window, operand 1, single buffered']
    #allocation5 [shape = 's32[1]{0}', space=sflag, size = 0x4, scoped, tag = 'scoped memory for tpu_custom_call.1']
    #allocation6 [shape = 'u8[4096]{0}', space=vmem, size = 0x1000, scoped, tag = 'output window, operand 2, single buffered']
    #allocation7 [shape = 'u8[4096]{0}', space=vmem, size = 0x1000, scoped, tag = 'output window, operand 3, single buffered']
    #allocation8 [shape = 's32[1]{0}', space=sflag, size = 0x4, scoped, tag = 'scoped memory for tpu_custom_call.1']
    %27 = vsyncpa [#allocation3], 0
    %28 = vsyncpa [#allocation5], 0
    %29 = vsyncpa [#allocation8], 0
    // Predicated region
    $region2: #{tpu_custom_call.1} parent=1 // pred_check
      _
    $region3: #{tpu_custom_call.1} parent=1 // pred_check_branch
      %31 = sbr.rel (0) target = $region5
    $region4: #{tpu_custom_call.1} parent=1 // pred_region
      _
    $region5: #{tpu_custom_call.1} parent=1 // pred_fallthru
      _
    // Predicated region
    $region6: #{tpu_custom_call.1} parent=1 // pred_check
      _
    $region7: #{tpu_custom_call.1} parent=1 // pred_check_branch
      %33 = sbr.rel (0) target = $region9
    $region8: #{tpu_custom_call.1} parent=1 // pred_region
      _
    $region9: #{tpu_custom_call.1} parent=1 // pred_fallthru
      _
    // Predicated region
    $region10: #{tpu_custom_call.1} parent=1 // pred_check
      _
    $region11: #{tpu_custom_call.1} parent=1 // pred_check_branch
      %35 = sbr.rel (0) target = $region13
    $region12: #{tpu_custom_call.1} parent=1 // pred_region
      _
    $region13: #{tpu_custom_call.1} parent=1 // pred_fallthru
      _
    // Predicated region
    $region14: #{tpu_custom_call.1} parent=1 // pred_check
      _
    $region15: #{tpu_custom_call.1} parent=1 // pred_check_branch
      %37 = sbr.rel (0) target = $region17
    $region16: #{tpu_custom_call.1} parent=1 // pred_region
      _
    $region17: #{tpu_custom_call.1} parent=1 // pred_fallthru
      _
    // Predicated region
    $region18: #{tpu_custom_call.1} parent=1 // pred_check
      _
    $region19: #{tpu_custom_call.1} parent=1 // pred_check_branch
      %39 = sbr.rel (0) target = $region21
    $region20: #{tpu_custom_call.1} parent=1 // pred_region
      _
    $region21: #{tpu_custom_call.1} parent=1 // pred_fallthru
      _
    // Predicated region
    $region22: #{tpu_custom_call.1} parent=1 // pred_check
      _
    $region23: #{tpu_custom_call.1} parent=1 // pred_check_branch
      %41 = sbr.rel (0) target = $region25
    $region24: #{tpu_custom_call.1} parent=1 // pred_region
      _
    $region25: #{tpu_custom_call.1} parent=1 // pred_fallthru
      _
    // Predicated region
    $region26: #{tpu_custom_call.1} parent=1 // pred_check
      _
    $region27: #{tpu_custom_call.1} parent=1 // pred_check_branch
      %43 = sbr.rel (0) target = $region29
    $region28: #{tpu_custom_call.1} parent=1 // pred_region
      _
    $region29: #{tpu_custom_call.1} parent=1 // pred_fallthru
      _
    // Predicated region
    $region30: #{tpu_custom_call.1} parent=1 // pred_check
      _
    $region31: #{tpu_custom_call.1} parent=1 // pred_check_branch
      %45 = sbr.rel (0) target = $region33
    $region32: #{tpu_custom_call.1} parent=1 // pred_region
      _
    $region33: #{tpu_custom_call.1} parent=1 // pred_fallthru
      _
    // Predicated region
    $region34: #{tpu_custom_call.1} parent=1 // pred_check
      _
    $region35: #{tpu_custom_call.1} parent=1 // pred_check_branch
      %47 = sbr.rel (0) target = $region37
    $region36: #{tpu_custom_call.1} parent=1 // pred_region
      _
    $region37: #{tpu_custom_call.1} parent=1 // pred_fallthru
      _
    // Predicated region
    $region38: #{tpu_custom_call.1} parent=1 // pred_check
      _
    $region39: #{tpu_custom_call.1} parent=1 // pred_check_branch
      %49 = sbr.rel (0) target = $region41
    $region40: #{tpu_custom_call.1} parent=1 // pred_region
      _
    $region41: #{tpu_custom_call.1} parent=1 // pred_fallthru
      _
    // Predicated region
    $region42: #{tpu_custom_call.1} parent=1 // pred_check
      _
    $region43: #{tpu_custom_call.1} parent=1 // pred_check_branch
      %51 = sbr.rel (0) target = $region45
    $region44: #{tpu_custom_call.1} parent=1 // pred_region
      _
    $region45: #{tpu_custom_call.1} parent=1 // pred_fallthru
      _
    // Predicated region
    $region46: #{tpu_custom_call.1} parent=1 // pred_check
      _
    $region47: #{tpu_custom_call.1} parent=1 // pred_check_branch
      %53 = sbr.rel (0) target = $region49
    $region48: #{tpu_custom_call.1} parent=1 // pred_region
      _
    $region49: #{tpu_custom_call.1} parent=1 // pred_fallthru
      _
    // Predicated region
    $region50: #{tpu_custom_call.1} parent=1 // pred_check
      _
    $region51: #{tpu_custom_call.1} parent=1 // pred_check_branch
      %55 = sbr.rel (0) target = $region53
    $region52: #{tpu_custom_call.1} parent=1 // pred_region
      _
    $region53: #{tpu_custom_call.1} parent=1 // pred_fallthru
      _
    // Predicated region
    $region54: #{tpu_custom_call.1} parent=1 // pred_check
      _
    $region55: #{tpu_custom_call.1} parent=1 // pred_check_branch
      %57 = sbr.rel (0) target = $region57
    $region56: #{tpu_custom_call.1} parent=1 // pred_region
      _
    $region57: #{tpu_custom_call.1} parent=1 // pred_fallthru
      _
    // Predicated region
    $region58: #{tpu_custom_call.1} parent=1 // pred_check
      _
    $region59: #{tpu_custom_call.1} parent=1 // pred_check_branch
      %59 = sbr.rel (0) target = $region61
    $region60: #{tpu_custom_call.1} parent=1 // pred_region
      _
    $region61: #{tpu_custom_call.1} parent=1 // pred_fallthru
      _
    // Predicated region
    $region62: #{tpu_custom_call.1} parent=1 // pred_check
      _
    $region63: #{tpu_custom_call.1} parent=1 // pred_check_branch
      %61 = sbr.rel (0) target = $region65
    $region64: #{tpu_custom_call.1} parent=1 // pred_region
      _
    $region65: #{tpu_custom_call.1} parent=1 // pred_fallthru
      _
    // Predicated region
    $region66: #{tpu_custom_call.1} parent=1 // pred_check
      _
    $region67: #{tpu_custom_call.1} parent=1 // pred_check_branch
      %63 = sbr.rel (0) target = $region69
    $region68: #{tpu_custom_call.1} parent=1 // pred_region
      _
    $region69: #{tpu_custom_call.1} parent=1 // pred_fallthru
      _
    // Predicated region
    $region70: #{tpu_custom_call.1} parent=1 // pred_check
      _
    $region71: #{tpu_custom_call.1} parent=1 // pred_check_branch
      %65 = sbr.rel (0) target = $region73
    $region72: #{tpu_custom_call.1} parent=1 // pred_region
      _
    $region73: #{tpu_custom_call.1} parent=1 // pred_fallthru
      _
    %v67 = vld [vmem:[%s2] sm:$0x3]
    %v68 = vld [vmem:[%s5] sm:$0xff]
    %v69 = vld [vmem:[%s5 + $0x8] sm:$0xff]
    %vm70 = vcmask 130048
    %v72 = vsel %vm70, %v67, 0
    %74 = vmatprep.subr.mxu0 0.0
    %75 = vmatpush1.msra.mxu0 %v68
    %76 = vmatprep.subr.mxu0 0.0
    %77 = vmatpush1.msra.mxu0 %v69
    %78 = vmatprep.subr.mxu0 0.0
    %79 = vmatpush1.msra.mxu0 0.0
    %80 = vmatprep.subr.mxu0 0.0
    %81 = vmatpush1.msra.mxu0 0.0
    %82 = vmatprep.subr.mxu0 0.0
    %83 = vmatpush1.msra.mxu0 0.0
    %84 = vmatprep.subr.mxu0 0.0
    %85 = vmatpush1.msra.mxu0 0.0
    %86 = vmatprep.subr.mxu0 0.0
    %87 = vmatpush1.msra.mxu0 0.0
    %88 = vmatprep.subr.mxu0 0.0
    %89 = vmatpush1.msra.mxu0 0.0
    %90 = vmatprep.subr.mxu0 0.0
    %91 = vmatpush1.msra.mxu0 0.0
    %92 = vmatprep.subr.mxu0 0.0
    %93 = vmatpush1.msra.mxu0 0.0
    %94 = vmatprep.subr.mxu0 0.0
    %95 = vmatpush1.msra.mxu0 0.0
    %96 = vmatprep.subr.mxu0 0.0
    %97 = vmatpush1.msra.mxu0 0.0
    %98 = vmatprep.subr.mxu0 0.0
    %99 = vmatpush1.msra.mxu0 0.0
    %100 = vmatprep.subr.mxu0 0.0
    %101 = vmatpush1.msra.mxu0 0.0
    %102 = vmatprep.subr.mxu0 0.0
    %103 = vmatpush1.msra.mxu0 0.0
    %104 = vmatprep.subr.mxu0 0.0
    %105 = vmatpush1.msra.mxu0 0.0
    %106 = vmatprep.subr.mxu0 0.0
    %107 = vmatpush1.msra.mxu0 0.0
    %108 = vmatprep.subr.mxu0 0.0
    %109 = vmatpush1.msra.mxu0 0.0
    %110 = vmatprep.subr.mxu0 0.0
    %111 = vmatpush1.msra.mxu0 0.0
    %112 = vmatprep.subr.mxu0 0.0
    %113 = vmatpush1.msra.mxu0 0.0
    %114 = vmatprep.subr.mxu0 0.0
    %115 = vmatpush1.msra.mxu0 0.0
    %116 = vmatprep.subr.mxu0 0.0
    %117 = vmatpush1.msra.mxu0 0.0
    %118 = vmatprep.subr.mxu0 0.0
    %119 = vmatpush1.msra.mxu0 0.0
    %120 = vmatprep.subr.mxu0 0.0
    %121 = vmatpush1.msra.mxu0 0.0
    %122 = vmatprep.subr.mxu0 0.0
    %123 = vmatpush1.msra.mxu0 0.0
    %124 = vmatprep.subr.mxu0 0.0
    %125 = vmatpush1.msra.mxu0 0.0
    %126 = vmatprep.subr.mxu0 0.0
    %127 = vmatpush1.msra.mxu0 0.0
    %128 = vmatprep.subr.mxu0 0.0
    %129 = vmatpush1.msra.mxu0 0.0
    %130 = vmatprep.subr.mxu0 0.0
    %131 = vmatpush1.msra.mxu0 0.0
    %132 = vmatprep.subr.mxu0 0.0
    %133 = vmatpush1.msra.mxu0 0.0
    %134 = vmatprep.subr.mxu0 0.0
    %135 = vmatpush1.msra.mxu0 0.0
    %136 = vmatprep.subr.mxu0 0.0
    %137 = vmatpush1.msra.mxu0 0.0
    %138 = vmatprep.mubr.f32.mxu0 0.0
    %139 = vmatmul.mubr.f32.gmra.mrb[0].mxu0 %v72
    %v140 = vpop.f32.mrb[0].mxu0
    %v141 = vadd.f32 0.0, %v140
    %v142 = vpop.f32.mrb[0].mxu0
    %143 = vdwg.mxu0
    %v144 = vld [vmem:[%s6] sm:$0x1]
    %v145 = vmul.f32 %v144, 1.442695
    %v146 = vpow.pop %v145
    %v147 = vld [vmem:[%s3] sm:$0x3]
    %v149 = vlaneseq
    %v150 = vshrl.u32 %v149, 7
    %v151 = vsub.s32 0, %v150
    %v152 = vrot.slane %v146, %v151
    %v154 = vmul.f32 %v152, %v147
    %v155 = vadd.f32 %v141, %v154
    %v156 = vld [vmem:[%s0] sm:$0xff]
    %v157 = vld [vmem:[%s0 + $0x8] sm:$0xff]
    %v158 = vld [vmem:[%s1] sm:$0xff]
    %v159 = vld [vmem:[%s1 + $0x8] sm:$0xff]
    %v162 = vcombine.high %v156, %v156
    %v164 = vunpack.c.l.s4 1983009808
    %v165 = vunpack.c.0.s8 %v164
    %v166 = vlaneseq
    %v167 = vshrl.u32 %v166, 7
    %v168 = vsub.s32 %v165, %v167
    %v169 = vrot.slane %v156, %v168
    %v171 = vunpack.c.l.s4 1983009808
    %v172 = vunpack.c.0.s8 %v171
    %v173 = vlaneseq
    %v174 = vshrl.u32 %v173, 7
    %v175 = vsub.s32 %v172, %v174
    %v176 = vrot.slane %v162, %v175
    %v177 = vcombine.high %v169, %v169
    %v178 = vcombine.high %v176, %v176
    %v179 = vcombine.high %v157, %v157
    %v181 = vunpack.c.l.s4 1983009808
    %v182 = vunpack.c.0.s8 %v181
    %v183 = vlaneseq
    %v184 = vshrl.u32 %v183, 7
    %v185 = vsub.s32 %v182, %v184
    %v186 = vrot.slane %v157, %v185
    %v188 = vunpack.c.l.s4 1983009808
    %v189 = vunpack.c.0.s8 %v188
    %v190 = vlaneseq
    %v191 = vshrl.u32 %v190, 7
    %v192 = vsub.s32 %v189, %v191
    %v193 = vrot.slane %v179, %v192
    %v194 = vcombine.high %v186, %v186
    %v195 = vcombine.high %v193, %v193
    %v204 = vpack.c.bf16 %v169, %v169
    %v205 = vpack.c.bf16 %v177, %v177
    %v206 = vpack.c.bf16 %v176, %v176
    %v207 = vpack.c.bf16 %v178, %v178
    %v208 = vpack.c.bf16 %v186, %v186
    %v209 = vpack.c.bf16 %v194, %v194
    %v210 = vpack.c.bf16 %v193, %v193
    %v211 = vpack.c.bf16 %v195, %v195
    %v212 = vld [vmem:[%s7] sm:$0xf]
    %v213 = vld [vmem:[%s7 + $0x4] sm:$0xf]
    %v214 = vld [vmem:[%s7 + $0x8] sm:$0xf]
    %v215 = vld [vmem:[%s7 + $0xc] sm:$0xf]
    %v216 = vld [vmem:[%s7 + $0x10] sm:$0xf]
    %v217 = vld [vmem:[%s7 + $0x14] sm:$0xf]
    %v218 = vld [vmem:[%s7 + $0x18] sm:$0xf]
    %v219 = vld [vmem:[%s7 + $0x1c] sm:$0xf]
    %v220 = vld [vmem:[%s7 + $0x20] sm:$0xf]
    %v221 = vld [vmem:[%s7 + $0x24] sm:$0xf]
    %v222 = vld [vmem:[%s7 + $0x28] sm:$0xf]
    %v223 = vld [vmem:[%s7 + $0x2c] sm:$0xf]
    %v224 = vld [vmem:[%s7 + $0x30] sm:$0xf]
    %v225 = vld [vmem:[%s7 + $0x34] sm:$0xf]
    %v226 = vld [vmem:[%s7 + $0x38] sm:$0xf]
    %v227 = vld [vmem:[%s7 + $0x3c] sm:$0xf]
    %v228 = vld [vmem:[%s7 + $0x40] sm:$0xf]
    %v229 = vld [vmem:[%s7 + $0x44] sm:$0xf]
    %v230 = vld [vmem:[%s7 + $0x48] sm:$0xf]
    %v231 = vld [vmem:[%s7 + $0x4c] sm:$0xf]
    %v232 = vld [vmem:[%s7 + $0x50] sm:$0xf]
    %v233 = vld [vmem:[%s7 + $0x54] sm:$0xf]
    %v234 = vld [vmem:[%s7 + $0x58] sm:$0xf]
    %v235 = vld [vmem:[%s7 + $0x5c] sm:$0xf]
    %v236 = vld [vmem:[%s7 + $0x60] sm:$0xf]
    %v237 = vld [vmem:[%s7 + $0x64] sm:$0xf]
    %v238 = vld [vmem:[%s7 + $0x68] sm:$0xf]
    %v239 = vld [vmem:[%s7 + $0x6c] sm:$0xf]
    %v240 = vld [vmem:[%s7 + $0x70] sm:$0xf]
    %v241 = vld [vmem:[%s7 + $0x74] sm:$0xf]
    %v242 = vld [vmem:[%s7 + $0x78] sm:$0xf]
    %v243 = vld [vmem:[%s7 + $0x7c] sm:$0xf]
    %v244 = vld [vmem:[%s7 + $0x80] sm:$0xf]
    %v245 = vld [vmem:[%s7 + $0x84] sm:$0xf]
    %v246 = vld [vmem:[%s7 + $0x88] sm:$0xf]
    %v247 = vld [vmem:[%s7 + $0x8c] sm:$0xf]
    %v248 = vld [vmem:[%s7 + $0x90] sm:$0xf]
    %v249 = vld [vmem:[%s7 + $0x94] sm:$0xf]
    %v250 = vld [vmem:[%s7 + $0x98] sm:$0xf]
    %v251 = vld [vmem:[%s7 + $0x9c] sm:$0xf]
    %v252 = vld [vmem:[%s7 + $0xa0] sm:$0xf]
    %v253 = vld [vmem:[%s7 + $0xa4] sm:$0xf]
    %v254 = vld [vmem:[%s7 + $0xa8] sm:$0xf]
    %v255 = vld [vmem:[%s7 + $0xac] sm:$0xf]
    %v256 = vld [vmem:[%s7 + $0xb0] sm:$0xf]
    %v257 = vld [vmem:[%s7 + $0xb4] sm:$0xf]
    %v258 = vld [vmem:[%s7 + $0xb8] sm:$0xf]
    %v259 = vld [vmem:[%s7 + $0xbc] sm:$0xf]
    %v260 = vld [vmem:[%s7 + $0xc0] sm:$0xf]
    %v261 = vld [vmem:[%s7 + $0xc4] sm:$0xf]
    %v262 = vld [vmem:[%s7 + $0xc8] sm:$0xf]
    %v263 = vld [vmem:[%s7 + $0xcc] sm:$0xf]
    %v264 = vld [vmem:[%s7 + $0xd0] sm:$0xf]
    %v265 = vld [vmem:[%s7 + $0xd4] sm:$0xf]
    %v266 = vld [vmem:[%s7 + $0xd8] sm:$0xf]
    %v267 = vld [vmem:[%s7 + $0xdc] sm:$0xf]
    %v268 = vld [vmem:[%s7 + $0xe0] sm:$0xf]
    %v269 = vld [vmem:[%s7 + $0xe4] sm:$0xf]
    %v270 = vld [vmem:[%s7 + $0xe8] sm:$0xf]
    %v271 = vld [vmem:[%s7 + $0xec] sm:$0xf]
    %v272 = vld [vmem:[%s7 + $0xf0] sm:$0xf]
    %v273 = vld [vmem:[%s7 + $0xf4] sm:$0xf]
    %v274 = vld [vmem:[%s7 + $0xf8] sm:$0xf]
    %v275 = vld [vmem:[%s7 + $0xfc] sm:$0xf]
    %v276 = vld [vmem:[%s7 + $0x100] sm:$0xf]
    %v277 = vld [vmem:[%s7 + $0x104] sm:$0xf]
    %v278 = vld [vmem:[%s7 + $0x108] sm:$0xf]
    %v279 = vld [vmem:[%s7 + $0x10c] sm:$0xf]
    %v280 = vld [vmem:[%s7 + $0x110] sm:$0xf]
    %v281 = vld [vmem:[%s7 + $0x114] sm:$0xf]
    %v282 = vld [vmem:[%s7 + $0x118] sm:$0xf]
    %v283 = vld [vmem:[%s7 + $0x11c] sm:$0xf]
    %v284 = vld [vmem:[%s7 + $0x120] sm:$0xf]
    %v285 = vld [vmem:[%s7 + $0x124] sm:$0xf]
    %v286 = vld [vmem:[%s7 + $0x128] sm:$0xf]
    %v287 = vld [vmem:[%s7 + $0x12c] sm:$0xf]
    %v288 = vld [vmem:[%s7 + $0x130] sm:$0xf]
    %v289 = vld [vmem:[%s7 + $0x134] sm:$0xf]
    %v290 = vld [vmem:[%s7 + $0x138] sm:$0xf]
    %v291 = vld [vmem:[%s7 + $0x13c] sm:$0xf]
    %v292 = vld [vmem:[%s7 + $0x140] sm:$0xf]
    %v293 = vld [vmem:[%s7 + $0x144] sm:$0xf]
    %v294 = vld [vmem:[%s7 + $0x148] sm:$0xf]
    %v295 = vld [vmem:[%s7 + $0x14c] sm:$0xf]
    %v296 = vld [vmem:[%s7 + $0x150] sm:$0xf]
    %v297 = vld [vmem:[%s7 + $0x154] sm:$0xf]
    %v298 = vld [vmem:[%s7 + $0x158] sm:$0xf]
    %v299 = vld [vmem:[%s7 + $0x15c] sm:$0xf]
    %v300 = vld [vmem:[%s7 + $0x160] sm:$0xf]
    %v301 = vld [vmem:[%s7 + $0x164] sm:$0xf]
    %v302 = vld [vmem:[%s7 + $0x168] sm:$0xf]
    %v303 = vld [vmem:[%s7 + $0x16c] sm:$0xf]
    %v304 = vld [vmem:[%s7 + $0x170] sm:$0xf]
    %v305 = vld [vmem:[%s7 + $0x174] sm:$0xf]
    %v306 = vld [vmem:[%s7 + $0x178] sm:$0xf]
    %v307 = vld [vmem:[%s7 + $0x17c] sm:$0xf]
    %v308 = vld [vmem:[%s7 + $0x180] sm:$0xf]
    %v309 = vld [vmem:[%s7 + $0x184] sm:$0xf]
    %v310 = vld [vmem:[%s7 + $0x188] sm:$0xf]
    %v311 = vld [vmem:[%s7 + $0x18c] sm:$0xf]
    %v312 = vld [vmem:[%s7 + $0x190] sm:$0xf]
    %v313 = vld [vmem:[%s7 + $0x194] sm:$0xf]
    %v314 = vld [vmem:[%s7 + $0x198] sm:$0xf]
    %v315 = vld [vmem:[%s7 + $0x19c] sm:$0xf]
    %v316 = vld [vmem:[%s7 + $0x1a0] sm:$0xf]
    %v317 = vld [vmem:[%s7 + $0x1a4] sm:$0xf]
    %v318 = vld [vmem:[%s7 + $0x1a8] sm:$0xf]
    %v319 = vld [vmem:[%s7 + $0x1ac] sm:$0xf]
    %v320 = vld [vmem:[%s7 + $0x1b0] sm:$0xf]
    %v321 = vld [vmem:[%s7 + $0x1b4] sm:$0xf]
    %v322 = vld [vmem:[%s7 + $0x1b8] sm:$0xf]
    %v323 = vld [vmem:[%s7 + $0x1bc] sm:$0xf]
    %v324 = vld [vmem:[%s7 + $0x1c0] sm:$0xf]
    %v325 = vld [vmem:[%s7 + $0x1c4] sm:$0xf]
    %v326 = vld [vmem:[%s7 + $0x1c8] sm:$0xf]
    %v327 = vld [vmem:[%s7 + $0x1cc] sm:$0xf]
    %v328 = vld [vmem:[%s7 + $0x1d0] sm:$0xf]
    %v329 = vld [vmem:[%s7 + $0x1d4] sm:$0xf]
    %v330 = vld [vmem:[%s7 + $0x1d8] sm:$0xf]
    %v331 = vld [vmem:[%s7 + $0x1dc] sm:$0xf]
    %v332 = vld [vmem:[%s7 + $0x1e0] sm:$0xf]
    %v333 = vld [vmem:[%s7 + $0x1e4] sm:$0xf]
    %v334 = vld [vmem:[%s7 + $0x1e8] sm:$0xf]
    %v335 = vld [vmem:[%s7 + $0x1ec] sm:$0xf]
    %v336 = vld [vmem:[%s7 + $0x1f0] sm:$0xf]
    %v337 = vld [vmem:[%s7 + $0x1f4] sm:$0xf]
    %v338 = vld [vmem:[%s7 + $0x1f8] sm:$0xf]
    %v339 = vld [vmem:[%s7 + $0x1fc] sm:$0xf]
    %v342 = vcombine.high %v158, %v158
    %v344 = vunpack.c.l.s4 1983009808
    %v345 = vunpack.c.0.s8 %v344
    %v346 = vlaneseq
    %v347 = vshrl.u32 %v346, 7
    %v348 = vsub.s32 %v345, %v347
    %v349 = vrot.slane %v158, %v348
    %v351 = vunpack.c.l.s4 1983009808
    %v352 = vunpack.c.0.s8 %v351
    %v353 = vlaneseq
    %v354 = vshrl.u32 %v353, 7
    %v355 = vsub.s32 %v352, %v354
    %v356 = vrot.slane %v342, %v355
    %v357 = vcombine.high %v349, %v349
    %v358 = vcombine.high %v356, %v356
    %v359 = vcombine.high %v159, %v159
    %v361 = vunpack.c.l.s4 1983009808
    %v362 = vunpack.c.0.s8 %v361
    %v363 = vlaneseq
    %v364 = vshrl.u32 %v363, 7
    %v365 = vsub.s32 %v362, %v364
    %v366 = vrot.slane %v159, %v365
    %v368 = vunpack.c.l.s4 1983009808
    %v369 = vunpack.c.0.s8 %v368
    %v370 = vlaneseq
    %v371 = vshrl.u32 %v370, 7
    %v372 = vsub.s32 %v369, %v371
    %v373 = vrot.slane %v359, %v372
    %v374 = vcombine.high %v366, %v366
    %v375 = vcombine.high %v373, %v373
    %v384 = vpack.c.bf16 %v349, %v349
    %v385 = vpack.c.bf16 %v357, %v357
    %v386 = vpack.c.bf16 %v356, %v356
    %v387 = vpack.c.bf16 %v358, %v358
    %v388 = vpack.c.bf16 %v366, %v366
    %v389 = vpack.c.bf16 %v374, %v374
    %v390 = vpack.c.bf16 %v373, %v373
    %v391 = vpack.c.bf16 %v375, %v375
    %v392 = vld [vmem:[%s8] sm:$0xf]
    %v393 = vld [vmem:[%s8 + $0x4] sm:$0xf]
    %v394 = vld [vmem:[%s8 + $0x8] sm:$0xf]
    %v395 = vld [vmem:[%s8 + $0xc] sm:$0xf]
    %v396 = vld [vmem:[%s8 + $0x10] sm:$0xf]
    %v397 = vld [vmem:[%s8 + $0x14] sm:$0xf]
    %v398 = vld [vmem:[%s8 + $0x18] sm:$0xf]
    %v399 = vld [vmem:[%s8 + $0x1c] sm:$0xf]
    %v400 = vld [vmem:[%s8 + $0x20] sm:$0xf]
    %v401 = vld [vmem:[%s8 + $0x24] sm:$0xf]
    %v402 = vld [vmem:[%s8 + $0x28] sm:$0xf]
    %v403 = vld [vmem:[%s8 + $0x2c] sm:$0xf]
    %v404 = vld [vmem:[%s8 + $0x30] sm:$0xf]
    %v405 = vld [vmem:[%s8 + $0x34] sm:$0xf]
    %v406 = vld [vmem:[%s8 + $0x38] sm:$0xf]
    %v407 = vld [vmem:[%s8 + $0x3c] sm:$0xf]
    %v408 = vld [vmem:[%s8 + $0x40] sm:$0xf]
    %v409 = vld [vmem:[%s8 + $0x44] sm:$0xf]
    %v410 = vld [vmem:[%s8 + $0x48] sm:$0xf]
    %v411 = vld [vmem:[%s8 + $0x4c] sm:$0xf]
    %v412 = vld [vmem:[%s8 + $0x50] sm:$0xf]
    %v413 = vld [vmem:[%s8 + $0x54] sm:$0xf]
    %v414 = vld [vmem:[%s8 + $0x58] sm:$0xf]
    %v415 = vld [vmem:[%s8 + $0x5c] sm:$0xf]
    %v416 = vld [vmem:[%s8 + $0x60] sm:$0xf]
    %v417 = vld [vmem:[%s8 + $0x64] sm:$0xf]
    %v418 = vld [vmem:[%s8 + $0x68] sm:$0xf]
    %v419 = vld [vmem:[%s8 + $0x6c] sm:$0xf]
    %v420 = vld [vmem:[%s8 + $0x70] sm:$0xf]
    %v421 = vld [vmem:[%s8 + $0x74] sm:$0xf]
    %v422 = vld [vmem:[%s8 + $0x78] sm:$0xf]
    %v423 = vld [vmem:[%s8 + $0x7c] sm:$0xf]
    %v424 = vld [vmem:[%s8 + $0x80] sm:$0xf]
    %v425 = vld [vmem:[%s8 + $0x84] sm:$0xf]
    %v426 = vld [vmem:[%s8 + $0x88] sm:$0xf]
    %v427 = vld [vmem:[%s8 + $0x8c] sm:$0xf]
    %v428 = vld [vmem:[%s8 + $0x90] sm:$0xf]
    %v429 = vld [vmem:[%s8 + $0x94] sm:$0xf]
    %v430 = vld [vmem:[%s8 + $0x98] sm:$0xf]
    %v431 = vld [vmem:[%s8 + $0x9c] sm:$0xf]
    %v432 = vld [vmem:[%s8 + $0xa0] sm:$0xf]
    %v433 = vld [vmem:[%s8 + $0xa4] sm:$0xf]
    %v434 = vld [vmem:[%s8 + $0xa8] sm:$0xf]
    %v435 = vld [vmem:[%s8 + $0xac] sm:$0xf]
    %v436 = vld [vmem:[%s8 + $0xb0] sm:$0xf]
    %v437 = vld [vmem:[%s8 + $0xb4] sm:$0xf]
    %v438 = vld [vmem:[%s8 + $0xb8] sm:$0xf]
    %v439 = vld [vmem:[%s8 + $0xbc] sm:$0xf]
    %v440 = vld [vmem:[%s8 + $0xc0] sm:$0xf]
    %v441 = vld [vmem:[%s8 + $0xc4] sm:$0xf]
    %v442 = vld [vmem:[%s8 + $0xc8] sm:$0xf]
    %v443 = vld [vmem:[%s8 + $0xcc] sm:$0xf]
    %v444 = vld [vmem:[%s8 + $0xd0] sm:$0xf]
    %v445 = vld [vmem:[%s8 + $0xd4] sm:$0xf]
    %v446 = vld [vmem:[%s8 + $0xd8] sm:$0xf]
    %v447 = vld [vmem:[%s8 + $0xdc] sm:$0xf]
    %v448 = vld [vmem:[%s8 + $0xe0] sm:$0xf]
    %v449 = vld [vmem:[%s8 + $0xe4] sm:$0xf]
    %v450 = vld [vmem:[%s8 + $0xe8] sm:$0xf]
    %v451 = vld [vmem:[%s8 + $0xec] sm:$0xf]
    %v452 = vld [vmem:[%s8 + $0xf0] sm:$0xf]
    %v453 = vld [vmem:[%s8 + $0xf4] sm:$0xf]
    %v454 = vld [vmem:[%s8 + $0xf8] sm:$0xf]
    %v455 = vld [vmem:[%s8 + $0xfc] sm:$0xf]
    %v456 = vld [vmem:[%s8 + $0x100] sm:$0xf]
    %v457 = vld [vmem:[%s8 + $0x104] sm:$0xf]
    %v458 = vld [vmem:[%s8 + $0x108] sm:$0xf]
    %v459 = vld [vmem:[%s8 + $0x10c] sm:$0xf]
    %v460 = vld [vmem:[%s8 + $0x110] sm:$0xf]
    %v461 = vld [vmem:[%s8 + $0x114] sm:$0xf]
    %v462 = vld [vmem:[%s8 + $0x118] sm:$0xf]
    %v463 = vld [vmem:[%s8 + $0x11c] sm:$0xf]
    %v464 = vld [vmem:[%s8 + $0x120] sm:$0xf]
    %v465 = vld [vmem:[%s8 + $0x124] sm:$0xf]
    %v466 = vld [vmem:[%s8 + $0x128] sm:$0xf]
    %v467 = vld [vmem:[%s8 + $0x12c] sm:$0xf]
    %v468 = vld [vmem:[%s8 + $0x130] sm:$0xf]
    %v469 = vld [vmem:[%s8 + $0x134] sm:$0xf]
    %v470 = vld [vmem:[%s8 + $0x138] sm:$0xf]
    %v471 = vld [vmem:[%s8 + $0x13c] sm:$0xf]
    %v472 = vld [vmem:[%s8 + $0x140] sm:$0xf]
    %v473 = vld [vmem:[%s8 + $0x144] sm:$0xf]
    %v474 = vld [vmem:[%s8 + $0x148] sm:$0xf]
    %v475 = vld [vmem:[%s8 + $0x14c] sm:$0xf]
    %v476 = vld [vmem:[%s8 + $0x150] sm:$0xf]
    %v477 = vld [vmem:[%s8 + $0x154] sm:$0xf]
    %v478 = vld [vmem:[%s8 + $0x158] sm:$0xf]
    %v479 = vld [vmem:[%s8 + $0x15c] sm:$0xf]
    %v480 = vld [vmem:[%s8 + $0x160] sm:$0xf]
    %v481 = vld [vmem:[%s8 + $0x164] sm:$0xf]
    %v482 = vld [vmem:[%s8 + $0x168] sm:$0xf]
    %v483 = vld [vmem:[%s8 + $0x16c] sm:$0xf]
    %v484 = vld [vmem:[%s8 + $0x170] sm:$0xf]
    %v485 = vld [vmem:[%s8 + $0x174] sm:$0xf]
    %v486 = vld [vmem:[%s8 + $0x178] sm:$0xf]
    %v487 = vld [vmem:[%s8 + $0x17c] sm:$0xf]
    %v488 = vld [vmem:[%s8 + $0x180] sm:$0xf]
    %v489 = vld [vmem:[%s8 + $0x184] sm:$0xf]
    %v490 = vld [vmem:[%s8 + $0x188] sm:$0xf]
    %v491 = vld [vmem:[%s8 + $0x18c] sm:$0xf]
    %v492 = vld [vmem:[%s8 + $0x190] sm:$0xf]
    %v493 = vld [vmem:[%s8 + $0x194] sm:$0xf]
    %v494 = vld [vmem:[%s8 + $0x198] sm:$0xf]
    %v495 = vld [vmem:[%s8 + $0x19c] sm:$0xf]
    %v496 = vld [vmem:[%s8 + $0x1a0] sm:$0xf]
    %v497 = vld [vmem:[%s8 + $0x1a4] sm:$0xf]
    %v498 = vld [vmem:[%s8 + $0x1a8] sm:$0xf]
    %v499 = vld [vmem:[%s8 + $0x1ac] sm:$0xf]
    %v500 = vld [vmem:[%s8 + $0x1b0] sm:$0xf]
    %v501 = vld [vmem:[%s8 + $0x1b4] sm:$0xf]
    %v502 = vld [vmem:[%s8 + $0x1b8] sm:$0xf]
    %v503 = vld [vmem:[%s8 + $0x1bc] sm:$0xf]
    %v504 = vld [vmem:[%s8 + $0x1c0] sm:$0xf]
    %v505 = vld [vmem:[%s8 + $0x1c4] sm:$0xf]
    %v506 = vld [vmem:[%s8 + $0x1c8] sm:$0xf]
    %v507 = vld [vmem:[%s8 + $0x1cc] sm:$0xf]
    %v508 = vld [vmem:[%s8 + $0x1d0] sm:$0xf]
    %v509 = vld [vmem:[%s8 + $0x1d4] sm:$0xf]
    %v510 = vld [vmem:[%s8 + $0x1d8] sm:$0xf]
    %v511 = vld [vmem:[%s8 + $0x1dc] sm:$0xf]
    %v512 = vld [vmem:[%s8 + $0x1e0] sm:$0xf]
    %v513 = vld [vmem:[%s8 + $0x1e4] sm:$0xf]
    %v514 = vld [vmem:[%s8 + $0x1e8] sm:$0xf]
    %v515 = vld [vmem:[%s8 + $0x1ec] sm:$0xf]
    %v516 = vld [vmem:[%s8 + $0x1f0] sm:$0xf]
    %v517 = vld [vmem:[%s8 + $0x1f4] sm:$0xf]
    %v518 = vld [vmem:[%s8 + $0x1f8] sm:$0xf]
    %v519 = vld [vmem:[%s8 + $0x1fc] sm:$0xf]
    %v648 = vunpack.c.l.b16 %v392
    %v649 = vunpack.c.l.b16 %v393
    %v650 = vunpack.c.l.b16 %v394
    %v651 = vunpack.c.l.b16 %v395
    %v652 = vunpack.c.l.b16 %v396
    %v653 = vunpack.c.l.b16 %v397
    %v654 = vunpack.c.l.b16 %v398
    %v655 = vunpack.c.l.b16 %v399
    %v656 = vunpack.c.l.b16 %v400
    %v657 = vunpack.c.l.b16 %v401
    %v658 = vunpack.c.l.b16 %v402
    %v659 = vunpack.c.l.b16 %v403
    %v660 = vunpack.c.l.b16 %v404
    %v661 = vunpack.c.l.b16 %v405
    %v662 = vunpack.c.l.b16 %v406
    %v663 = vunpack.c.l.b16 %v407
    %v664 = vunpack.c.l.b16 %v408
    %v665 = vunpack.c.l.b16 %v409
    %v666 = vunpack.c.l.b16 %v410
    %v667 = vunpack.c.l.b16 %v411
    %v668 = vunpack.c.l.b16 %v412
    %v669 = vunpack.c.l.b16 %v413
    %v670 = vunpack.c.l.b16 %v414
    %v671 = vunpack.c.l.b16 %v415
    %v672 = vunpack.c.l.b16 %v416
    %v673 = vunpack.c.l.b16 %v417
    %v674 = vunpack.c.l.b16 %v418
    %v675 = vunpack.c.l.b16 %v419
    %v676 = vunpack.c.l.b16 %v420
    %v677 = vunpack.c.l.b16 %v421
    %v678 = vunpack.c.l.b16 %v422
    %v679 = vunpack.c.l.b16 %v423
    %v680 = vunpack.c.l.b16 %v424
    %v681 = vunpack.c.l.b16 %v425
    %v682 = vunpack.c.l.b16 %v426
    %v683 = vunpack.c.l.b16 %v427
    %v684 = vunpack.c.l.b16 %v428
    %v685 = vunpack.c.l.b16 %v429
    %v686 = vunpack.c.l.b16 %v430
    %v687 = vunpack.c.l.b16 %v431
    %v688 = vunpack.c.l.b16 %v432
    %v689 = vunpack.c.l.b16 %v433
    %v690 = vunpack.c.l.b16 %v434
    %v691 = vunpack.c.l.b16 %v435
    %v692 = vunpack.c.l.b16 %v436
    %v693 = vunpack.c.l.b16 %v437
    %v694 = vunpack.c.l.b16 %v438
    %v695 = vunpack.c.l.b16 %v439
    %v696 = vunpack.c.l.b16 %v440
    %v697 = vunpack.c.l.b16 %v441
    %v698 = vunpack.c.l.b16 %v442
    %v699 = vunpack.c.l.b16 %v443
    %v700 = vunpack.c.l.b16 %v444
    %v701 = vunpack.c.l.b16 %v445
    %v702 = vunpack.c.l.b16 %v446
    %v703 = vunpack.c.l.b16 %v447
    %v704 = vunpack.c.l.b16 %v448
    %v705 = vunpack.c.l.b16 %v449
    %v706 = vunpack.c.l.b16 %v450
    %v707 = vunpack.c.l.b16 %v451
    %v708 = vunpack.c.l.b16 %v452
    %v709 = vunpack.c.l.b16 %v453
    %v710 = vunpack.c.l.b16 %v454
    %v711 = vunpack.c.l.b16 %v455
    %v712 = vunpack.c.l.b16 %v456
    %v713 = vunpack.c.l.b16 %v457
    %v714 = vunpack.c.l.b16 %v458
    %v715 = vunpack.c.l.b16 %v459
    %v716 = vunpack.c.l.b16 %v460
    %v717 = vunpack.c.l.b16 %v461
    %v718 = vunpack.c.l.b16 %v462
    %v719 = vunpack.c.l.b16 %v463
    %v720 = vunpack.c.l.b16 %v464
    %v721 = vunpack.c.l.b16 %v465
    %v722 = vunpack.c.l.b16 %v466
    %v723 = vunpack.c.l.b16 %v467
    %v724 = vunpack.c.l.b16 %v468
    %v725 = vunpack.c.l.b16 %v469
    %v726 = vunpack.c.l.b16 %v470
    %v727 = vunpack.c.l.b16 %v471
    %v728 = vunpack.c.l.b16 %v472
    %v729 = vunpack.c.l.b16 %v473
    %v730 = vunpack.c.l.b16 %v474
    %v731 = vunpack.c.l.b16 %v475
    %v732 = vunpack.c.l.b16 %v476
    %v733 = vunpack.c.l.b16 %v477
    %v734 = vunpack.c.l.b16 %v478
    %v735 = vunpack.c.l.b16 %v479
    %v736 = vunpack.c.l.b16 %v480
    %v737 = vunpack.c.l.b16 %v481
    %v738 = vunpack.c.l.b16 %v482
    %v739 = vunpack.c.l.b16 %v483
    %v740 = vunpack.c.l.b16 %v484
    %v741 = vunpack.c.l.b16 %v485
    %v742 = vunpack.c.l.b16 %v486
    %v743 = vunpack.c.l.b16 %v487
    %v744 = vunpack.c.l.b16 %v488
    %v745 = vunpack.c.l.b16 %v489
    %v746 = vunpack.c.l.b16 %v490
    %v747 = vunpack.c.l.b16 %v491
    %v748 = vunpack.c.l.b16 %v492
    %v749 = vunpack.c.l.b16 %v493
    %v750 = vunpack.c.l.b16 %v494
    %v751 = vunpack.c.l.b16 %v495
    %v752 = vunpack.c.l.b16 %v496
    %v753 = vunpack.c.l.b16 %v497
    %v754 = vunpack.c.l.b16 %v498
    %v755 = vunpack.c.l.b16 %v499
    %v756 = vunpack.c.l.b16 %v500
    %v757 = vunpack.c.l.b16 %v501
    %v758 = vunpack.c.l.b16 %v502
    %v759 = vunpack.c.l.b16 %v503
    %v760 = vunpack.c.l.b16 %v504
    %v761 = vunpack.c.l.b16 %v505
    %v762 = vunpack.c.l.b16 %v506
    %v763 = vunpack.c.l.b16 %v507
    %v764 = vunpack.c.l.b16 %v508
    %v765 = vunpack.c.l.b16 %v509
    %v766 = vunpack.c.l.b16 %v510
    %v767 = vunpack.c.l.b16 %v511
    %v768 = vunpack.c.l.b16 %v512
    %v769 = vunpack.c.l.b16 %v513
    %v770 = vunpack.c.l.b16 %v514
    %v771 = vunpack.c.l.b16 %v515
    %v772 = vunpack.c.l.b16 %v516
    %v773 = vunpack.c.l.b16 %v517
    %v774 = vunpack.c.l.b16 %v518
    %v775 = vunpack.c.l.b16 %v519
    %v776 = vpack.c.b16 %v649, %v648
    %v777 = vpack.c.b16 %v651, %v650
    %v778 = vpack.c.b16 %v653, %v652
    %v779 = vpack.c.b16 %v655, %v654
    %v780 = vpack.c.b16 %v657, %v656
    %v781 = vpack.c.b16 %v659, %v658
    %v782 = vpack.c.b16 %v661, %v660
    %v783 = vpack.c.b16 %v663, %v662
    %v784 = vpack.c.b16 %v665, %v664
    %v785 = vpack.c.b16 %v667, %v666
    %v786 = vpack.c.b16 %v669, %v668
    %v787 = vpack.c.b16 %v671, %v670
    %v788 = vpack.c.b16 %v673, %v672
    %v789 = vpack.c.b16 %v675, %v674
    %v790 = vpack.c.b16 %v677, %v676
    %v791 = vpack.c.b16 %v679, %v678
    %v792 = vpack.c.b16 %v681, %v680
    %v793 = vpack.c.b16 %v683, %v682
    %v794 = vpack.c.b16 %v685, %v684
    %v795 = vpack.c.b16 %v687, %v686
    %v796 = vpack.c.b16 %v689, %v688
    %v797 = vpack.c.b16 %v691, %v690
    %v798 = vpack.c.b16 %v693, %v692
    %v799 = vpack.c.b16 %v695, %v694
    %v800 = vpack.c.b16 %v697, %v696
    %v801 = vpack.c.b16 %v699, %v698
    %v802 = vpack.c.b16 %v701, %v700
    %v803 = vpack.c.b16 %v703, %v702
    %v804 = vpack.c.b16 %v705, %v704
    %v805 = vpack.c.b16 %v707, %v706
    %v806 = vpack.c.b16 %v709, %v708
    %v807 = vpack.c.b16 %v711, %v710
    %v808 = vpack.c.b16 %v713, %v712
    %v809 = vpack.c.b16 %v715, %v714
    %v810 = vpack.c.b16 %v717, %v716
    %v811 = vpack.c.b16 %v719, %v718
    %v812 = vpack.c.b16 %v721, %v720
    %v813 = vpack.c.b16 %v723, %v722
    %v814 = vpack.c.b16 %v725, %v724
    %v815 = vpack.c.b16 %v727, %v726
    %v816 = vpack.c.b16 %v729, %v728
    %v817 = vpack.c.b16 %v731, %v730
    %v818 = vpack.c.b16 %v733, %v732
    %v819 = vpack.c.b16 %v735, %v734
    %v820 = vpack.c.b16 %v737, %v736
    %v821 = vpack.c.b16 %v739, %v738
    %v822 = vpack.c.b16 %v741, %v740
    %v823 = vpack.c.b16 %v743, %v742
    %v824 = vpack.c.b16 %v745, %v744
    %v825 = vpack.c.b16 %v747, %v746
    %v826 = vpack.c.b16 %v749, %v748
    %v827 = vpack.c.b16 %v751, %v750
    %v828 = vpack.c.b16 %v753, %v752
    %v829 = vpack.c.b16 %v755, %v754
    %v830 = vpack.c.b16 %v757, %v756
    %v831 = vpack.c.b16 %v759, %v758
    %v832 = vpack.c.b16 %v761, %v760
    %v833 = vpack.c.b16 %v763, %v762
    %v834 = vpack.c.b16 %v765, %v764
    %v835 = vpack.c.b16 %v767, %v766
    %v836 = vpack.c.b16 %v769, %v768
    %v837 = vpack.c.b16 %v771, %v770
    %v838 = vpack.c.b16 %v773, %v772
    %v839 = vpack.c.b16 %v775, %v774
    %904 = vmatprep.subr.bf16.mxu0 0
    %905 = vmatpush1.bf16.msra.mxu0 %v776
    %906 = vmatprep.subr.bf16.mxu0 0
    %907 = vmatpush1.bf16.msra.mxu0 %v777
    %908 = vmatprep.subr.bf16.mxu0 0
    %909 = vmatpush1.bf16.msra.mxu0 %v778
    %910 = vmatprep.subr.bf16.mxu0 0
    %911 = vmatpush1.bf16.msra.mxu0 %v779
    %912 = vmatprep.subr.bf16.mxu0 0
    %913 = vmatpush1.bf16.msra.mxu0 %v780
    %914 = vmatprep.subr.bf16.mxu0 0
    %915 = vmatpush1.bf16.msra.mxu0 %v781
    %916 = vmatprep.subr.bf16.mxu0 0
    %917 = vmatpush1.bf16.msra.mxu0 %v782
    %918 = vmatprep.subr.bf16.mxu0 0
    %919 = vmatpush1.bf16.msra.mxu0 %v783
    %920 = vmatprep.subr.bf16.mxu0 0
    %921 = vmatpush1.bf16.msra.mxu0 %v784
    %922 = vmatprep.subr.bf16.mxu0 0
    %923 = vmatpush1.bf16.msra.mxu0 %v785
    %924 = vmatprep.subr.bf16.mxu0 0
    %925 = vmatpush1.bf16.msra.mxu0 %v786
    %926 = vmatprep.subr.bf16.mxu0 0
    %927 = vmatpush1.bf16.msra.mxu0 %v787
    %928 = vmatprep.subr.bf16.mxu0 0
    %929 = vmatpush1.bf16.msra.mxu0 %v788
    %930 = vmatprep.subr.bf16.mxu0 0
    %931 = vmatpush1.bf16.msra.mxu0 %v789
    %932 = vmatprep.subr.bf16.mxu0 0
    %933 = vmatpush1.bf16.msra.mxu0 %v790
    %934 = vmatprep.subr.bf16.mxu0 0
    %935 = vmatpush1.bf16.msra.mxu0 %v791
    %936 = vmatprep.mubr.bf16.mxu0 %v385
    %937 = vmatmul.mubr.bf16.gmra.mrb[0].mxu0 %v384
    %v938 = vpop.f32.mrb[0].mxu0
    %v939 = vadd.f32 0.0, %v938
    %v940 = vpop.f32.mrb[0].mxu0
    %v941 = vpop.f32.mrb[0].mxu0
    %v942 = vpop.f32.mrb[0].mxu0
    %943 = vdwg.mxu0
    %944 = vmatprep.subr.bf16.mxu0 0
    %945 = vmatpush1.bf16.msra.mxu0 %v792
    %946 = vmatprep.subr.bf16.mxu0 0
    %947 = vmatpush1.bf16.msra.mxu0 %v793
    %948 = vmatprep.subr.bf16.mxu0 0
    %949 = vmatpush1.bf16.msra.mxu0 %v794
    %950 = vmatprep.subr.bf16.mxu0 0
    %951 = vmatpush1.bf16.msra.mxu0 %v795
    %952 = vmatprep.subr.bf16.mxu0 0
    %953 = vmatpush1.bf16.msra.mxu0 %v796
    %954 = vmatprep.subr.bf16.mxu0 0
    %955 = vmatpush1.bf16.msra.mxu0 %v797
    %956 = vmatprep.subr.bf16.mxu0 0
    %957 = vmatpush1.bf16.msra.mxu0 %v798
    %958 = vmatprep.subr.bf16.mxu0 0
    %959 = vmatpush1.bf16.msra.mxu0 %v799
    %960 = vmatprep.subr.bf16.mxu0 0
    %961 = vmatpush1.bf16.msra.mxu0 %v800
    %962 = vmatprep.subr.bf16.mxu0 0
    %963 = vmatpush1.bf16.msra.mxu0 %v801
    %964 = vmatprep.subr.bf16.mxu0 0
    %965 = vmatpush1.bf16.msra.mxu0 %v802
    %966 = vmatprep.subr.bf16.mxu0 0
    %967 = vmatpush1.bf16.msra.mxu0 %v803
    %968 = vmatprep.subr.bf16.mxu0 0
    %969 = vmatpush1.bf16.msra.mxu0 %v804
    %970 = vmatprep.subr.bf16.mxu0 0
    %971 = vmatpush1.bf16.msra.mxu0 %v805
    %972 = vmatprep.subr.bf16.mxu0 0
    %973 = vmatpush1.bf16.msra.mxu0 %v806
    %974 = vmatprep.subr.bf16.mxu0 0
    %975 = vmatpush1.bf16.msra.mxu0 %v807
    %976 = vmatprep.mubr.bf16.mxu0 %v387
    %977 = vmatmul.mubr.bf16.gmra.mrb[0].mxu0 %v386
    %v978 = vpop.f32.mrb[0].mxu0
    %v979 = vadd.f32 %v939, %v978
    %v980 = vpop.f32.mrb[0].mxu0
    %v981 = vpop.f32.mrb[0].mxu0
    %v982 = vpop.f32.mrb[0].mxu0
    %983 = vdwg.mxu0
    %984 = vmatprep.subr.bf16.mxu0 0
    %985 = vmatpush1.bf16.msra.mxu0 %v808
    %986 = vmatprep.subr.bf16.mxu0 0
    %987 = vmatpush1.bf16.msra.mxu0 %v809
    %988 = vmatprep.subr.bf16.mxu0 0
    %989 = vmatpush1.bf16.msra.mxu0 %v810
    %990 = vmatprep.subr.bf16.mxu0 0
    %991 = vmatpush1.bf16.msra.mxu0 %v811
    %992 = vmatprep.subr.bf16.mxu0 0
    %993 = vmatpush1.bf16.msra.mxu0 %v812
    %994 = vmatprep.subr.bf16.mxu0 0
    %995 = vmatpush1.bf16.msra.mxu0 %v813
    %996 = vmatprep.subr.bf16.mxu0 0
    %997 = vmatpush1.bf16.msra.mxu0 %v814
    %998 = vmatprep.subr.bf16.mxu0 0
    %999 = vmatpush1.bf16.msra.mxu0 %v815
    %1000 = vmatprep.subr.bf16.mxu0 0
    %1001 = vmatpush1.bf16.msra.mxu0 %v816
    %1002 = vmatprep.subr.bf16.mxu0 0
    %1003 = vmatpush1.bf16.msra.mxu0 %v817
    %1004 = vmatprep.subr.bf16.mxu0 0
    %1005 = vmatpush1.bf16.msra.mxu0 %v818
    %1006 = vmatprep.subr.bf16.mxu0 0
    %1007 = vmatpush1.bf16.msra.mxu0 %v819
    %1008 = vmatprep.subr.bf16.mxu0 0
    %1009 = vmatpush1.bf16.msra.mxu0 %v820
    %1010 = vmatprep.subr.bf16.mxu0 0
    %1011 = vmatpush1.bf16.msra.mxu0 %v821
    %1012 = vmatprep.subr.bf16.mxu0 0
    %1013 = vmatpush1.bf16.msra.mxu0 %v822
    %1014 = vmatprep.subr.bf16.mxu0 0
    %1015 = vmatpush1.bf16.msra.mxu0 %v823
    %1016 = vmatprep.mubr.bf16.mxu0 %v389
    %1017 = vmatmul.mubr.bf16.gmra.mrb[0].mxu0 %v388
    %v1018 = vpop.f32.mrb[0].mxu0
    %v1019 = vadd.f32 %v979, %v1018
    %v1020 = vpop.f32.mrb[0].mxu0
    %v1021 = vpop.f32.mrb[0].mxu0
    %v1022 = vpop.f32.mrb[0].mxu0
    %1023 = vdwg.mxu0
    %1024 = vmatprep.subr.bf16.mxu0 0
    %1025 = vmatpush1.bf16.msra.mxu0 %v824
    %1026 = vmatprep.subr.bf16.mxu0 0
    %1027 = vmatpush1.bf16.msra.mxu0 %v825
    %1028 = vmatprep.subr.bf16.mxu0 0
    %1029 = vmatpush1.bf16.msra.mxu0 %v826
    %1030 = vmatprep.subr.bf16.mxu0 0
    %1031 = vmatpush1.bf16.msra.mxu0 %v827
    %1032 = vmatprep.subr.bf16.mxu0 0
    %1033 = vmatpush1.bf16.msra.mxu0 %v828
    %1034 = vmatprep.subr.bf16.mxu0 0
    %1035 = vmatpush1.bf16.msra.mxu0 %v829
    %1036 = vmatprep.subr.bf16.mxu0 0
    %1037 = vmatpush1.bf16.msra.mxu0 %v830
    %1038 = vmatprep.subr.bf16.mxu0 0
    %1039 = vmatpush1.bf16.msra.mxu0 %v831
    %1040 = vmatprep.subr.bf16.mxu0 0
    %1041 = vmatpush1.bf16.msra.mxu0 %v832
    %1042 = vmatprep.subr.bf16.mxu0 0
    %1043 = vmatpush1.bf16.msra.mxu0 %v833
    %1044 = vmatprep.subr.bf16.mxu0 0
    %1045 = vmatpush1.bf16.msra.mxu0 %v834
    %1046 = vmatprep.subr.bf16.mxu0 0
    %1047 = vmatpush1.bf16.msra.mxu0 %v835
    %1048 = vmatprep.subr.bf16.mxu0 0
    %1049 = vmatpush1.bf16.msra.mxu0 %v836
    %1050 = vmatprep.subr.bf16.mxu0 0
    %1051 = vmatpush1.bf16.msra.mxu0 %v837
    %1052 = vmatprep.subr.bf16.mxu0 0
    %1053 = vmatpush1.bf16.msra.mxu0 %v838
    %1054 = vmatprep.subr.bf16.mxu0 0
    %1055 = vmatpush1.bf16.msra.mxu0 %v839
    %1056 = vmatprep.mubr.bf16.mxu0 %v391
    %1057 = vmatmul.mubr.bf16.gmra.mrb[0].mxu0 %v390
    %v1058 = vpop.f32.mrb[0].mxu0
    %v1059 = vadd.f32 %v1019, %v1058
    %v1060 = vpop.f32.mrb[0].mxu0
    %v1061 = vpop.f32.mrb[0].mxu0
    %v1062 = vpop.f32.mrb[0].mxu0
    %1063 = vdwg.mxu0
    %v1192 = vunpack.c.l.b16 %v212
    %v1193 = vunpack.c.l.b16 %v213
    %v1194 = vunpack.c.l.b16 %v214
    %v1195 = vunpack.c.l.b16 %v215
    %v1196 = vunpack.c.l.b16 %v216
    %v1197 = vunpack.c.l.b16 %v217
    %v1198 = vunpack.c.l.b16 %v218
    %v1199 = vunpack.c.l.b16 %v219
    %v1200 = vunpack.c.l.b16 %v220
    %v1201 = vunpack.c.l.b16 %v221
    %v1202 = vunpack.c.l.b16 %v222
    %v1203 = vunpack.c.l.b16 %v223
    %v1204 = vunpack.c.l.b16 %v224
    %v1205 = vunpack.c.l.b16 %v225
    %v1206 = vunpack.c.l.b16 %v226
    %v1207 = vunpack.c.l.b16 %v227
    %v1208 = vunpack.c.l.b16 %v228
    %v1209 = vunpack.c.l.b16 %v229
    %v1210 = vunpack.c.l.b16 %v230
    %v1211 = vunpack.c.l.b16 %v231
    %v1212 = vunpack.c.l.b16 %v232
    %v1213 = vunpack.c.l.b16 %v233
    %v1214 = vunpack.c.l.b16 %v234
    %v1215 = vunpack.c.l.b16 %v235
    %v1216 = vunpack.c.l.b16 %v236
    %v1217 = vunpack.c.l.b16 %v237
    %v1218 = vunpack.c.l.b16 %v238
    %v1219 = vunpack.c.l.b16 %v239
    %v1220 = vunpack.c.l.b16 %v240
    %v1221 = vunpack.c.l.b16 %v241
    %v1222 = vunpack.c.l.b16 %v242
    %v1223 = vunpack.c.l.b16 %v243
    %v1224 = vunpack.c.l.b16 %v244
    %v1225 = vunpack.c.l.b16 %v245
    %v1226 = vunpack.c.l.b16 %v246
    %v1227 = vunpack.c.l.b16 %v247
    %v1228 = vunpack.c.l.b16 %v248
    %v1229 = vunpack.c.l.b16 %v249
    %v1230 = vunpack.c.l.b16 %v250
    %v1231 = vunpack.c.l.b16 %v251
    %v1232 = vunpack.c.l.b16 %v252
    %v1233 = vunpack.c.l.b16 %v253
    %v1234 = vunpack.c.l.b16 %v254
    %v1235 = vunpack.c.l.b16 %v255
    %v1236 = vunpack.c.l.b16 %v256
    %v1237 = vunpack.c.l.b16 %v257
    %v1238 = vunpack.c.l.b16 %v258
    %v1239 = vunpack.c.l.b16 %v259
    %v1240 = vunpack.c.l.b16 %v260
    %v1241 = vunpack.c.l.b16 %v261
    %v1242 = vunpack.c.l.b16 %v262
    %v1243 = vunpack.c.l.b16 %v263
    %v1244 = vunpack.c.l.b16 %v264
    %v1245 = vunpack.c.l.b16 %v265
    %v1246 = vunpack.c.l.b16 %v266
    %v1247 = vunpack.c.l.b16 %v267
    %v1248 = vunpack.c.l.b16 %v268
    %v1249 = vunpack.c.l.b16 %v269
    %v1250 = vunpack.c.l.b16 %v270
    %v1251 = vunpack.c.l.b16 %v271
    %v1252 = vunpack.c.l.b16 %v272
    %v1253 = vunpack.c.l.b16 %v273
    %v1254 = vunpack.c.l.b16 %v274
    %v1255 = vunpack.c.l.b16 %v275
    %v1256 = vunpack.c.l.b16 %v276
    %v1257 = vunpack.c.l.b16 %v277
    %v1258 = vunpack.c.l.b16 %v278
    %v1259 = vunpack.c.l.b16 %v279
    %v1260 = vunpack.c.l.b16 %v280
    %v1261 = vunpack.c.l.b16 %v281
    %v1262 = vunpack.c.l.b16 %v282
    %v1263 = vunpack.c.l.b16 %v283
    %v1264 = vunpack.c.l.b16 %v284
    %v1265 = vunpack.c.l.b16 %v285
    %v1266 = vunpack.c.l.b16 %v286
    %v1267 = vunpack.c.l.b16 %v287
    %v1268 = vunpack.c.l.b16 %v288
    %v1269 = vunpack.c.l.b16 %v289
    %v1270 = vunpack.c.l.b16 %v290
    %v1271 = vunpack.c.l.b16 %v291
    %v1272 = vunpack.c.l.b16 %v292
    %v1273 = vunpack.c.l.b16 %v293
    %v1274 = vunpack.c.l.b16 %v294
    %v1275 = vunpack.c.l.b16 %v295
    %v1276 = vunpack.c.l.b16 %v296
    %v1277 = vunpack.c.l.b16 %v297
    %v1278 = vunpack.c.l.b16 %v298
    %v1279 = vunpack.c.l.b16 %v299
    %v1280 = vunpack.c.l.b16 %v300
    %v1281 = vunpack.c.l.b16 %v301
    %v1282 = vunpack.c.l.b16 %v302
    %v1283 = vunpack.c.l.b16 %v303
    %v1284 = vunpack.c.l.b16 %v304
    %v1285 = vunpack.c.l.b16 %v305
    %v1286 = vunpack.c.l.b16 %v306
    %v1287 = vunpack.c.l.b16 %v307
    %v1288 = vunpack.c.l.b16 %v308
    %v1289 = vunpack.c.l.b16 %v309
    %v1290 = vunpack.c.l.b16 %v310
    %v1291 = vunpack.c.l.b16 %v311
    %v1292 = vunpack.c.l.b16 %v312
    %v1293 = vunpack.c.l.b16 %v313
    %v1294 = vunpack.c.l.b16 %v314
    %v1295 = vunpack.c.l.b16 %v315
    %v1296 = vunpack.c.l.b16 %v316
    %v1297 = vunpack.c.l.b16 %v317
    %v1298 = vunpack.c.l.b16 %v318
    %v1299 = vunpack.c.l.b16 %v319
    %v1300 = vunpack.c.l.b16 %v320
    %v1301 = vunpack.c.l.b16 %v321
    %v1302 = vunpack.c.l.b16 %v322
    %v1303 = vunpack.c.l.b16 %v323
    %v1304 = vunpack.c.l.b16 %v324
    %v1305 = vunpack.c.l.b16 %v325
    %v1306 = vunpack.c.l.b16 %v326
    %v1307 = vunpack.c.l.b16 %v327
    %v1308 = vunpack.c.l.b16 %v328
    %v1309 = vunpack.c.l.b16 %v329
    %v1310 = vunpack.c.l.b16 %v330
    %v1311 = vunpack.c.l.b16 %v331
    %v1312 = vunpack.c.l.b16 %v332
    %v1313 = vunpack.c.l.b16 %v333
    %v1314 = vunpack.c.l.b16 %v334
    %v1315 = vunpack.c.l.b16 %v335
    %v1316 = vunpack.c.l.b16 %v336
    %v1317 = vunpack.c.l.b16 %v337
    %v1318 = vunpack.c.l.b16 %v338
    %v1319 = vunpack.c.l.b16 %v339
    %v1320 = vpack.c.b16 %v1193, %v1192
    %v1321 = vpack.c.b16 %v1195, %v1194
    %v1322 = vpack.c.b16 %v1197, %v1196
    %v1323 = vpack.c.b16 %v1199, %v1198
    %v1324 = vpack.c.b16 %v1201, %v1200
    %v1325 = vpack.c.b16 %v1203, %v1202
    %v1326 = vpack.c.b16 %v1205, %v1204
    %v1327 = vpack.c.b16 %v1207, %v1206
    %v1328 = vpack.c.b16 %v1209, %v1208
    %v1329 = vpack.c.b16 %v1211, %v1210
    %v1330 = vpack.c.b16 %v1213, %v1212
    %v1331 = vpack.c.b16 %v1215, %v1214
    %v1332 = vpack.c.b16 %v1217, %v1216
    %v1333 = vpack.c.b16 %v1219, %v1218
    %v1334 = vpack.c.b16 %v1221, %v1220
    %v1335 = vpack.c.b16 %v1223, %v1222
    %v1336 = vpack.c.b16 %v1225, %v1224
    %v1337 = vpack.c.b16 %v1227, %v1226
    %v1338 = vpack.c.b16 %v1229, %v1228
    %v1339 = vpack.c.b16 %v1231, %v1230
    %v1340 = vpack.c.b16 %v1233, %v1232
    %v1341 = vpack.c.b16 %v1235, %v1234
    %v1342 = vpack.c.b16 %v1237, %v1236
    %v1343 = vpack.c.b16 %v1239, %v1238
    %v1344 = vpack.c.b16 %v1241, %v1240
    %v1345 = vpack.c.b16 %v1243, %v1242
    %v1346 = vpack.c.b16 %v1245, %v1244
    %v1347 = vpack.c.b16 %v1247, %v1246
    %v1348 = vpack.c.b16 %v1249, %v1248
    %v1349 = vpack.c.b16 %v1251, %v1250
    %v1350 = vpack.c.b16 %v1253, %v1252
    %v1351 = vpack.c.b16 %v1255, %v1254
    %v1352 = vpack.c.b16 %v1257, %v1256
    %v1353 = vpack.c.b16 %v1259, %v1258
    %v1354 = vpack.c.b16 %v1261, %v1260
    %v1355 = vpack.c.b16 %v1263, %v1262
    %v1356 = vpack.c.b16 %v1265, %v1264
    %v1357 = vpack.c.b16 %v1267, %v1266
    %v1358 = vpack.c.b16 %v1269, %v1268
    %v1359 = vpack.c.b16 %v1271, %v1270
    %v1360 = vpack.c.b16 %v1273, %v1272
    %v1361 = vpack.c.b16 %v1275, %v1274
    %v1362 = vpack.c.b16 %v1277, %v1276
    %v1363 = vpack.c.b16 %v1279, %v1278
    %v1364 = vpack.c.b16 %v1281, %v1280
    %v1365 = vpack.c.b16 %v1283, %v1282
    %v1366 = vpack.c.b16 %v1285, %v1284
    %v1367 = vpack.c.b16 %v1287, %v1286
    %v1368 = vpack.c.b16 %v1289, %v1288
    %v1369 = vpack.c.b16 %v1291, %v1290
    %v1370 = vpack.c.b16 %v1293, %v1292
    %v1371 = vpack.c.b16 %v1295, %v1294
    %v1372 = vpack.c.b16 %v1297, %v1296
    %v1373 = vpack.c.b16 %v1299, %v1298
    %v1374 = vpack.c.b16 %v1301, %v1300
    %v1375 = vpack.c.b16 %v1303, %v1302
    %v1376 = vpack.c.b16 %v1305, %v1304
    %v1377 = vpack.c.b16 %v1307, %v1306
    %v1378 = vpack.c.b16 %v1309, %v1308
    %v1379 = vpack.c.b16 %v1311, %v1310
    %v1380 = vpack.c.b16 %v1313, %v1312
    %v1381 = vpack.c.b16 %v1315, %v1314
    %v1382 = vpack.c.b16 %v1317, %v1316
    %v1383 = vpack.c.b16 %v1319, %v1318
    %1448 = vmatprep.subr.bf16.mxu0 0
    %1449 = vmatpush1.bf16.msra.mxu0 %v1320
    %1450 = vmatprep.subr.bf16.mxu0 0
    %1451 = vmatpush1.bf16.msra.mxu0 %v1321
    %1452 = vmatprep.subr.bf16.mxu0 0
    %1453 = vmatpush1.bf16.msra.mxu0 %v1322
    %1454 = vmatprep.subr.bf16.mxu0 0
    %1455 = vmatpush1.bf16.msra.mxu0 %v1323
    %1456 = vmatprep.subr.bf16.mxu0 0
    %1457 = vmatpush1.bf16.msra.mxu0 %v1324
    %1458 = vmatprep.subr.bf16.mxu0 0
    %1459 = vmatpush1.bf16.msra.mxu0 %v1325
    %1460 = vmatprep.subr.bf16.mxu0 0
    %1461 = vmatpush1.bf16.msra.mxu0 %v1326
    %1462 = vmatprep.subr.bf16.mxu0 0
    %1463 = vmatpush1.bf16.msra.mxu0 %v1327
    %1464 = vmatprep.subr.bf16.mxu0 0
    %1465 = vmatpush1.bf16.msra.mxu0 %v1328
    %1466 = vmatprep.subr.bf16.mxu0 0
    %1467 = vmatpush1.bf16.msra.mxu0 %v1329
    %1468 = vmatprep.subr.bf16.mxu0 0
    %1469 = vmatpush1.bf16.msra.mxu0 %v1330
    %1470 = vmatprep.subr.bf16.mxu0 0
    %1471 = vmatpush1.bf16.msra.mxu0 %v1331
    %1472 = vmatprep.subr.bf16.mxu0 0
    %1473 = vmatpush1.bf16.msra.mxu0 %v1332
    %1474 = vmatprep.subr.bf16.mxu0 0
    %1475 = vmatpush1.bf16.msra.mxu0 %v1333
    %1476 = vmatprep.subr.bf16.mxu0 0
    %1477 = vmatpush1.bf16.msra.mxu0 %v1334
    %1478 = vmatprep.subr.bf16.mxu0 0
    %1479 = vmatpush1.bf16.msra.mxu0 %v1335
    %1480 = vmatprep.mubr.bf16.mxu0 %v205
    %1481 = vmatmul.mubr.bf16.gmra.mrb[0].mxu0 %v204
    %v1482 = vpop.f32.mrb[0].mxu0
    %v1483 = vadd.f32 %v1059, %v1482
    %v1484 = vpop.f32.mrb[0].mxu0
    %v1485 = vpop.f32.mrb[0].mxu0
    %v1486 = vpop.f32.mrb[0].mxu0
    %1487 = vdwg.mxu0
    %1488 = vmatprep.subr.bf16.mxu0 0
    %1489 = vmatpush1.bf16.msra.mxu0 %v1336
    %1490 = vmatprep.subr.bf16.mxu0 0
    %1491 = vmatpush1.bf16.msra.mxu0 %v1337
    %1492 = vmatprep.subr.bf16.mxu0 0
    %1493 = vmatpush1.bf16.msra.mxu0 %v1338
    %1494 = vmatprep.subr.bf16.mxu0 0
    %1495 = vmatpush1.bf16.msra.mxu0 %v1339
    %1496 = vmatprep.subr.bf16.mxu0 0
    %1497 = vmatpush1.bf16.msra.mxu0 %v1340
    %1498 = vmatprep.subr.bf16.mxu0 0
    %1499 = vmatpush1.bf16.msra.mxu0 %v1341
    %1500 = vmatprep.subr.bf16.mxu0 0
    %1501 = vmatpush1.bf16.msra.mxu0 %v1342
    %1502 = vmatprep.subr.bf16.mxu0 0
    %1503 = vmatpush1.bf16.msra.mxu0 %v1343
    %1504 = vmatprep.subr.bf16.mxu0 0
    %1505 = vmatpush1.bf16.msra.mxu0 %v1344
    %1506 = vmatprep.subr.bf16.mxu0 0
    %1507 = vmatpush1.bf16.msra.mxu0 %v1345
    %1508 = vmatprep.subr.bf16.mxu0 0
    %1509 = vmatpush1.bf16.msra.mxu0 %v1346
    %1510 = vmatprep.subr.bf16.mxu0 0
    %1511 = vmatpush1.bf16.msra.mxu0 %v1347
    %1512 = vmatprep.subr.bf16.mxu0 0
    %1513 = vmatpush1.bf16.msra.mxu0 %v1348
    %1514 = vmatprep.subr.bf16.mxu0 0
    %1515 = vmatpush1.bf16.msra.mxu0 %v1349
    %1516 = vmatprep.subr.bf16.mxu0 0
    %1517 = vmatpush1.bf16.msra.mxu0 %v1350
    %1518 = vmatprep.subr.bf16.mxu0 0
    %1519 = vmatpush1.bf16.msra.mxu0 %v1351
    %1520 = vmatprep.mubr.bf16.mxu0 %v207
    %1521 = vmatmul.mubr.bf16.gmra.mrb[0].mxu0 %v206
    %v1522 = vpop.f32.mrb[0].mxu0
    %v1523 = vadd.f32 %v1483, %v1522
    %v1524 = vpop.f32.mrb[0].mxu0
    %v1525 = vpop.f32.mrb[0].mxu0
    %v1526 = vpop.f32.mrb[0].mxu0
    %1527 = vdwg.mxu0
    %1528 = vmatprep.subr.bf16.mxu0 0
    %1529 = vmatpush1.bf16.msra.mxu0 %v1352
    %1530 = vmatprep.subr.bf16.mxu0 0
    %1531 = vmatpush1.bf16.msra.mxu0 %v1353
    %1532 = vmatprep.subr.bf16.mxu0 0
    %1533 = vmatpush1.bf16.msra.mxu0 %v1354
    %1534 = vmatprep.subr.bf16.mxu0 0
    %1535 = vmatpush1.bf16.msra.mxu0 %v1355
    %1536 = vmatprep.subr.bf16.mxu0 0
    %1537 = vmatpush1.bf16.msra.mxu0 %v1356
    %1538 = vmatprep.subr.bf16.mxu0 0
    %1539 = vmatpush1.bf16.msra.mxu0 %v1357
    %1540 = vmatprep.subr.bf16.mxu0 0
    %1541 = vmatpush1.bf16.msra.mxu0 %v1358
    %1542 = vmatprep.subr.bf16.mxu0 0
    %1543 = vmatpush1.bf16.msra.mxu0 %v1359
    %1544 = vmatprep.subr.bf16.mxu0 0
    %1545 = vmatpush1.bf16.msra.mxu0 %v1360
    %1546 = vmatprep.subr.bf16.mxu0 0
    %1547 = vmatpush1.bf16.msra.mxu0 %v1361
    %1548 = vmatprep.subr.bf16.mxu0 0
    %1549 = vmatpush1.bf16.msra.mxu0 %v1362
    %1550 = vmatprep.subr.bf16.mxu0 0
    %1551 = vmatpush1.bf16.msra.mxu0 %v1363
    %1552 = vmatprep.subr.bf16.mxu0 0
    %1553 = vmatpush1.bf16.msra.mxu0 %v1364
    %1554 = vmatprep.subr.bf16.mxu0 0
    %1555 = vmatpush1.bf16.msra.mxu0 %v1365
    %1556 = vmatprep.subr.bf16.mxu0 0
    %1557 = vmatpush1.bf16.msra.mxu0 %v1366
    %1558 = vmatprep.subr.bf16.mxu0 0
    %1559 = vmatpush1.bf16.msra.mxu0 %v1367
    %1560 = vmatprep.mubr.bf16.mxu0 %v209
    %1561 = vmatmul.mubr.bf16.gmra.mrb[0].mxu0 %v208
    %v1562 = vpop.f32.mrb[0].mxu0
    %v1563 = vadd.f32 %v1523, %v1562
    %v1564 = vpop.f32.mrb[0].mxu0
    %v1565 = vpop.f32.mrb[0].mxu0
    %v1566 = vpop.f32.mrb[0].mxu0
    %1567 = vdwg.mxu0
    %1568 = vmatprep.subr.bf16.mxu0 0
    %1569 = vmatpush1.bf16.msra.mxu0 %v1368
    %1570 = vmatprep.subr.bf16.mxu0 0
    %1571 = vmatpush1.bf16.msra.mxu0 %v1369
    %1572 = vmatprep.subr.bf16.mxu0 0
    %1573 = vmatpush1.bf16.msra.mxu0 %v1370
    %1574 = vmatprep.subr.bf16.mxu0 0
    %1575 = vmatpush1.bf16.msra.mxu0 %v1371
    %1576 = vmatprep.subr.bf16.mxu0 0
    %1577 = vmatpush1.bf16.msra.mxu0 %v1372
    %1578 = vmatprep.subr.bf16.mxu0 0
    %1579 = vmatpush1.bf16.msra.mxu0 %v1373
    %1580 = vmatprep.subr.bf16.mxu0 0
    %1581 = vmatpush1.bf16.msra.mxu0 %v1374
    %1582 = vmatprep.subr.bf16.mxu0 0
    %1583 = vmatpush1.bf16.msra.mxu0 %v1375
    %1584 = vmatprep.subr.bf16.mxu0 0
    %1585 = vmatpush1.bf16.msra.mxu0 %v1376
    %1586 = vmatprep.subr.bf16.mxu0 0
    %1587 = vmatpush1.bf16.msra.mxu0 %v1377
    %1588 = vmatprep.subr.bf16.mxu0 0
    %1589 = vmatpush1.bf16.msra.mxu0 %v1378
    %1590 = vmatprep.subr.bf16.mxu0 0
    %1591 = vmatpush1.bf16.msra.mxu0 %v1379
    %1592 = vmatprep.subr.bf16.mxu0 0
    %1593 = vmatpush1.bf16.msra.mxu0 %v1380
    %1594 = vmatprep.subr.bf16.mxu0 0
    %1595 = vmatpush1.bf16.msra.mxu0 %v1381
    %1596 = vmatprep.subr.bf16.mxu0 0
    %1597 = vmatpush1.bf16.msra.mxu0 %v1382
    %1598 = vmatprep.subr.bf16.mxu0 0
    %1599 = vmatpush1.bf16.msra.mxu0 %v1383
    %1600 = vmatprep.mubr.bf16.mxu0 %v211
    %1601 = vmatmul.mubr.bf16.gmra.mrb[0].mxu0 %v210
    %v1602 = vpop.f32.mrb[0].mxu0
    %v1603 = vadd.f32 %v1563, %v1602
    %v1604 = vpop.f32.mrb[0].mxu0
    %v1605 = vpop.f32.mrb[0].mxu0
    %v1606 = vpop.f32.mrb[0].mxu0
    %1607 = vdwg.mxu0
    %v1608 = vld [vmem:[%s9] sm:$0x1]
    %v1610 = vlaneseq
    %v1611 = vshrl.u32 %v1610, 7
    %v1612 = vsub.s32 0, %v1611
    %v1613 = vrot.slane %v1608, %v1612
    %v1615 = vadd.f32 %v1603, %v1613
    %v1616 = vmax.f32 %v1615, 0.0
    %v1617 = vld [vmem:[%s10] sm:$0xff]
    %v1618 = vld [vmem:[%s10 + $0x8] sm:$0xff]
    %v1619 = vld [vmem:[%s10 + $0x10] sm:$0xff]
    %v1620 = vld [vmem:[%s10 + $0x18] sm:$0xff]
    %v1621 = vld [vmem:[%s11] sm:$0x1]
    %v1623 = vlaneseq
    %v1624 = vshrl.u32 %v1623, 7
    %v1625 = vsub.s32 0, %v1624
    %v1626 = vrot.slane %v1621, %v1625
    %vm1628 = vcmask 261120
    %v1630 = vsel %vm1628, %v1616, 0
    %1632 = vmatprep.subr.mxu0 0.0
    %1633 = vmatpush1.msra.mxu0 %v1617
    %1634 = vmatprep.subr.mxu0 0.0
    %1635 = vmatpush1.msra.mxu0 %v1618
    %1636 = vmatprep.subr.mxu0 0.0
    %1637 = vmatpush1.msra.mxu0 %v1619
    %1638 = vmatprep.subr.mxu0 0.0
    %1639 = vmatpush1.msra.mxu0 %v1620
    %1640 = vmatprep.subr.mxu0 0.0
    %1641 = vmatpush1.msra.mxu0 0.0
    %1642 = vmatprep.subr.mxu0 0.0
    %1643 = vmatpush1.msra.mxu0 0.0
    %1644 = vmatprep.subr.mxu0 0.0
    %1645 = vmatpush1.msra.mxu0 0.0
    %1646 = vmatprep.subr.mxu0 0.0
    %1647 = vmatpush1.msra.mxu0 0.0
    %1648 = vmatprep.subr.mxu0 0.0
    %1649 = vmatpush1.msra.mxu0 0.0
    %1650 = vmatprep.subr.mxu0 0.0
    %1651 = vmatpush1.msra.mxu0 0.0
    %1652 = vmatprep.subr.mxu0 0.0
    %1653 = vmatpush1.msra.mxu0 0.0
    %1654 = vmatprep.subr.mxu0 0.0
    %1655 = vmatpush1.msra.mxu0 0.0
    %1656 = vmatprep.subr.mxu0 0.0
    %1657 = vmatpush1.msra.mxu0 0.0
    %1658 = vmatprep.subr.mxu0 0.0
    %1659 = vmatpush1.msra.mxu0 0.0
    %1660 = vmatprep.subr.mxu0 0.0
    %1661 = vmatpush1.msra.mxu0 0.0
    %1662 = vmatprep.subr.mxu0 0.0
    %1663 = vmatpush1.msra.mxu0 0.0
    %1664 = vmatprep.subr.mxu0 0.0
    %1665 = vmatpush1.msra.mxu0 0.0
    %1666 = vmatprep.subr.mxu0 0.0
    %1667 = vmatpush1.msra.mxu0 0.0
    %1668 = vmatprep.subr.mxu0 0.0
    %1669 = vmatpush1.msra.mxu0 0.0
    %1670 = vmatprep.subr.mxu0 0.0
    %1671 = vmatpush1.msra.mxu0 0.0
    %1672 = vmatprep.subr.mxu0 0.0
    %1673 = vmatpush1.msra.mxu0 0.0
    %1674 = vmatprep.subr.mxu0 0.0
    %1675 = vmatpush1.msra.mxu0 0.0
    %1676 = vmatprep.subr.mxu0 0.0
    %1677 = vmatpush1.msra.mxu0 0.0
    %1678 = vmatprep.subr.mxu0 0.0
    %1679 = vmatpush1.msra.mxu0 0.0
    %1680 = vmatprep.subr.mxu0 0.0
    %1681 = vmatpush1.msra.mxu0 0.0
    %1682 = vmatprep.subr.mxu0 0.0
    %1683 = vmatpush1.msra.mxu0 0.0
    %1684 = vmatprep.subr.mxu0 0.0
    %1685 = vmatpush1.msra.mxu0 0.0
    %1686 = vmatprep.subr.mxu0 0.0
    %1687 = vmatpush1.msra.mxu0 0.0
    %1688 = vmatprep.subr.mxu0 0.0
    %1689 = vmatpush1.msra.mxu0 0.0
    %1690 = vmatprep.subr.mxu0 0.0
    %1691 = vmatpush1.msra.mxu0 0.0
    %1692 = vmatprep.subr.mxu0 0.0
    %1693 = vmatpush1.msra.mxu0 0.0
    %1694 = vmatprep.subr.mxu0 0.0
    %1695 = vmatpush1.msra.mxu0 0.0
    %1696 = vmatprep.mubr.f32.mxu0 0.0
    %1697 = vmatmul.mubr.f32.gmra.mrb[0].mxu0 %v1630
    %v1698 = vpop.f32.mrb[0].mxu0
    %v1699 = vadd.f32 %v1626, %v1698
    %v1700 = vpop.f32.mrb[0].mxu0
    %1701 = vdwg.mxu0
    %v1702 = vld [vmem:[%s12] sm:$0xff]
    %v1703 = vld [vmem:[%s12 + $0x8] sm:$0xff]
    %v1704 = vld [vmem:[%s12 + $0x10] sm:$0xff]
    %v1705 = vld [vmem:[%s12 + $0x18] sm:$0xff]
    %v1706 = vld [vmem:[%s13] sm:$0x1]
    %v1708 = vlaneseq
    %v1709 = vshrl.u32 %v1708, 7
    %v1710 = vsub.s32 0, %v1709
    %v1711 = vrot.slane %v1706, %v1710
    %1713 = vmatprep.subr.mxu0 0.0
    %1714 = vmatpush1.msra.mxu0 %v1702
    %1715 = vmatprep.subr.mxu0 0.0
    %1716 = vmatpush1.msra.mxu0 %v1703
    %1717 = vmatprep.subr.mxu0 0.0
    %1718 = vmatpush1.msra.mxu0 %v1704
    %1719 = vmatprep.subr.mxu0 0.0
    %1720 = vmatpush1.msra.mxu0 %v1705
    %1721 = vmatprep.subr.mxu0 0.0
    %1722 = vmatpush1.msra.mxu0 0.0
    %1723 = vmatprep.subr.mxu0 0.0
    %1724 = vmatpush1.msra.mxu0 0.0
    %1725 = vmatprep.subr.mxu0 0.0
    %1726 = vmatpush1.msra.mxu0 0.0
    %1727 = vmatprep.subr.mxu0 0.0
    %1728 = vmatpush1.msra.mxu0 0.0
    %1729 = vmatprep.subr.mxu0 0.0
    %1730 = vmatpush1.msra.mxu0 0.0
    %1731 = vmatprep.subr.mxu0 0.0
    %1732 = vmatpush1.msra.mxu0 0.0
    %1733 = vmatprep.subr.mxu0 0.0
    %1734 = vmatpush1.msra.mxu0 0.0
    %1735 = vmatprep.subr.mxu0 0.0
    %1736 = vmatpush1.msra.mxu0 0.0
    %1737 = vmatprep.subr.mxu0 0.0
    %1738 = vmatpush1.msra.mxu0 0.0
    %1739 = vmatprep.subr.mxu0 0.0
    %1740 = vmatpush1.msra.mxu0 0.0
    %1741 = vmatprep.subr.mxu0 0.0
    %1742 = vmatpush1.msra.mxu0 0.0
    %1743 = vmatprep.subr.mxu0 0.0
    %1744 = vmatpush1.msra.mxu0 0.0
    %1745 = vmatprep.subr.mxu0 0.0
    %1746 = vmatpush1.msra.mxu0 0.0
    %1747 = vmatprep.subr.mxu0 0.0
    %1748 = vmatpush1.msra.mxu0 0.0
    %1749 = vmatprep.subr.mxu0 0.0
    %1750 = vmatpush1.msra.mxu0 0.0
    %1751 = vmatprep.subr.mxu0 0.0
    %1752 = vmatpush1.msra.mxu0 0.0
    %1753 = vmatprep.subr.mxu0 0.0
    %1754 = vmatpush1.msra.mxu0 0.0
    %1755 = vmatprep.subr.mxu0 0.0
    %1756 = vmatpush1.msra.mxu0 0.0
    %1757 = vmatprep.subr.mxu0 0.0
    %1758 = vmatpush1.msra.mxu0 0.0
    %1759 = vmatprep.subr.mxu0 0.0
    %1760 = vmatpush1.msra.mxu0 0.0
    %1761 = vmatprep.subr.mxu0 0.0
    %1762 = vmatpush1.msra.mxu0 0.0
    %1763 = vmatprep.subr.mxu0 0.0
    %1764 = vmatpush1.msra.mxu0 0.0
    %1765 = vmatprep.subr.mxu0 0.0
    %1766 = vmatpush1.msra.mxu0 0.0
    %1767 = vmatprep.subr.mxu0 0.0
    %1768 = vmatpush1.msra.mxu0 0.0
    %1769 = vmatprep.subr.mxu0 0.0
    %1770 = vmatpush1.msra.mxu0 0.0
    %1771 = vmatprep.subr.mxu0 0.0
    %1772 = vmatpush1.msra.mxu0 0.0
    %1773 = vmatprep.subr.mxu0 0.0
    %1774 = vmatpush1.msra.mxu0 0.0
    %1775 = vmatprep.subr.mxu0 0.0
    %1776 = vmatpush1.msra.mxu0 0.0
    %1777 = vmatprep.mubr.f32.mxu0 0.0
    %1778 = vmatmul.mubr.f32.gmra.mrb[0].mxu0 %v1630
    %v1779 = vpop.f32.mrb[0].mxu0
    %v1780 = vadd.f32 %v1711, %v1779
    %v1781 = vpop.f32.mrb[0].mxu0
    %1782 = vdwg.mxu0
    %v1783 = vmul.f32 %v1780, 1.442695
    %v1784 = vpow.pop %v1783
    %v1785 = vld [vmem:[%s4] sm:$0x3]
    %v1786 = vmul.f32 %v1784, %v1785
    %v1787 = vadd.f32 %v1699, %v1786
    %vm1788 = vcmask 58368
    %1789 = vst.msk [vmem:[#allocation2] sm:$0x3] %vm1788, %v1787
    %v1790 = vpack.c.bf16 %v155, %v155
    %v1791 = vld [vmem:[%s14] sm:$0xff]
    %v1792 = vld [vmem:[%s14 + $0x8] sm:$0xff]
    %v1793 = vld [vmem:[%s14 + $0x10] sm:$0xff]
    %v1794 = vld [vmem:[%s14 + $0x18] sm:$0xff]
    %v1795 = vld [vmem:[%s15] sm:$0xff]
    %v1797 = vlaneseq
    %v1798 = vshrl.u32 %v1797, 7
    %v1799 = vsub.s32 0, %v1798
    %v1800 = vrot.slane %v1795, %v1799
    %v1801 = vlaneseq
    %v1802 = vshrl.u32 %v1801, 7
    %v1803 = vsub.s32 1, %v1802
    %v1804 = vrot.slane %v1795, %v1803
    %v1805 = vlaneseq
    %v1806 = vshrl.u32 %v1805, 7
    %v1807 = vsub.s32 2, %v1806
    %v1808 = vrot.slane %v1795, %v1807
    %v1809 = vlaneseq
    %v1810 = vshrl.u32 %v1809, 7
    %v1811 = vsub.s32 3, %v1810
    %v1812 = vrot.slane %v1795, %v1811
    %v1813 = vlaneseq
    %v1814 = vshrl.u32 %v1813, 7
    %v1815 = vsub.s32 4, %v1814
    %v1816 = vrot.slane %v1795, %v1815
    %v1817 = vlaneseq
    %v1818 = vshrl.u32 %v1817, 7
    %v1819 = vsub.s32 5, %v1818
    %v1820 = vrot.slane %v1795, %v1819
    %v1821 = vlaneseq
    %v1822 = vshrl.u32 %v1821, 7
    %v1823 = vsub.s32 6, %v1822
    %v1824 = vrot.slane %v1795, %v1823
    %v1825 = vlaneseq
    %v1826 = vshrl.u32 %v1825, 7
    %v1827 = vsub.s32 7, %v1826
    %v1828 = vrot.slane %v1795, %v1827
    %v1841 = vunpack.c.l.b16 %v1791
    %v1842 = vunpack.c.h.b16 %v1791
    %v1843 = vunpack.c.l.b16 %v1792
    %v1844 = vunpack.c.h.b16 %v1792
    %v1845 = vunpack.c.l.b16 %v1793
    %v1846 = vunpack.c.h.b16 %v1793
    %v1847 = vunpack.c.l.b16 %v1794
    %v1848 = vunpack.c.h.b16 %v1794
    %v1849 = vpack.c.b16 %v1841, %v1841
    %v1850 = vpack.c.b16 %v1842, %v1842
    %v1851 = vpack.c.b16 %v1843, %v1843
    %v1852 = vpack.c.b16 %v1844, %v1844
    %v1853 = vpack.c.b16 %v1845, %v1845
    %v1854 = vpack.c.b16 %v1846, %v1846
    %v1855 = vpack.c.b16 %v1847, %v1847
    %v1856 = vpack.c.b16 %v1848, %v1848
    %vm1857 = vcmask 64512
    %v1859 = vsel %vm1857, %v1790, 0
    %vm1861 = vcmask 1043456
    %v1863 = vsel %vm1861, %v1849, 0
    %v1866 = vsel %vm1861, %v1850, 0
    %v1869 = vsel %vm1861, %v1851, 0
    %v1872 = vsel %vm1861, %v1852, 0
    %v1875 = vsel %vm1861, %v1853, 0
    %v1878 = vsel %vm1861, %v1854, 0
    %v1881 = vsel %vm1861, %v1855, 0
    %v1884 = vsel %vm1861, %v1856, 0
    %1886 = vmatprep.subr.bf16.mxu0 %v1866
    %1887 = vmatpush1.bf16.msra.mxu0 %v1863
    %1888 = vmatprep.subr.bf16.mxu0 0
    %1889 = vmatpush1.bf16.msra.mxu0 0
    %1890 = vmatprep.subr.bf16.mxu0 0
    %1891 = vmatpush1.bf16.msra.mxu0 0
    %1892 = vmatprep.subr.bf16.mxu0 0
    %1893 = vmatpush1.bf16.msra.mxu0 0
    %1894 = vmatprep.subr.bf16.mxu0 0
    %1895 = vmatpush1.bf16.msra.mxu0 0
    %1896 = vmatprep.subr.bf16.mxu0 0
    %1897 = vmatpush1.bf16.msra.mxu0 0
    %1898 = vmatprep.subr.bf16.mxu0 0
    %1899 = vmatpush1.bf16.msra.mxu0 0
    %1900 = vmatprep.subr.bf16.mxu0 0
    %1901 = vmatpush1.bf16.msra.mxu0 0
    %1902 = vmatprep.subr.bf16.mxu0 0
    %1903 = vmatpush1.bf16.msra.mxu0 0
    %1904 = vmatprep.subr.bf16.mxu0 0
    %1905 = vmatpush1.bf16.msra.mxu0 0
    %1906 = vmatprep.subr.bf16.mxu0 0
    %1907 = vmatpush1.bf16.msra.mxu0 0
    %1908 = vmatprep.subr.bf16.mxu0 0
    %1909 = vmatpush1.bf16.msra.mxu0 0
    %1910 = vmatprep.subr.bf16.mxu0 0
    %1911 = vmatpush1.bf16.msra.mxu0 0
    %1912 = vmatprep.subr.bf16.mxu0 0
    %1913 = vmatpush1.bf16.msra.mxu0 0
    %1914 = vmatprep.subr.bf16.mxu0 0
    %1915 = vmatpush1.bf16.msra.mxu0 0
    %1916 = vmatprep.subr.bf16.mxu0 0
    %1917 = vmatpush1.bf16.msra.mxu0 0
    %1918 = vmatprep.mubr.bf16.mxu0 0
    %1919 = vmatmul.mubr.bf16.gmra.mrb[0].mxu0 %v1859
    %v1920 = vpop.f32.mrb[0].mxu0
    %v1921 = vadd.f32 %v1800, %v1920
    %v1922 = vpop.f32.mrb[0].mxu0
    %v1923 = vadd.f32 %v1804, %v1922
    %v1924 = vpop.f32.mrb[0].mxu0
    %v1925 = vpop.f32.mrb[0].mxu0
    %1926 = vdwg.mxu0
    %1927 = vmatprep.subr.bf16.mxu0 %v1872
    %1928 = vmatpush1.bf16.msra.mxu0 %v1869
    %1929 = vmatprep.subr.bf16.mxu0 0
    %1930 = vmatpush1.bf16.msra.mxu0 0
    %1931 = vmatprep.subr.bf16.mxu0 0
    %1932 = vmatpush1.bf16.msra.mxu0 0
    %1933 = vmatprep.subr.bf16.mxu0 0
    %1934 = vmatpush1.bf16.msra.mxu0 0
    %1935 = vmatprep.subr.bf16.mxu0 0
    %1936 = vmatpush1.bf16.msra.mxu0 0
    %1937 = vmatprep.subr.bf16.mxu0 0
    %1938 = vmatpush1.bf16.msra.mxu0 0
    %1939 = vmatprep.subr.bf16.mxu0 0
    %1940 = vmatpush1.bf16.msra.mxu0 0
    %1941 = vmatprep.subr.bf16.mxu0 0
    %1942 = vmatpush1.bf16.msra.mxu0 0
    %1943 = vmatprep.subr.bf16.mxu0 0
    %1944 = vmatpush1.bf16.msra.mxu0 0
    %1945 = vmatprep.subr.bf16.mxu0 0
    %1946 = vmatpush1.bf16.msra.mxu0 0
    %1947 = vmatprep.subr.bf16.mxu0 0
    %1948 = vmatpush1.bf16.msra.mxu0 0
    %1949 = vmatprep.subr.bf16.mxu0 0
    %1950 = vmatpush1.bf16.msra.mxu0 0
    %1951 = vmatprep.subr.bf16.mxu0 0
    %1952 = vmatpush1.bf16.msra.mxu0 0
    %1953 = vmatprep.subr.bf16.mxu0 0
    %1954 = vmatpush1.bf16.msra.mxu0 0
    %1955 = vmatprep.subr.bf16.mxu0 0
    %1956 = vmatpush1.bf16.msra.mxu0 0
    %1957 = vmatprep.subr.bf16.mxu0 0
    %1958 = vmatpush1.bf16.msra.mxu0 0
    %1959 = vmatprep.mubr.bf16.mxu0 0
    %1960 = vmatmul.mubr.bf16.gmra.mrb[0].mxu0 %v1859
    %v1961 = vpop.f32.mrb[0].mxu0
    %v1962 = vadd.f32 %v1808, %v1961
    %v1963 = vpop.f32.mrb[0].mxu0
    %v1964 = vadd.f32 %v1812, %v1963
    %v1965 = vpop.f32.mrb[0].mxu0
    %v1966 = vpop.f32.mrb[0].mxu0
    %1967 = vdwg.mxu0
    %1968 = vmatprep.subr.bf16.mxu0 %v1878
    %1969 = vmatpush1.bf16.msra.mxu0 %v1875
    %1970 = vmatprep.subr.bf16.mxu0 0
    %1971 = vmatpush1.bf16.msra.mxu0 0
    %1972 = vmatprep.subr.bf16.mxu0 0
    %1973 = vmatpush1.bf16.msra.mxu0 0
    %1974 = vmatprep.subr.bf16.mxu0 0
    %1975 = vmatpush1.bf16.msra.mxu0 0
    %1976 = vmatprep.subr.bf16.mxu0 0
    %1977 = vmatpush1.bf16.msra.mxu0 0
    %1978 = vmatprep.subr.bf16.mxu0 0
    %1979 = vmatpush1.bf16.msra.mxu0 0
    %1980 = vmatprep.subr.bf16.mxu0 0
    %1981 = vmatpush1.bf16.msra.mxu0 0
    %1982 = vmatprep.subr.bf16.mxu0 0
    %1983 = vmatpush1.bf16.msra.mxu0 0
    %1984 = vmatprep.subr.bf16.mxu0 0
    %1985 = vmatpush1.bf16.msra.mxu0 0
    %1986 = vmatprep.subr.bf16.mxu0 0
    %1987 = vmatpush1.bf16.msra.mxu0 0
    %1988 = vmatprep.subr.bf16.mxu0 0
    %1989 = vmatpush1.bf16.msra.mxu0 0
    %1990 = vmatprep.subr.bf16.mxu0 0
    %1991 = vmatpush1.bf16.msra.mxu0 0
    %1992 = vmatprep.subr.bf16.mxu0 0
    %1993 = vmatpush1.bf16.msra.mxu0 0
    %1994 = vmatprep.subr.bf16.mxu0 0
    %1995 = vmatpush1.bf16.msra.mxu0 0
    %1996 = vmatprep.subr.bf16.mxu0 0
    %1997 = vmatpush1.bf16.msra.mxu0 0
    %1998 = vmatprep.subr.bf16.mxu0 0
    %1999 = vmatpush1.bf16.msra.mxu0 0
    %2000 = vmatprep.mubr.bf16.mxu0 0
    %2001 = vmatmul.mubr.bf16.gmra.mrb[0].mxu0 %v1859
    %v2002 = vpop.f32.mrb[0].mxu0
    %v2003 = vadd.f32 %v1816, %v2002
    %v2004 = vpop.f32.mrb[0].mxu0
    %v2005 = vadd.f32 %v1820, %v2004
    %v2006 = vpop.f32.mrb[0].mxu0
    %v2007 = vpop.f32.mrb[0].mxu0
    %2008 = vdwg.mxu0
    %2009 = vmatprep.subr.bf16.mxu0 %v1884
    %2010 = vmatpush1.bf16.msra.mxu0 %v1881
    %2011 = vmatprep.subr.bf16.mxu0 0
    %2012 = vmatpush1.bf16.msra.mxu0 0
    %2013 = vmatprep.subr.bf16.mxu0 0
    %2014 = vmatpush1.bf16.msra.mxu0 0
    %2015 = vmatprep.subr.bf16.mxu0 0
    %2016 = vmatpush1.bf16.msra.mxu0 0
    %2017 = vmatprep.subr.bf16.mxu0 0
    %2018 = vmatpush1.bf16.msra.mxu0 0
    %2019 = vmatprep.subr.bf16.mxu0 0
    %2020 = vmatpush1.bf16.msra.mxu0 0
    %2021 = vmatprep.subr.bf16.mxu0 0
    %2022 = vmatpush1.bf16.msra.mxu0 0
    %2023 = vmatprep.subr.bf16.mxu0 0
    %2024 = vmatpush1.bf16.msra.mxu0 0
    %2025 = vmatprep.subr.bf16.mxu0 0
    %2026 = vmatpush1.bf16.msra.mxu0 0
    %2027 = vmatprep.subr.bf16.mxu0 0
    %2028 = vmatpush1.bf16.msra.mxu0 0
    %2029 = vmatprep.subr.bf16.mxu0 0
    %2030 = vmatpush1.bf16.msra.mxu0 0
    %2031 = vmatprep.subr.bf16.mxu0 0
    %2032 = vmatpush1.bf16.msra.mxu0 0
    %2033 = vmatprep.subr.bf16.mxu0 0
    %2034 = vmatpush1.bf16.msra.mxu0 0
    %2035 = vmatprep.subr.bf16.mxu0 0
    %2036 = vmatpush1.bf16.msra.mxu0 0
    %2037 = vmatprep.subr.bf16.mxu0 0
    %2038 = vmatpush1.bf16.msra.mxu0 0
    %2039 = vmatprep.subr.bf16.mxu0 0
    %2040 = vmatpush1.bf16.msra.mxu0 0
    %2041 = vmatprep.mubr.bf16.mxu0 0
    %2042 = vmatmul.mubr.bf16.gmra.mrb[0].mxu0 %v1859
    %v2043 = vpop.f32.mrb[0].mxu0
    %v2044 = vadd.f32 %v1824, %v2043
    %v2045 = vpop.f32.mrb[0].mxu0
    %v2046 = vadd.f32 %v1828, %v2045
    %v2047 = vpop.f32.mrb[0].mxu0
    %v2048 = vpop.f32.mrb[0].mxu0
    %2049 = vdwg.mxu0
    %v2050 = vpack.c.bf16 %v1921, %v1921
    %v2051 = vpack.c.bf16 %v1923, %v1923
    %v2052 = vpack.c.bf16 %v1962, %v1962
    %v2053 = vpack.c.bf16 %v1964, %v1964
    %v2054 = vpack.c.bf16 %v2003, %v2003
    %v2055 = vpack.c.bf16 %v2005, %v2005
    %v2056 = vpack.c.bf16 %v2044, %v2044
    %v2057 = vpack.c.bf16 %v2046, %v2046
    %v2066 = vcombine.low %v2050, %v2051
    %v2067 = vcombine.low %v2052, %v2053
    %v2068 = vcombine.low %v2054, %v2055
    %v2069 = vcombine.low %v2056, %v2057
    %v2071 = vunpack.c.l.s4 1966171168
    %v2072 = vunpack.c.0.s8 %v2071
    %v2073 = vlaneseq
    %v2074 = vshrl.u32 %v2073, 7
    %v2075 = vsub.s32 %v2072, %v2074
    %v2076 = vrot.slane %v2066, %v2075
    %v2078 = vunpack.c.l.s4 1966171168
    %v2079 = vunpack.c.0.s8 %v2078
    %v2080 = vlaneseq
    %v2081 = vshrl.u32 %v2080, 7
    %v2082 = vsub.s32 %v2079, %v2081
    %v2083 = vrot.slane %v2067, %v2082
    %v2085 = vunpack.c.l.s4 1966171168
    %v2086 = vunpack.c.0.s8 %v2085
    %v2087 = vlaneseq
    %v2088 = vshrl.u32 %v2087, 7
    %v2089 = vsub.s32 %v2086, %v2088
    %v2090 = vrot.slane %v2068, %v2089
    %v2092 = vunpack.c.l.s4 1966171168
    %v2093 = vunpack.c.0.s8 %v2092
    %v2094 = vlaneseq
    %v2095 = vshrl.u32 %v2094, 7
    %v2096 = vsub.s32 %v2093, %v2095
    %v2097 = vrot.slane %v2069, %v2096
    %v2098 = vcombine.low %v2076, %v2083
    %v2099 = vcombine.low %v2090, %v2097
    %v2101 = vunpack.c.l.s4 1966171168
    %v2102 = vunpack.c.0.s8 %v2101
    %v2103 = vlaneseq
    %v2104 = vshrl.u32 %v2103, 7
    %v2105 = vsub.s32 %v2102, %v2104
    %v2106 = vrot.slane %v2098, %v2105
    %v2108 = vunpack.c.l.s4 1966171168
    %v2109 = vunpack.c.0.s8 %v2108
    %v2110 = vlaneseq
    %v2111 = vshrl.u32 %v2110, 7
    %v2112 = vsub.s32 %v2109, %v2111
    %v2113 = vrot.slane %v2099, %v2112
    %v2114 = vcombine.low %v2106, %v2113
    %2116 = vst [vmem:[#allocation4] sm:$0xff] %v2114
    %v2117 = vsub.f32 %v1921, %v169
    %v2118 = vsub.f32 %v1923, %v177
    %v2119 = vsub.f32 %v1962, %v176
    %v2120 = vsub.f32 %v1964, %v178
    %v2121 = vsub.f32 %v2003, %v186
    %v2122 = vsub.f32 %v2005, %v194
    %v2123 = vsub.f32 %v2044, %v193
    %v2124 = vsub.f32 %v2046, %v195
    %v2125 = vmul.f32 %v2117, %v2117
    %v2126 = vmul.f32 %v2118, %v2118
    %v2127 = vmul.f32 %v2119, %v2119
    %v2128 = vmul.f32 %v2120, %v2120
    %v2129 = vmul.f32 %v2121, %v2121
    %v2130 = vmul.f32 %v2122, %v2122
    %v2131 = vmul.f32 %v2123, %v2123
    %v2132 = vmul.f32 %v2124, %v2124
    %vm2133 = vcmask 1041408
    %v2134 = vsel %vm2133, %v2125, 0.0
    %v2135 = vsel %vm2133, %v2126, 0.0
    %v2136 = vadd.f32 %v2134, %v2135
    %v2137 = vsel %vm2133, %v2127, 0.0
    %v2138 = vadd.f32 %v2136, %v2137
    %v2139 = vsel %vm2133, %v2128, 0.0
    %v2140 = vadd.f32 %v2138, %v2139
    %v2141 = vsel %vm2133, %v2129, 0.0
    %v2142 = vadd.f32 %v2140, %v2141
    %v2143 = vsel %vm2133, %v2130, 0.0
    %v2144 = vadd.f32 %v2142, %v2143
    %v2145 = vsel %vm2133, %v2131, 0.0
    %v2146 = vadd.f32 %v2144, %v2145
    %v2147 = vsel %vm2133, %v2132, 0.0
    %v2148 = vadd.f32 %v2146, %v2147
    %2149 = vadd.xlane.f32.xlu0 %v2148
    %v2150 = vpop.xlane.xlu0 %2149
    %vm2151 = vcmask 1024
    %v2152 = vsel %vm2151, %v2150, 0.0
    %2153 = vadd.xlane.f32.xlu0 %v2152
    %v2154 = vpop.xlane.xlu0 %2153
    %v2155 = vrot.slane %v2154, 4
    %v2156 = vadd.f32 %v2154, %v2155
    %v2157 = vrot.slane %v2156, 2
    %v2158 = vadd.f32 %v2156, %v2157
    %v2159 = vrot.slane %v2158, 1
    %v2160 = vadd.f32 %v2158, %v2159
    %s2161 = vtos %v2160
    %v2162 = vld [vmem:[%s16] sm:$0xff]
    %v2163 = vld [vmem:[%s16 + $0x8] sm:$0xff]
    %v2164 = vld [vmem:[%s16 + $0x10] sm:$0xff]
    %v2165 = vld [vmem:[%s16 + $0x18] sm:$0xff]
    %v2166 = vld [vmem:[%s17] sm:$0xff]
    %v2168 = vlaneseq
    %v2169 = vshrl.u32 %v2168, 7
    %v2170 = vsub.s32 0, %v2169
    %v2171 = vrot.slane %v2166, %v2170
    %v2172 = vlaneseq
    %v2173 = vshrl.u32 %v2172, 7
    %v2174 = vsub.s32 1, %v2173
    %v2175 = vrot.slane %v2166, %v2174
    %v2176 = vlaneseq
    %v2177 = vshrl.u32 %v2176, 7
    %v2178 = vsub.s32 2, %v2177
    %v2179 = vrot.slane %v2166, %v2178
    %v2180 = vlaneseq
    %v2181 = vshrl.u32 %v2180, 7
    %v2182 = vsub.s32 3, %v2181
    %v2183 = vrot.slane %v2166, %v2182
    %v2184 = vlaneseq
    %v2185 = vshrl.u32 %v2184, 7
    %v2186 = vsub.s32 4, %v2185
    %v2187 = vrot.slane %v2166, %v2186
    %v2188 = vlaneseq
    %v2189 = vshrl.u32 %v2188, 7
    %v2190 = vsub.s32 5, %v2189
    %v2191 = vrot.slane %v2166, %v2190
    %v2192 = vlaneseq
    %v2193 = vshrl.u32 %v2192, 7
    %v2194 = vsub.s32 6, %v2193
    %v2195 = vrot.slane %v2166, %v2194
    %v2196 = vlaneseq
    %v2197 = vshrl.u32 %v2196, 7
    %v2198 = vsub.s32 7, %v2197
    %v2199 = vrot.slane %v2166, %v2198
    %v2212 = vunpack.c.l.b16 %v2162
    %v2213 = vunpack.c.h.b16 %v2162
    %v2214 = vunpack.c.l.b16 %v2163
    %v2215 = vunpack.c.h.b16 %v2163
    %v2216 = vunpack.c.l.b16 %v2164
    %v2217 = vunpack.c.h.b16 %v2164
    %v2218 = vunpack.c.l.b16 %v2165
    %v2219 = vunpack.c.h.b16 %v2165
    %v2220 = vpack.c.b16 %v2212, %v2212
    %v2221 = vpack.c.b16 %v2213, %v2213
    %v2222 = vpack.c.b16 %v2214, %v2214
    %v2223 = vpack.c.b16 %v2215, %v2215
    %v2224 = vpack.c.b16 %v2216, %v2216
    %v2225 = vpack.c.b16 %v2217, %v2217
    %v2226 = vpack.c.b16 %v2218, %v2218
    %v2227 = vpack.c.b16 %v2219, %v2219
    %v2229 = vsel %vm1861, %v2220, 0
    %v2232 = vsel %vm1861, %v2221, 0
    %v2235 = vsel %vm1861, %v2222, 0
    %v2238 = vsel %vm1861, %v2223, 0
    %v2241 = vsel %vm1861, %v2224, 0
    %v2244 = vsel %vm1861, %v2225, 0
    %v2247 = vsel %vm1861, %v2226, 0
    %v2250 = vsel %vm1861, %v2227, 0
    %2252 = vmatprep.subr.bf16.mxu0 %v2232
    %2253 = vmatpush1.bf16.msra.mxu0 %v2229
    %2254 = vmatprep.subr.bf16.mxu0 0
    %2255 = vmatpush1.bf16.msra.mxu0 0
    %2256 = vmatprep.subr.bf16.mxu0 0
    %2257 = vmatpush1.bf16.msra.mxu0 0
    %2258 = vmatprep.subr.bf16.mxu0 0
    %2259 = vmatpush1.bf16.msra.mxu0 0
    %2260 = vmatprep.subr.bf16.mxu0 0
    %2261 = vmatpush1.bf16.msra.mxu0 0
    %2262 = vmatprep.subr.bf16.mxu0 0
    %2263 = vmatpush1.bf16.msra.mxu0 0
    %2264 = vmatprep.subr.bf16.mxu0 0
    %2265 = vmatpush1.bf16.msra.mxu0 0
    %2266 = vmatprep.subr.bf16.mxu0 0
    %2267 = vmatpush1.bf16.msra.mxu0 0
    %2268 = vmatprep.subr.bf16.mxu0 0
    %2269 = vmatpush1.bf16.msra.mxu0 0
    %2270 = vmatprep.subr.bf16.mxu0 0
    %2271 = vmatpush1.bf16.msra.mxu0 0
    %2272 = vmatprep.subr.bf16.mxu0 0
    %2273 = vmatpush1.bf16.msra.mxu0 0
    %2274 = vmatprep.subr.bf16.mxu0 0
    %2275 = vmatpush1.bf16.msra.mxu0 0
    %2276 = vmatprep.subr.bf16.mxu0 0
    %2277 = vmatpush1.bf16.msra.mxu0 0
    %2278 = vmatprep.subr.bf16.mxu0 0
    %2279 = vmatpush1.bf16.msra.mxu0 0
    %2280 = vmatprep.subr.bf16.mxu0 0
    %2281 = vmatpush1.bf16.msra.mxu0 0
    %2282 = vmatprep.subr.bf16.mxu0 0
    %2283 = vmatpush1.bf16.msra.mxu0 0
    %2284 = vmatprep.mubr.bf16.mxu0 0
    %2285 = vmatmul.mubr.bf16.gmra.mrb[0].mxu0 %v1859
    %v2286 = vpop.f32.mrb[0].mxu0
    %v2287 = vadd.f32 %v2171, %v2286
    %v2288 = vpop.f32.mrb[0].mxu0
    %v2289 = vadd.f32 %v2175, %v2288
    %v2290 = vpop.f32.mrb[0].mxu0
    %v2291 = vpop.f32.mrb[0].mxu0
    %2292 = vdwg.mxu0
    %2293 = vmatprep.subr.bf16.mxu0 %v2238
    %2294 = vmatpush1.bf16.msra.mxu0 %v2235
    %2295 = vmatprep.subr.bf16.mxu0 0
    %2296 = vmatpush1.bf16.msra.mxu0 0
    %2297 = vmatprep.subr.bf16.mxu0 0
    %2298 = vmatpush1.bf16.msra.mxu0 0
    %2299 = vmatprep.subr.bf16.mxu0 0
    %2300 = vmatpush1.bf16.msra.mxu0 0
    %2301 = vmatprep.subr.bf16.mxu0 0
    %2302 = vmatpush1.bf16.msra.mxu0 0
    %2303 = vmatprep.subr.bf16.mxu0 0
    %2304 = vmatpush1.bf16.msra.mxu0 0
    %2305 = vmatprep.subr.bf16.mxu0 0
    %2306 = vmatpush1.bf16.msra.mxu0 0
    %2307 = vmatprep.subr.bf16.mxu0 0
    %2308 = vmatpush1.bf16.msra.mxu0 0
    %2309 = vmatprep.subr.bf16.mxu0 0
    %2310 = vmatpush1.bf16.msra.mxu0 0
    %2311 = vmatprep.subr.bf16.mxu0 0
    %2312 = vmatpush1.bf16.msra.mxu0 0
    %2313 = vmatprep.subr.bf16.mxu0 0
    %2314 = vmatpush1.bf16.msra.mxu0 0
    %2315 = vmatprep.subr.bf16.mxu0 0
    %2316 = vmatpush1.bf16.msra.mxu0 0
    %2317 = vmatprep.subr.bf16.mxu0 0
    %2318 = vmatpush1.bf16.msra.mxu0 0
    %2319 = vmatprep.subr.bf16.mxu0 0
    %2320 = vmatpush1.bf16.msra.mxu0 0
    %2321 = vmatprep.subr.bf16.mxu0 0
    %2322 = vmatpush1.bf16.msra.mxu0 0
    %2323 = vmatprep.subr.bf16.mxu0 0
    %2324 = vmatpush1.bf16.msra.mxu0 0
    %2325 = vmatprep.mubr.bf16.mxu0 0
    %2326 = vmatmul.mubr.bf16.gmra.mrb[0].mxu0 %v1859
    %v2327 = vpop.f32.mrb[0].mxu0
    %v2328 = vadd.f32 %v2179, %v2327
    %v2329 = vpop.f32.mrb[0].mxu0
    %v2330 = vadd.f32 %v2183, %v2329
    %v2331 = vpop.f32.mrb[0].mxu0
    %v2332 = vpop.f32.mrb[0].mxu0
    %2333 = vdwg.mxu0
    %2334 = vmatprep.subr.bf16.mxu0 %v2244
    %2335 = vmatpush1.bf16.msra.mxu0 %v2241
    %2336 = vmatprep.subr.bf16.mxu0 0
    %2337 = vmatpush1.bf16.msra.mxu0 0
    %2338 = vmatprep.subr.bf16.mxu0 0
    %2339 = vmatpush1.bf16.msra.mxu0 0
    %2340 = vmatprep.subr.bf16.mxu0 0
    %2341 = vmatpush1.bf16.msra.mxu0 0
    %2342 = vmatprep.subr.bf16.mxu0 0
    %2343 = vmatpush1.bf16.msra.mxu0 0
    %2344 = vmatprep.subr.bf16.mxu0 0
    %2345 = vmatpush1.bf16.msra.mxu0 0
    %2346 = vmatprep.subr.bf16.mxu0 0
    %2347 = vmatpush1.bf16.msra.mxu0 0
    %2348 = vmatprep.subr.bf16.mxu0 0
    %2349 = vmatpush1.bf16.msra.mxu0 0
    %2350 = vmatprep.subr.bf16.mxu0 0
    %2351 = vmatpush1.bf16.msra.mxu0 0
    %2352 = vmatprep.subr.bf16.mxu0 0
    %2353 = vmatpush1.bf16.msra.mxu0 0
    %2354 = vmatprep.subr.bf16.mxu0 0
    %2355 = vmatpush1.bf16.msra.mxu0 0
    %2356 = vmatprep.subr.bf16.mxu0 0
    %2357 = vmatpush1.bf16.msra.mxu0 0
    %2358 = vmatprep.subr.bf16.mxu0 0
    %2359 = vmatpush1.bf16.msra.mxu0 0
    %2360 = vmatprep.subr.bf16.mxu0 0
    %2361 = vmatpush1.bf16.msra.mxu0 0
    %2362 = vmatprep.subr.bf16.mxu0 0
    %2363 = vmatpush1.bf16.msra.mxu0 0
    %2364 = vmatprep.subr.bf16.mxu0 0
    %2365 = vmatpush1.bf16.msra.mxu0 0
    %2366 = vmatprep.mubr.bf16.mxu0 0
    %2367 = vmatmul.mubr.bf16.gmra.mrb[0].mxu0 %v1859
    %v2368 = vpop.f32.mrb[0].mxu0
    %v2369 = vadd.f32 %v2187, %v2368
    %v2370 = vpop.f32.mrb[0].mxu0
    %v2371 = vadd.f32 %v2191, %v2370
    %v2372 = vpop.f32.mrb[0].mxu0
    %v2373 = vpop.f32.mrb[0].mxu0
    %2374 = vdwg.mxu0
    %2375 = vmatprep.subr.bf16.mxu0 %v2250
    %2376 = vmatpush1.bf16.msra.mxu0 %v2247
    %2377 = vmatprep.subr.bf16.mxu0 0
    %2378 = vmatpush1.bf16.msra.mxu0 0
    %2379 = vmatprep.subr.bf16.mxu0 0
    %2380 = vmatpush1.bf16.msra.mxu0 0
    %2381 = vmatprep.subr.bf16.mxu0 0
    %2382 = vmatpush1.bf16.msra.mxu0 0
    %2383 = vmatprep.subr.bf16.mxu0 0
    %2384 = vmatpush1.bf16.msra.mxu0 0
    %2385 = vmatprep.subr.bf16.mxu0 0
    %2386 = vmatpush1.bf16.msra.mxu0 0
    %2387 = vmatprep.subr.bf16.mxu0 0
    %2388 = vmatpush1.bf16.msra.mxu0 0
    %2389 = vmatprep.subr.bf16.mxu0 0
    %2390 = vmatpush1.bf16.msra.mxu0 0
    %2391 = vmatprep.subr.bf16.mxu0 0
    %2392 = vmatpush1.bf16.msra.mxu0 0
    %2393 = vmatprep.subr.bf16.mxu0 0
    %2394 = vmatpush1.bf16.msra.mxu0 0
    %2395 = vmatprep.subr.bf16.mxu0 0
    %2396 = vmatpush1.bf16.msra.mxu0 0
    %2397 = vmatprep.subr.bf16.mxu0 0
    %2398 = vmatpush1.bf16.msra.mxu0 0
    %2399 = vmatprep.subr.bf16.mxu0 0
    %2400 = vmatpush1.bf16.msra.mxu0 0
    %2401 = vmatprep.subr.bf16.mxu0 0
    %2402 = vmatpush1.bf16.msra.mxu0 0
    %2403 = vmatprep.subr.bf16.mxu0 0
    %2404 = vmatpush1.bf16.msra.mxu0 0
    %2405 = vmatprep.subr.bf16.mxu0 0
    %2406 = vmatpush1.bf16.msra.mxu0 0
    %2407 = vmatprep.mubr.bf16.mxu0 0
    %2408 = vmatmul.mubr.bf16.gmra.mrb[0].mxu0 %v1859
    %v2409 = vpop.f32.mrb[0].mxu0
    %v2410 = vadd.f32 %v2195, %v2409
    %v2411 = vpop.f32.mrb[0].mxu0
    %v2412 = vadd.f32 %v2199, %v2411
    %v2413 = vpop.f32.mrb[0].mxu0
    %v2414 = vpop.f32.mrb[0].mxu0
    %2415 = vdwg.mxu0
    %v2416 = vpack.c.bf16 %v2287, %v2287
    %v2417 = vpack.c.bf16 %v2289, %v2289
    %v2418 = vpack.c.bf16 %v2328, %v2328
    %v2419 = vpack.c.bf16 %v2330, %v2330
    %v2420 = vpack.c.bf16 %v2369, %v2369
    %v2421 = vpack.c.bf16 %v2371, %v2371
    %v2422 = vpack.c.bf16 %v2410, %v2410
    %v2423 = vpack.c.bf16 %v2412, %v2412
    %v2432 = vcombine.low %v2416, %v2417
    %v2433 = vcombine.low %v2418, %v2419
    %v2434 = vcombine.low %v2420, %v2421
    %v2435 = vcombine.low %v2422, %v2423
    %v2437 = vunpack.c.l.s4 1966171168
    %v2438 = vunpack.c.0.s8 %v2437
    %v2439 = vlaneseq
    %v2440 = vshrl.u32 %v2439, 7
    %v2441 = vsub.s32 %v2438, %v2440
    %v2442 = vrot.slane %v2432, %v2441
    %v2444 = vunpack.c.l.s4 1966171168
    %v2445 = vunpack.c.0.s8 %v2444
    %v2446 = vlaneseq
    %v2447 = vshrl.u32 %v2446, 7
    %v2448 = vsub.s32 %v2445, %v2447
    %v2449 = vrot.slane %v2433, %v2448
    %v2451 = vunpack.c.l.s4 1966171168
    %v2452 = vunpack.c.0.s8 %v2451
    %v2453 = vlaneseq
    %v2454 = vshrl.u32 %v2453, 7
    %v2455 = vsub.s32 %v2452, %v2454
    %v2456 = vrot.slane %v2434, %v2455
    %v2458 = vunpack.c.l.s4 1966171168
    %v2459 = vunpack.c.0.s8 %v2458
    %v2460 = vlaneseq
    %v2461 = vshrl.u32 %v2460, 7
    %v2462 = vsub.s32 %v2459, %v2461
    %v2463 = vrot.slane %v2435, %v2462
    %v2464 = vcombine.low %v2442, %v2449
    %v2465 = vcombine.low %v2456, %v2463
    %v2467 = vunpack.c.l.s4 1966171168
    %v2468 = vunpack.c.0.s8 %v2467
    %v2469 = vlaneseq
    %v2470 = vshrl.u32 %v2469, 7
    %v2471 = vsub.s32 %v2468, %v2470
    %v2472 = vrot.slane %v2464, %v2471
    %v2474 = vunpack.c.l.s4 1966171168
    %v2475 = vunpack.c.0.s8 %v2474
    %v2476 = vlaneseq
    %v2477 = vshrl.u32 %v2476, 7
    %v2478 = vsub.s32 %v2475, %v2477
    %v2479 = vrot.slane %v2465, %v2478
    %v2480 = vcombine.low %v2472, %v2479
    %2482 = vst [vmem:[#allocation6] sm:$0xff] %v2480
    %v2483 = vsub.f32 %v2287, %v349
    %v2484 = vsub.f32 %v2289, %v357
    %v2485 = vsub.f32 %v2328, %v356
    %v2486 = vsub.f32 %v2330, %v358
    %v2487 = vsub.f32 %v2369, %v366
    %v2488 = vsub.f32 %v2371, %v374
    %v2489 = vsub.f32 %v2410, %v373
    %v2490 = vsub.f32 %v2412, %v375
    %v2491 = vmul.f32 %v2483, %v2483
    %v2492 = vmul.f32 %v2484, %v2484
    %v2493 = vmul.f32 %v2485, %v2485
    %v2494 = vmul.f32 %v2486, %v2486
    %v2495 = vmul.f32 %v2487, %v2487
    %v2496 = vmul.f32 %v2488, %v2488
    %v2497 = vmul.f32 %v2489, %v2489
    %v2498 = vmul.f32 %v2490, %v2490
    %v2499 = vsel %vm2133, %v2491, 0.0
    %v2500 = vsel %vm2133, %v2492, 0.0
    %v2501 = vadd.f32 %v2499, %v2500
    %v2502 = vsel %vm2133, %v2493, 0.0
    %v2503 = vadd.f32 %v2501, %v2502
    %v2504 = vsel %vm2133, %v2494, 0.0
    %v2505 = vadd.f32 %v2503, %v2504
    %v2506 = vsel %vm2133, %v2495, 0.0
    %v2507 = vadd.f32 %v2505, %v2506
    %v2508 = vsel %vm2133, %v2496, 0.0
    %v2509 = vadd.f32 %v2507, %v2508
    %v2510 = vsel %vm2133, %v2497, 0.0
    %v2511 = vadd.f32 %v2509, %v2510
    %v2512 = vsel %vm2133, %v2498, 0.0
    %v2513 = vadd.f32 %v2511, %v2512
    %2514 = vadd.xlane.f32.xlu0 %v2513
    %v2515 = vpop.xlane.xlu0 %2514
    %v2516 = vsel %vm2151, %v2515, 0.0
    %2517 = vadd.xlane.f32.xlu0 %v2516
    %v2518 = vpop.xlane.xlu0 %2517
    %v2519 = vrot.slane %v2518, 4
    %v2520 = vadd.f32 %v2518, %v2519
    %v2521 = vrot.slane %v2520, 2
    %v2522 = vadd.f32 %v2520, %v2521
    %v2523 = vrot.slane %v2522, 1
    %v2524 = vadd.f32 %v2522, %v2523
    %s2525 = vtos %v2524
    %v2527 = vlaneseq
    %v2528 = vshrl.u32 %v2527, 7
    %v2529 = vsub.s32 0, %v2528
    %v2530 = vrot.slane %v144, %v2529
    %v2532 = vsub.f32 %v2530, %v1780
    %v2533 = vmul.f32 %v1784, %v1784
    %v2534 = vsub.f32 %v1699, %v141
    %v2535 = vmul.f32 %v2534, %v2534
    %v2536 = vadd.f32 %v2533, %v2535
    %v2537 = vmul.f32 %v146, 2.0
    %v2538 = vmul.f32 %v2537, %v146
    %v2540 = vlaneseq
    %v2541 = vshrl.u32 %v2540, 7
    %v2542 = vsub.s32 0, %v2541
    %v2543 = vrot.slane %v2538, %v2542
    %v2545 = vrcp.pop %v2543
    %v2546 = vmul.f32 %v2536, %v2545
    %v2547 = vadd.f32 %v2532, %v2546
    %v2548 = vsub.f32 %v2547, 0.5
    %v2549 = vsel %vm1788, %v2548, 0.0
    %2550 = vadd.xlane.f32.xlu0 %v2549
    %v2551 = vpop.xlane.xlu0 %2550
    %v2552 = vsel %vm2151, %v2551, 0.0
    %2553 = vadd.xlane.f32.xlu0 %v2552
    %v2554 = vpop.xlane.xlu0 %2553
    %v2555 = vrot.slane %v2554, 4
    %v2556 = vadd.f32 %v2554, %v2555
    %v2557 = vrot.slane %v2556, 2
    %v2558 = vadd.f32 %v2556, %v2557
    %v2559 = vrot.slane %v2558, 1
    %v2560 = vadd.f32 %v2558, %v2559
    %s2561 = vtos %v2560
    %v2562 = vlaneseq
    %v2563 = vshrl.u32 %v2562, 7
    %v2564 = vlaneseq
    %v2565 = vand.u32 %v2564, 127
    %vm2566 = vcmp.eq.s32.totalorder %v2563, 0
    %vm2567 = vcmp.eq.s32.totalorder %v2565, 0
    %vm2568 = vmand %vm2566, %vm2567
    %v2569 = vstv %s2161
    %v2570 = vsel %vm2568, %v2569, 0.0
    %vm2571 = vcmp.eq.s32.totalorder %v2565, 1
    %vm2572 = vmand %vm2566, %vm2571
    %v2573 = vstv %s2525
    %v2574 = vsel %vm2572, %v2573, %v2570
    %vm2575 = vcmp.eq.s32.totalorder %v2565, 2
    %vm2576 = vmand %vm2566, %vm2575
    %v2577 = vstv %s2561
    %v2578 = vsel %vm2576, %v2577, %v2574
    %2579 = vst [vmem:[#allocation7] sm:$0xff] %v2578
    // Predicated region
    $region74: #{tpu_custom_call.1} parent=1 // pred_check
      _
    $region75: #{tpu_custom_call.1} parent=1 // pred_check_branch
      %2581 = sbr.rel (0) target = $region77
    $region76: #{tpu_custom_call.1} parent=1 // pred_region
      %s2583 = ssub.s32 32, 32
      %2584 = vsyncadd [#allocation3], %s2583
      %s2586 = sshll.u32 [#allocation2], 4
      %s2587 = int_to_ptr.vmem [resolvable:$true] %s2586
      %2589 = dma.vmem_to_hbm [thread:$0]  %s2587, 32, %s18, [#allocation3]
    $region77: #{tpu_custom_call.1} parent=1 // pred_fallthru
      _
    // Predicated region
    $region78: #{tpu_custom_call.1} parent=1 // pred_check
      _
    $region79: #{tpu_custom_call.1} parent=1 // pred_check_branch
      %2591 = sbr.rel (0) target = $region81
    $region80: #{tpu_custom_call.1} parent=1 // pred_region
      %s2593 = ssub.s32 128, 128
      %2594 = vsyncadd [#allocation5], %s2593
      %s2596 = sshll.u32 [#allocation4], 4
      %s2597 = int_to_ptr.vmem [resolvable:$true] %s2596
      %2599 = dma.vmem_to_hbm [thread:$0]  %s2597, 128, %s19, [#allocation5]
    $region81: #{tpu_custom_call.1} parent=1 // pred_fallthru
      _
    // Predicated region
    $region82: #{tpu_custom_call.1} parent=1 // pred_check
      _
    $region83: #{tpu_custom_call.1} parent=1 // pred_check_branch
      %2601 = sbr.rel (0) target = $region85
    $region84: #{tpu_custom_call.1} parent=1 // pred_region
      %s2603 = ssub.s32 128, 128
      %2604 = vsyncadd [#allocation5], %s2603
      %s2606 = sshll.u32 [#allocation6], 4
      %s2607 = int_to_ptr.vmem [resolvable:$true] %s2606
      %2609 = dma.vmem_to_hbm [thread:$0]  %s2607, 128, %s20, [#allocation5]
    $region85: #{tpu_custom_call.1} parent=1 // pred_fallthru
      _
    // Predicated region
    $region86: #{tpu_custom_call.1} parent=1 // pred_check
      _
    $region87: #{tpu_custom_call.1} parent=1 // pred_check_branch
      %2611 = sbr.rel (0) target = $region89
    $region88: #{tpu_custom_call.1} parent=1 // pred_region
      %s2613 = ssub.s32 128, 128
      %2614 = vsyncadd [#allocation8], %s2613
      %s2616 = sshll.u32 [#allocation7], 4
      %s2617 = int_to_ptr.vmem [resolvable:$true] %s2616
      %2619 = dma.vmem_to_hbm [thread:$0]  %s2617, 128, %s21, [#allocation8]
    $region89: #{tpu_custom_call.1} parent=1 // pred_fallthru
      _
    // Predicated region
    $region90: #{tpu_custom_call.1} parent=1 // pred_check
      _
    $region91: #{tpu_custom_call.1} parent=1 // pred_check_branch
      %2621 = sbr.rel (0) target = $region93
    $region92: #{tpu_custom_call.1} parent=1 // pred_region
      %2622 = dma.done [#allocation3], 32
    $region93: #{tpu_custom_call.1} parent=1 // pred_fallthru
      _
    // Predicated region
    $region94: #{tpu_custom_call.1} parent=1 // pred_check
      _
    $region95: #{tpu_custom_call.1} parent=1 // pred_check_branch
      %2624 = sbr.rel (0) target = $region97
    $region96: #{tpu_custom_call.1} parent=1 // pred_region
      %2625 = dma.done [#allocation5], 128
    $region97: #{tpu_custom_call.1} parent=1 // pred_fallthru
      _
    // Predicated region
    $region98: #{tpu_custom_call.1} parent=1 // pred_check
      _
    $region99: #{tpu_custom_call.1} parent=1 // pred_check_branch
      %2627 = sbr.rel (0) target = $region101
    $region100: #{tpu_custom_call.1} parent=1 // pred_region
      %2628 = dma.done [#allocation5], 128
    $region101: #{tpu_custom_call.1} parent=1 // pred_fallthru
      _
    // Predicated region
    $region102: #{tpu_custom_call.1} parent=1 // pred_check
      _
    $region103: #{tpu_custom_call.1} parent=1 // pred_check_branch
      %2630 = sbr.rel (0) target = $region105
    $region104: #{tpu_custom_call.1} parent=1 // pred_region
      %2631 = dma.done [#allocation8], 128
    $region105: #{tpu_custom_call.1} parent=1 // pred_fallthru
      _
    %2632 = vsyncpa [#allocation3], 1
    %2633 = vsyncpa [#allocation5], 1
    %2634 = vsyncpa [#allocation8], 1

// kernel: tpu_custom_call.1
$region0: #{tpu_custom_call.1}
  #allocation0 [shape = 'u32[]', space=smem, size = 0x4, offset = 0x4, fixed_abs, tag = 'smem constant byte address 0x4 - core index']
  #allocation1 [shape = 'u32[144,128]{1,0:T(1,128)}', space=vmem, size = 0x12000, scoped, tag = 'internal scratch']
  %s0 = inlined_call_operand.vmem [shape: f32[2,1024], index: 0, kind: input, shape index: {}]
  %s1 = inlined_call_operand.vmem [shape: f32[2,1024], index: 1, kind: input, shape index: {}]
  %s2 = inlined_call_operand.vmem [shape: f32[2,16], index: 2, kind: input, shape index: {}]
  %s3 = inlined_call_operand.vmem [shape: f32[2,8], index: 3, kind: input, shape index: {}]
  %s4 = inlined_call_operand.vmem [shape: f32[2,8], index: 4, kind: input, shape index: {}]
  %s5 = inlined_call_operand.vmem [shape: f32[16,8], index: 5, kind: input, shape index: {}]
  %s6 = inlined_call_operand.vmem [shape: f32[1,8], index: 6, kind: input, shape index: {}]
  %s7 = inlined_call_operand.vmem [shape: bf16[1024,32], index: 7, kind: input, shape index: {}]
  %s8 = inlined_call_operand.vmem [shape: bf16[1024,32], index: 8, kind: input, shape index: {}]
  %s9 = inlined_call_operand.vmem [shape: f32[1,32], index: 9, kind: input, shape index: {}]
  %s10 = inlined_call_operand.vmem [shape: f32[32,8], index: 10, kind: input, shape index: {}]
  %s11 = inlined_call_operand.vmem [shape: f32[1,8], index: 11, kind: input, shape index: {}]
  %s12 = inlined_call_operand.vmem [shape: f32[32,8], index: 12, kind: input, shape index: {}]
  %s13 = inlined_call_operand.vmem [shape: f32[1,8], index: 13, kind: input, shape index: {}]
  %s14 = inlined_call_operand.vmem [shape: bf16[8,1024], index: 14, kind: input, shape index: {}]
  %s15 = inlined_call_operand.vmem [shape: f32[1,1024], index: 15, kind: input, shape index: {}]
  %s16 = inlined_call_operand.vmem [shape: bf16[8,1024], index: 16, kind: input, shape index: {}]
  %s17 = inlined_call_operand.vmem [shape: f32[1,1024], index: 17, kind: input, shape index: {}]
  %s18 = inlined_call_operand.hbm [shape: f32[2,8], index: 18, kind: output, shape index: {0}]
  %s19 = inlined_call_operand.hbm [shape: bf16[2,1024], index: 19, kind: output, shape index: {1}]
  %s20 = inlined_call_operand.hbm [shape: bf16[2,1024], index: 20, kind: output, shape index: {2}]
  %s21 = inlined_call_operand.hbm [shape: f32[8,128], index: 21, kind: output, shape index: {3}]
  %22 = xla_tuple %s18, %s19, %s20, %s21
  %s23 = sld [smem:[#allocation0]]
  $region106: #{tpu_custom_call.1} parent=0
    _
  %s25 = ssub.s32 1, %s23
  %s26 = scalar_select 0, %s25, %s23
  $region1: #{tpu_custom_call.1} parent=0
    #allocation2 [shape = 'u8[1024]{0}', space=vmem, size = 0x400, scoped, tag = 'output window, operand 0, single buffered']
    #allocation3 [shape = 's32[1]{0}', space=sflag, size = 0x4, scoped, tag = 'scoped memory for tpu_custom_call.1']
    #allocation4 [shape = 'u8[4096]{0}', space=vmem, size = 0x1000, scoped, tag = 'output window, operand 1, single buffered']
    #allocation5 [shape = 's32[1]{0}', space=sflag, size = 0x4, scoped, tag = 'scoped memory for tpu_custom_call.1']
    #allocation6 [shape = 'u8[4096]{0}', space=vmem, size = 0x1000, scoped, tag = 'output window, operand 2, single buffered']
    #allocation7 [shape = 'u8[4096]{0}', space=vmem, size = 0x1000, scoped, tag = 'output window, operand 3, single buffered']
    #allocation8 [shape = 's32[1]{0}', space=sflag, size = 0x4, scoped, tag = 'scoped memory for tpu_custom_call.1']
    %27 = vsyncpa [#allocation3], 0
    %28 = vsyncpa [#allocation5], 0
    %29 = vsyncpa [#allocation8], 0
    // Predicated region
    $region2: #{tpu_custom_call.1} parent=1 // pred_check
      _
    $region3: #{tpu_custom_call.1} parent=1 // pred_check_branch
      %31 = sbr.rel (0) target = $region5
    $region4: #{tpu_custom_call.1} parent=1 // pred_region
      _
    $region5: #{tpu_custom_call.1} parent=1 // pred_fallthru
      _
    // Predicated region
    $region6: #{tpu_custom_call.1} parent=1 // pred_check
      _
    $region7: #{tpu_custom_call.1} parent=1 // pred_check_branch
      %33 = sbr.rel (0) target = $region9
    $region8: #{tpu_custom_call.1} parent=1 // pred_region
      _
    $region9: #{tpu_custom_call.1} parent=1 // pred_fallthru
      _
    // Predicated region
    $region10: #{tpu_custom_call.1} parent=1 // pred_check
      _
    $region11: #{tpu_custom_call.1} parent=1 // pred_check_branch
      %35 = sbr.rel (0) target = $region13
    $region12: #{tpu_custom_call.1} parent=1 // pred_region
      _
    $region13: #{tpu_custom_call.1} parent=1 // pred_fallthru
      _
    // Predicated region
    $region14: #{tpu_custom_call.1} parent=1 // pred_check
      _
    $region15: #{tpu_custom_call.1} parent=1 // pred_check_branch
      %37 = sbr.rel (0) target = $region17
    $region16: #{tpu_custom_call.1} parent=1 // pred_region
      _
    $region17: #{tpu_custom_call.1} parent=1 // pred_fallthru
      _
    // Predicated region
    $region18: #{tpu_custom_call.1} parent=1 // pred_check
      _
    $region19: #{tpu_custom_call.1} parent=1 // pred_check_branch
      %39 = sbr.rel (0) target = $region21
    $region20: #{tpu_custom_call.1} parent=1 // pred_region
      _
    $region21: #{tpu_custom_call.1} parent=1 // pred_fallthru
      _
    // Predicated region
    $region22: #{tpu_custom_call.1} parent=1 // pred_check
      _
    $region23: #{tpu_custom_call.1} parent=1 // pred_check_branch
      %41 = sbr.rel (0) target = $region25
    $region24: #{tpu_custom_call.1} parent=1 // pred_region
      _
    $region25: #{tpu_custom_call.1} parent=1 // pred_fallthru
      _
    // Predicated region
    $region26: #{tpu_custom_call.1} parent=1 // pred_check
      _
    $region27: #{tpu_custom_call.1} parent=1 // pred_check_branch
      %43 = sbr.rel (0) target = $region29
    $region28: #{tpu_custom_call.1} parent=1 // pred_region
      _
    $region29: #{tpu_custom_call.1} parent=1 // pred_fallthru
      _
    // Predicated region
    $region30: #{tpu_custom_call.1} parent=1 // pred_check
      _
    $region31: #{tpu_custom_call.1} parent=1 // pred_check_branch
      %45 = sbr.rel (0) target = $region33
    $region32: #{tpu_custom_call.1} parent=1 // pred_region
      _
    $region33: #{tpu_custom_call.1} parent=1 // pred_fallthru
      _
    // Predicated region
    $region34: #{tpu_custom_call.1} parent=1 // pred_check
      _
    $region35: #{tpu_custom_call.1} parent=1 // pred_check_branch
      %47 = sbr.rel (0) target = $region37
    $region36: #{tpu_custom_call.1} parent=1 // pred_region
      _
    $region37: #{tpu_custom_call.1} parent=1 // pred_fallthru
      _
    // Predicated region
    $region38: #{tpu_custom_call.1} parent=1 // pred_check
      _
    $region39: #{tpu_custom_call.1} parent=1 // pred_check_branch
      %49 = sbr.rel (0) target = $region41
    $region40: #{tpu_custom_call.1} parent=1 // pred_region
      _
    $region41: #{tpu_custom_call.1} parent=1 // pred_fallthru
      _
    // Predicated region
    $region42: #{tpu_custom_call.1} parent=1 // pred_check
      _
    $region43: #{tpu_custom_call.1} parent=1 // pred_check_branch
      %51 = sbr.rel (0) target = $region45
    $region44: #{tpu_custom_call.1} parent=1 // pred_region
      _
    $region45: #{tpu_custom_call.1} parent=1 // pred_fallthru
      _
    // Predicated region
    $region46: #{tpu_custom_call.1} parent=1 // pred_check
      _
    $region47: #{tpu_custom_call.1} parent=1 // pred_check_branch
      %53 = sbr.rel (0) target = $region49
    $region48: #{tpu_custom_call.1} parent=1 // pred_region
      _
    $region49: #{tpu_custom_call.1} parent=1 // pred_fallthru
      _
    // Predicated region
    $region50: #{tpu_custom_call.1} parent=1 // pred_check
      _
    $region51: #{tpu_custom_call.1} parent=1 // pred_check_branch
      %55 = sbr.rel (0) target = $region53
    $region52: #{tpu_custom_call.1} parent=1 // pred_region
      _
    $region53: #{tpu_custom_call.1} parent=1 // pred_fallthru
      _
    // Predicated region
    $region54: #{tpu_custom_call.1} parent=1 // pred_check
      _
    $region55: #{tpu_custom_call.1} parent=1 // pred_check_branch
      %57 = sbr.rel (0) target = $region57
    $region56: #{tpu_custom_call.1} parent=1 // pred_region
      _
    $region57: #{tpu_custom_call.1} parent=1 // pred_fallthru
      _
    // Predicated region
    $region58: #{tpu_custom_call.1} parent=1 // pred_check
      _
    $region59: #{tpu_custom_call.1} parent=1 // pred_check_branch
      %59 = sbr.rel (0) target = $region61
    $region60: #{tpu_custom_call.1} parent=1 // pred_region
      _
    $region61: #{tpu_custom_call.1} parent=1 // pred_fallthru
      _
    // Predicated region
    $region62: #{tpu_custom_call.1} parent=1 // pred_check
      _
    $region63: #{tpu_custom_call.1} parent=1 // pred_check_branch
      %61 = sbr.rel (0) target = $region65
    $region64: #{tpu_custom_call.1} parent=1 // pred_region
      _
    $region65: #{tpu_custom_call.1} parent=1 // pred_fallthru
      _
    // Predicated region
    $region66: #{tpu_custom_call.1} parent=1 // pred_check
      _
    $region67: #{tpu_custom_call.1} parent=1 // pred_check_branch
      %63 = sbr.rel (0) target = $region69
    $region68: #{tpu_custom_call.1} parent=1 // pred_region
      _
    $region69: #{tpu_custom_call.1} parent=1 // pred_fallthru
      _
    // Predicated region
    $region70: #{tpu_custom_call.1} parent=1 // pred_check
      _
    $region71: #{tpu_custom_call.1} parent=1 // pred_check_branch
      %65 = sbr.rel (0) target = $region73
    $region72: #{tpu_custom_call.1} parent=1 // pred_region
      _
    $region73: #{tpu_custom_call.1} parent=1 // pred_fallthru
      _
    %v67 = vld [vmem:[%s2] sm:$0x3]
    %v68 = vld [vmem:[%s5] sm:$0xff]
    %v69 = vld [vmem:[%s5 + $0x8] sm:$0xff]
    %vm70 = vcmask 130048
    %v72 = vsel %vm70, %v67, 0
    %74 = vmatprep.subr.mxu0 0.0
    %75 = vmatpush1.msra.mxu0 %v68
    %76 = vmatprep.subr.mxu0 0.0
    %77 = vmatpush1.msra.mxu0 %v69
    %78 = vmatprep.subr.mxu0 0.0
    %79 = vmatpush1.msra.mxu0 0.0
    %80 = vmatprep.subr.mxu0 0.0
    %81 = vmatpush1.msra.mxu0 0.0
    %82 = vmatprep.subr.mxu0 0.0
    %83 = vmatpush1.msra.mxu0 0.0
    %84 = vmatprep.subr.mxu0 0.0
    %85 = vmatpush1.msra.mxu0 0.0
    %86 = vmatprep.subr.mxu0 0.0
    %87 = vmatpush1.msra.mxu0 0.0
    %88 = vmatprep.subr.mxu0 0.0
    %89 = vmatpush1.msra.mxu0 0.0
    %90 = vmatprep.subr.mxu0 0.0
    %91 = vmatpush1.msra.mxu0 0.0
    %92 = vmatprep.subr.mxu0 0.0
    %93 = vmatpush1.msra.mxu0 0.0
    %94 = vmatprep.subr.mxu0 0.0
    %95 = vmatpush1.msra.mxu0 0.0
    %96 = vmatprep.subr.mxu0 0.0
    %97 = vmatpush1.msra.mxu0 0.0
    %98 = vmatprep.subr.mxu0 0.0
    %99 = vmatpush1.msra.mxu0 0.0
    %100 = vmatprep.subr.mxu0 0.0
    %101 = vmatpush1.msra.mxu0 0.0
    %102 = vmatprep.subr.mxu0 0.0
    %103 = vmatpush1.msra.mxu0 0.0
    %104 = vmatprep.subr.mxu0 0.0
    %105 = vmatpush1.msra.mxu0 0.0
    %106 = vmatprep.subr.mxu0 0.0
    %107 = vmatpush1.msra.mxu0 0.0
    %108 = vmatprep.subr.mxu0 0.0
    %109 = vmatpush1.msra.mxu0 0.0
    %110 = vmatprep.subr.mxu0 0.0
    %111 = vmatpush1.msra.mxu0 0.0
    %112 = vmatprep.subr.mxu0 0.0
    %113 = vmatpush1.msra.mxu0 0.0
    %114 = vmatprep.subr.mxu0 0.0
    %115 = vmatpush1.msra.mxu0 0.0
    %116 = vmatprep.subr.mxu0 0.0
    %117 = vmatpush1.msra.mxu0 0.0
    %118 = vmatprep.subr.mxu0 0.0
    %119 = vmatpush1.msra.mxu0 0.0
    %120 = vmatprep.subr.mxu0 0.0
    %121 = vmatpush1.msra.mxu0 0.0
    %122 = vmatprep.subr.mxu0 0.0
    %123 = vmatpush1.msra.mxu0 0.0
    %124 = vmatprep.subr.mxu0 0.0
    %125 = vmatpush1.msra.mxu0 0.0
    %126 = vmatprep.subr.mxu0 0.0
    %127 = vmatpush1.msra.mxu0 0.0
    %128 = vmatprep.subr.mxu0 0.0
    %129 = vmatpush1.msra.mxu0 0.0
    %130 = vmatprep.subr.mxu0 0.0
    %131 = vmatpush1.msra.mxu0 0.0
    %132 = vmatprep.subr.mxu0 0.0
    %133 = vmatpush1.msra.mxu0 0.0
    %134 = vmatprep.subr.mxu0 0.0
    %135 = vmatpush1.msra.mxu0 0.0
    %136 = vmatprep.subr.mxu0 0.0
    %137 = vmatpush1.msra.mxu0 0.0
    %138 = vmatprep.mubr.f32.mxu0 0.0
    %139 = vmatmul.mubr.f32.gmra.mrb[0].mxu0 %v72
    %v140 = vpop.f32.mrb[0].mxu0
    %v141 = vadd.f32 0.0, %v140
    %v142 = vpop.f32.mrb[0].mxu0
    %143 = vdwg.mxu0
    %v144 = vld [vmem:[%s6] sm:$0x1]
    %v145 = vmul.f32 %v144, 1.442695
    %v146 = vpow.pop %v145
    %v147 = vld [vmem:[%s3] sm:$0x3]
    %v149 = vlaneseq
    %v150 = vshrl.u32 %v149, 7
    %v151 = vsub.s32 0, %v150
    %v152 = vrot.slane %v146, %v151
    %v154 = vmul.f32 %v152, %v147
    %v155 = vadd.f32 %v141, %v154
    %v156 = vld [vmem:[%s0] sm:$0xff]
    %v157 = vld [vmem:[%s0 + $0x8] sm:$0xff]
    %v158 = vld [vmem:[%s1] sm:$0xff]
    %v159 = vld [vmem:[%s1 + $0x8] sm:$0xff]
    %v162 = vcombine.high %v156, %v156
    %v164 = vunpack.c.l.s4 1983009808
    %v165 = vunpack.c.0.s8 %v164
    %v166 = vlaneseq
    %v167 = vshrl.u32 %v166, 7
    %v168 = vsub.s32 %v165, %v167
    %v169 = vrot.slane %v156, %v168
    %v171 = vunpack.c.l.s4 1983009808
    %v172 = vunpack.c.0.s8 %v171
    %v173 = vlaneseq
    %v174 = vshrl.u32 %v173, 7
    %v175 = vsub.s32 %v172, %v174
    %v176 = vrot.slane %v162, %v175
    %v177 = vcombine.high %v169, %v169
    %v178 = vcombine.high %v176, %v176
    %v179 = vcombine.high %v157, %v157
    %v181 = vunpack.c.l.s4 1983009808
    %v182 = vunpack.c.0.s8 %v181
    %v183 = vlaneseq
    %v184 = vshrl.u32 %v183, 7
    %v185 = vsub.s32 %v182, %v184
    %v186 = vrot.slane %v157, %v185
    %v188 = vunpack.c.l.s4 1983009808
    %v189 = vunpack.c.0.s8 %v188
    %v190 = vlaneseq
    %v191 = vshrl.u32 %v190, 7
    %v192 = vsub.s32 %v189, %v191
    %v193 = vrot.slane %v179, %v192
    %v194 = vcombine.high %v186, %v186
    %v195 = vcombine.high %v193, %v193
    %v204 = vpack.c.bf16 %v169, %v169
    %v205 = vpack.c.bf16 %v177, %v177
    %v206 = vpack.c.bf16 %v176, %v176
    %v207 = vpack.c.bf16 %v178, %v178
    %v208 = vpack.c.bf16 %v186, %v186
    %v209 = vpack.c.bf16 %v194, %v194
    %v210 = vpack.c.bf16 %v193, %v193
    %v211 = vpack.c.bf16 %v195, %v195
    %v212 = vld [vmem:[%s7] sm:$0xf]
    %v213 = vld [vmem:[%s7 + $0x4] sm:$0xf]
    %v214 = vld [vmem:[%s7 + $0x8] sm:$0xf]
    %v215 = vld [vmem:[%s7 + $0xc] sm:$0xf]
    %v216 = vld [vmem:[%s7 + $0x10] sm:$0xf]
    %v217 = vld [vmem:[%s7 + $0x14] sm:$0xf]
    %v218 = vld [vmem:[%s7 + $0x18] sm:$0xf]
    %v219 = vld [vmem:[%s7 + $0x1c] sm:$0xf]
    %v220 = vld [vmem:[%s7 + $0x20] sm:$0xf]
    %v221 = vld [vmem:[%s7 + $0x24] sm:$0xf]
    %v222 = vld [vmem:[%s7 + $0x28] sm:$0xf]
    %v223 = vld [vmem:[%s7 + $0x2c] sm:$0xf]
    %v224 = vld [vmem:[%s7 + $0x30] sm:$0xf]
    %v225 = vld [vmem:[%s7 + $0x34] sm:$0xf]
    %v226 = vld [vmem:[%s7 + $0x38] sm:$0xf]
    %v227 = vld [vmem:[%s7 + $0x3c] sm:$0xf]
    %v228 = vld [vmem:[%s7 + $0x40] sm:$0xf]
    %v229 = vld [vmem:[%s7 + $0x44] sm:$0xf]
    %v230 = vld [vmem:[%s7 + $0x48] sm:$0xf]
    %v231 = vld [vmem:[%s7 + $0x4c] sm:$0xf]
    %v232 = vld [vmem:[%s7 + $0x50] sm:$0xf]
    %v233 = vld [vmem:[%s7 + $0x54] sm:$0xf]
    %v234 = vld [vmem:[%s7 + $0x58] sm:$0xf]
    %v235 = vld [vmem:[%s7 + $0x5c] sm:$0xf]
    %v236 = vld [vmem:[%s7 + $0x60] sm:$0xf]
    %v237 = vld [vmem:[%s7 + $0x64] sm:$0xf]
    %v238 = vld [vmem:[%s7 + $0x68] sm:$0xf]
    %v239 = vld [vmem:[%s7 + $0x6c] sm:$0xf]
    %v240 = vld [vmem:[%s7 + $0x70] sm:$0xf]
    %v241 = vld [vmem:[%s7 + $0x74] sm:$0xf]
    %v242 = vld [vmem:[%s7 + $0x78] sm:$0xf]
    %v243 = vld [vmem:[%s7 + $0x7c] sm:$0xf]
    %v244 = vld [vmem:[%s7 + $0x80] sm:$0xf]
    %v245 = vld [vmem:[%s7 + $0x84] sm:$0xf]
    %v246 = vld [vmem:[%s7 + $0x88] sm:$0xf]
    %v247 = vld [vmem:[%s7 + $0x8c] sm:$0xf]
    %v248 = vld [vmem:[%s7 + $0x90] sm:$0xf]
    %v249 = vld [vmem:[%s7 + $0x94] sm:$0xf]
    %v250 = vld [vmem:[%s7 + $0x98] sm:$0xf]
    %v251 = vld [vmem:[%s7 + $0x9c] sm:$0xf]
    %v252 = vld [vmem:[%s7 + $0xa0] sm:$0xf]
    %v253 = vld [vmem:[%s7 + $0xa4] sm:$0xf]
    %v254 = vld [vmem:[%s7 + $0xa8] sm:$0xf]
    %v255 = vld [vmem:[%s7 + $0xac] sm:$0xf]
    %v256 = vld [vmem:[%s7 + $0xb0] sm:$0xf]
    %v257 = vld [vmem:[%s7 + $0xb4] sm:$0xf]
    %v258 = vld [vmem:[%s7 + $0xb8] sm:$0xf]
    %v259 = vld [vmem:[%s7 + $0xbc] sm:$0xf]
    %v260 = vld [vmem:[%s7 + $0xc0] sm:$0xf]
    %v261 = vld [vmem:[%s7 + $0xc4] sm:$0xf]
    %v262 = vld [vmem:[%s7 + $0xc8] sm:$0xf]
    %v263 = vld [vmem:[%s7 + $0xcc] sm:$0xf]
    %v264 = vld [vmem:[%s7 + $0xd0] sm:$0xf]
    %v265 = vld [vmem:[%s7 + $0xd4] sm:$0xf]
    %v266 = vld [vmem:[%s7 + $0xd8] sm:$0xf]
    %v267 = vld [vmem:[%s7 + $0xdc] sm:$0xf]
    %v268 = vld [vmem:[%s7 + $0xe0] sm:$0xf]
    %v269 = vld [vmem:[%s7 + $0xe4] sm:$0xf]
    %v270 = vld [vmem:[%s7 + $0xe8] sm:$0xf]
    %v271 = vld [vmem:[%s7 + $0xec] sm:$0xf]
    %v272 = vld [vmem:[%s7 + $0xf0] sm:$0xf]
    %v273 = vld [vmem:[%s7 + $0xf4] sm:$0xf]
    %v274 = vld [vmem:[%s7 + $0xf8] sm:$0xf]
    %v275 = vld [vmem:[%s7 + $0xfc] sm:$0xf]
    %v276 = vld [vmem:[%s7 + $0x100] sm:$0xf]
    %v277 = vld [vmem:[%s7 + $0x104] sm:$0xf]
    %v278 = vld [vmem:[%s7 + $0x108] sm:$0xf]
    %v279 = vld [vmem:[%s7 + $0x10c] sm:$0xf]
    %v280 = vld [vmem:[%s7 + $0x110] sm:$0xf]
    %v281 = vld [vmem:[%s7 + $0x114] sm:$0xf]
    %v282 = vld [vmem:[%s7 + $0x118] sm:$0xf]
    %v283 = vld [vmem:[%s7 + $0x11c] sm:$0xf]
    %v284 = vld [vmem:[%s7 + $0x120] sm:$0xf]
    %v285 = vld [vmem:[%s7 + $0x124] sm:$0xf]
    %v286 = vld [vmem:[%s7 + $0x128] sm:$0xf]
    %v287 = vld [vmem:[%s7 + $0x12c] sm:$0xf]
    %v288 = vld [vmem:[%s7 + $0x130] sm:$0xf]
    %v289 = vld [vmem:[%s7 + $0x134] sm:$0xf]
    %v290 = vld [vmem:[%s7 + $0x138] sm:$0xf]
    %v291 = vld [vmem:[%s7 + $0x13c] sm:$0xf]
    %v292 = vld [vmem:[%s7 + $0x140] sm:$0xf]
    %v293 = vld [vmem:[%s7 + $0x144] sm:$0xf]
    %v294 = vld [vmem:[%s7 + $0x148] sm:$0xf]
    %v295 = vld [vmem:[%s7 + $0x14c] sm:$0xf]
    %v296 = vld [vmem:[%s7 + $0x150] sm:$0xf]
    %v297 = vld [vmem:[%s7 + $0x154] sm:$0xf]
    %v298 = vld [vmem:[%s7 + $0x158] sm:$0xf]
    %v299 = vld [vmem:[%s7 + $0x15c] sm:$0xf]
    %v300 = vld [vmem:[%s7 + $0x160] sm:$0xf]
    %v301 = vld [vmem:[%s7 + $0x164] sm:$0xf]
    %v302 = vld [vmem:[%s7 + $0x168] sm:$0xf]
    %v303 = vld [vmem:[%s7 + $0x16c] sm:$0xf]
    %v304 = vld [vmem:[%s7 + $0x170] sm:$0xf]
    %v305 = vld [vmem:[%s7 + $0x174] sm:$0xf]
    %v306 = vld [vmem:[%s7 + $0x178] sm:$0xf]
    %v307 = vld [vmem:[%s7 + $0x17c] sm:$0xf]
    %v308 = vld [vmem:[%s7 + $0x180] sm:$0xf]
    %v309 = vld [vmem:[%s7 + $0x184] sm:$0xf]
    %v310 = vld [vmem:[%s7 + $0x188] sm:$0xf]
    %v311 = vld [vmem:[%s7 + $0x18c] sm:$0xf]
    %v312 = vld [vmem:[%s7 + $0x190] sm:$0xf]
    %v313 = vld [vmem:[%s7 + $0x194] sm:$0xf]
    %v314 = vld [vmem:[%s7 + $0x198] sm:$0xf]
    %v315 = vld [vmem:[%s7 + $0x19c] sm:$0xf]
    %v316 = vld [vmem:[%s7 + $0x1a0] sm:$0xf]
    %v317 = vld [vmem:[%s7 + $0x1a4] sm:$0xf]
    %v318 = vld [vmem:[%s7 + $0x1a8] sm:$0xf]
    %v319 = vld [vmem:[%s7 + $0x1ac] sm:$0xf]
    %v320 = vld [vmem:[%s7 + $0x1b0] sm:$0xf]
    %v321 = vld [vmem:[%s7 + $0x1b4] sm:$0xf]
    %v322 = vld [vmem:[%s7 + $0x1b8] sm:$0xf]
    %v323 = vld [vmem:[%s7 + $0x1bc] sm:$0xf]
    %v324 = vld [vmem:[%s7 + $0x1c0] sm:$0xf]
    %v325 = vld [vmem:[%s7 + $0x1c4] sm:$0xf]
    %v326 = vld [vmem:[%s7 + $0x1c8] sm:$0xf]
    %v327 = vld [vmem:[%s7 + $0x1cc] sm:$0xf]
    %v328 = vld [vmem:[%s7 + $0x1d0] sm:$0xf]
    %v329 = vld [vmem:[%s7 + $0x1d4] sm:$0xf]
    %v330 = vld [vmem:[%s7 + $0x1d8] sm:$0xf]
    %v331 = vld [vmem:[%s7 + $0x1dc] sm:$0xf]
    %v332 = vld [vmem:[%s7 + $0x1e0] sm:$0xf]
    %v333 = vld [vmem:[%s7 + $0x1e4] sm:$0xf]
    %v334 = vld [vmem:[%s7 + $0x1e8] sm:$0xf]
    %v335 = vld [vmem:[%s7 + $0x1ec] sm:$0xf]
    %v336 = vld [vmem:[%s7 + $0x1f0] sm:$0xf]
    %v337 = vld [vmem:[%s7 + $0x1f4] sm:$0xf]
    %v338 = vld [vmem:[%s7 + $0x1f8] sm:$0xf]
    %v339 = vld [vmem:[%s7 + $0x1fc] sm:$0xf]
    %v342 = vcombine.high %v158, %v158
    %v344 = vunpack.c.l.s4 1983009808
    %v345 = vunpack.c.0.s8 %v344
    %v346 = vlaneseq
    %v347 = vshrl.u32 %v346, 7
    %v348 = vsub.s32 %v345, %v347
    %v349 = vrot.slane %v158, %v348
    %v351 = vunpack.c.l.s4 1983009808
    %v352 = vunpack.c.0.s8 %v351
    %v353 = vlaneseq
    %v354 = vshrl.u32 %v353, 7
    %v355 = vsub.s32 %v352, %v354
    %v356 = vrot.slane %v342, %v355
    %v357 = vcombine.high %v349, %v349
    %v358 = vcombine.high %v356, %v356
    %v359 = vcombine.high %v159, %v159
    %v361 = vunpack.c.l.s4 1983009808
    %v362 = vunpack.c.0.s8 %v361
    %v363 = vlaneseq
    %v364 = vshrl.u32 %v363, 7
    %v365 = vsub.s32 %v362, %v364
    %v366 = vrot.slane %v159, %v365
    %v368 = vunpack.c.l.s4 1983009808
    %v369 = vunpack.c.0.s8 %v368
    %v370 = vlaneseq
    %v371 = vshrl.u32 %v370, 7
    %v372 = vsub.s32 %v369, %v371
    %v373 = vrot.slane %v359, %v372
    %v374 = vcombine.high %v366, %v366
    %v375 = vcombine.high %v373, %v373
    %v384 = vpack.c.bf16 %v349, %v349
    %v385 = vpack.c.bf16 %v357, %v357
    %v386 = vpack.c.bf16 %v356, %v356
    %v387 = vpack.c.bf16 %v358, %v358
    %v388 = vpack.c.bf16 %v366, %v366
    %v389 = vpack.c.bf16 %v374, %v374
    %v390 = vpack.c.bf16 %v373, %v373
    %v391 = vpack.c.bf16 %v375, %v375
    %v392 = vld [vmem:[%s8] sm:$0xf]
    %v393 = vld [vmem:[%s8 + $0x4] sm:$0xf]
    %v394 = vld [vmem:[%s8 + $0x8] sm:$0xf]
    %v395 = vld [vmem:[%s8 + $0xc] sm:$0xf]
    %v396 = vld [vmem:[%s8 + $0x10] sm:$0xf]
    %v397 = vld [vmem:[%s8 + $0x14] sm:$0xf]
    %v398 = vld [vmem:[%s8 + $0x18] sm:$0xf]
    %v399 = vld [vmem:[%s8 + $0x1c] sm:$0xf]
    %v400 = vld [vmem:[%s8 + $0x20] sm:$0xf]
    %v401 = vld [vmem:[%s8 + $0x24] sm:$0xf]
    %v402 = vld [vmem:[%s8 + $0x28] sm:$0xf]
    %v403 = vld [vmem:[%s8 + $0x2c] sm:$0xf]
    %v404 = vld [vmem:[%s8 + $0x30] sm:$0xf]
    %v405 = vld [vmem:[%s8 + $0x34] sm:$0xf]
    %v406 = vld [vmem:[%s8 + $0x38] sm:$0xf]
    %v407 = vld [vmem:[%s8 + $0x3c] sm:$0xf]
    %v408 = vld [vmem:[%s8 + $0x40] sm:$0xf]
    %v409 = vld [vmem:[%s8 + $0x44] sm:$0xf]
    %v410 = vld [vmem:[%s8 + $0x48] sm:$0xf]
    %v411 = vld [vmem:[%s8 + $0x4c] sm:$0xf]
    %v412 = vld [vmem:[%s8 + $0x50] sm:$0xf]
    %v413 = vld [vmem:[%s8 + $0x54] sm:$0xf]
    %v414 = vld [vmem:[%s8 + $0x58] sm:$0xf]
    %v415 = vld [vmem:[%s8 + $0x5c] sm:$0xf]
    %v416 = vld [vmem:[%s8 + $0x60] sm:$0xf]
    %v417 = vld [vmem:[%s8 + $0x64] sm:$0xf]
    %v418 = vld [vmem:[%s8 + $0x68] sm:$0xf]
    %v419 = vld [vmem:[%s8 + $0x6c] sm:$0xf]
    %v420 = vld [vmem:[%s8 + $0x70] sm:$0xf]
    %v421 = vld [vmem:[%s8 + $0x74] sm:$0xf]
    %v422 = vld [vmem:[%s8 + $0x78] sm:$0xf]
    %v423 = vld [vmem:[%s8 + $0x7c] sm:$0xf]
    %v424 = vld [vmem:[%s8 + $0x80] sm:$0xf]
    %v425 = vld [vmem:[%s8 + $0x84] sm:$0xf]
    %v426 = vld [vmem:[%s8 + $0x88] sm:$0xf]
    %v427 = vld [vmem:[%s8 + $0x8c] sm:$0xf]
    %v428 = vld [vmem:[%s8 + $0x90] sm:$0xf]
    %v429 = vld [vmem:[%s8 + $0x94] sm:$0xf]
    %v430 = vld [vmem:[%s8 + $0x98] sm:$0xf]
    %v431 = vld [vmem:[%s8 + $0x9c] sm:$0xf]
    %v432 = vld [vmem:[%s8 + $0xa0] sm:$0xf]
    %v433 = vld [vmem:[%s8 + $0xa4] sm:$0xf]
    %v434 = vld [vmem:[%s8 + $0xa8] sm:$0xf]
    %v435 = vld [vmem:[%s8 + $0xac] sm:$0xf]
    %v436 = vld [vmem:[%s8 + $0xb0] sm:$0xf]
    %v437 = vld [vmem:[%s8 + $0xb4] sm:$0xf]
    %v438 = vld [vmem:[%s8 + $0xb8] sm:$0xf]
    %v439 = vld [vmem:[%s8 + $0xbc] sm:$0xf]
    %v440 = vld [vmem:[%s8 + $0xc0] sm:$0xf]
    %v441 = vld [vmem:[%s8 + $0xc4] sm:$0xf]
    %v442 = vld [vmem:[%s8 + $0xc8] sm:$0xf]
    %v443 = vld [vmem:[%s8 + $0xcc] sm:$0xf]
    %v444 = vld [vmem:[%s8 + $0xd0] sm:$0xf]
    %v445 = vld [vmem:[%s8 + $0xd4] sm:$0xf]
    %v446 = vld [vmem:[%s8 + $0xd8] sm:$0xf]
    %v447 = vld [vmem:[%s8 + $0xdc] sm:$0xf]
    %v448 = vld [vmem:[%s8 + $0xe0] sm:$0xf]
    %v449 = vld [vmem:[%s8 + $0xe4] sm:$0xf]
    %v450 = vld [vmem:[%s8 + $0xe8] sm:$0xf]
    %v451 = vld [vmem:[%s8 + $0xec] sm:$0xf]
    %v452 = vld [vmem:[%s8 + $0xf0] sm:$0xf]
    %v453 = vld [vmem:[%s8 + $0xf4] sm:$0xf]
    %v454 = vld [vmem:[%s8 + $0xf8] sm:$0xf]
    %v455 = vld [vmem:[%s8 + $0xfc] sm:$0xf]
    %v456 = vld [vmem:[%s8 + $0x100] sm:$0xf]
    %v457 = vld [vmem:[%s8 + $0x104] sm:$0xf]
    %v458 = vld [vmem:[%s8 + $0x108] sm:$0xf]
    %v459 = vld [vmem:[%s8 + $0x10c] sm:$0xf]
    %v460 = vld [vmem:[%s8 + $0x110] sm:$0xf]
    %v461 = vld [vmem:[%s8 + $0x114] sm:$0xf]
    %v462 = vld [vmem:[%s8 + $0x118] sm:$0xf]
    %v463 = vld [vmem:[%s8 + $0x11c] sm:$0xf]
    %v464 = vld [vmem:[%s8 + $0x120] sm:$0xf]
    %v465 = vld [vmem:[%s8 + $0x124] sm:$0xf]
    %v466 = vld [vmem:[%s8 + $0x128] sm:$0xf]
    %v467 = vld [vmem:[%s8 + $0x12c] sm:$0xf]
    %v468 = vld [vmem:[%s8 + $0x130] sm:$0xf]
    %v469 = vld [vmem:[%s8 + $0x134] sm:$0xf]
    %v470 = vld [vmem:[%s8 + $0x138] sm:$0xf]
    %v471 = vld [vmem:[%s8 + $0x13c] sm:$0xf]
    %v472 = vld [vmem:[%s8 + $0x140] sm:$0xf]
    %v473 = vld [vmem:[%s8 + $0x144] sm:$0xf]
    %v474 = vld [vmem:[%s8 + $0x148] sm:$0xf]
    %v475 = vld [vmem:[%s8 + $0x14c] sm:$0xf]
    %v476 = vld [vmem:[%s8 + $0x150] sm:$0xf]
    %v477 = vld [vmem:[%s8 + $0x154] sm:$0xf]
    %v478 = vld [vmem:[%s8 + $0x158] sm:$0xf]
    %v479 = vld [vmem:[%s8 + $0x15c] sm:$0xf]
    %v480 = vld [vmem:[%s8 + $0x160] sm:$0xf]
    %v481 = vld [vmem:[%s8 + $0x164] sm:$0xf]
    %v482 = vld [vmem:[%s8 + $0x168] sm:$0xf]
    %v483 = vld [vmem:[%s8 + $0x16c] sm:$0xf]
    %v484 = vld [vmem:[%s8 + $0x170] sm:$0xf]
    %v485 = vld [vmem:[%s8 + $0x174] sm:$0xf]
    %v486 = vld [vmem:[%s8 + $0x178] sm:$0xf]
    %v487 = vld [vmem:[%s8 + $0x17c] sm:$0xf]
    %v488 = vld [vmem:[%s8 + $0x180] sm:$0xf]
    %v489 = vld [vmem:[%s8 + $0x184] sm:$0xf]
    %v490 = vld [vmem:[%s8 + $0x188] sm:$0xf]
    %v491 = vld [vmem:[%s8 + $0x18c] sm:$0xf]
    %v492 = vld [vmem:[%s8 + $0x190] sm:$0xf]
    %v493 = vld [vmem:[%s8 + $0x194] sm:$0xf]
    %v494 = vld [vmem:[%s8 + $0x198] sm:$0xf]
    %v495 = vld [vmem:[%s8 + $0x19c] sm:$0xf]
    %v496 = vld [vmem:[%s8 + $0x1a0] sm:$0xf]
    %v497 = vld [vmem:[%s8 + $0x1a4] sm:$0xf]
    %v498 = vld [vmem:[%s8 + $0x1a8] sm:$0xf]
    %v499 = vld [vmem:[%s8 + $0x1ac] sm:$0xf]
    %v500 = vld [vmem:[%s8 + $0x1b0] sm:$0xf]
    %v501 = vld [vmem:[%s8 + $0x1b4] sm:$0xf]
    %v502 = vld [vmem:[%s8 + $0x1b8] sm:$0xf]
    %v503 = vld [vmem:[%s8 + $0x1bc] sm:$0xf]
    %v504 = vld [vmem:[%s8 + $0x1c0] sm:$0xf]
    %v505 = vld [vmem:[%s8 + $0x1c4] sm:$0xf]
    %v506 = vld [vmem:[%s8 + $0x1c8] sm:$0xf]
    %v507 = vld [vmem:[%s8 + $0x1cc] sm:$0xf]
    %v508 = vld [vmem:[%s8 + $0x1d0] sm:$0xf]
    %v509 = vld [vmem:[%s8 + $0x1d4] sm:$0xf]
    %v510 = vld [vmem:[%s8 + $0x1d8] sm:$0xf]
    %v511 = vld [vmem:[%s8 + $0x1dc] sm:$0xf]
    %v512 = vld [vmem:[%s8 + $0x1e0] sm:$0xf]
    %v513 = vld [vmem:[%s8 + $0x1e4] sm:$0xf]
    %v514 = vld [vmem:[%s8 + $0x1e8] sm:$0xf]
    %v515 = vld [vmem:[%s8 + $0x1ec] sm:$0xf]
    %v516 = vld [vmem:[%s8 + $0x1f0] sm:$0xf]
    %v517 = vld [vmem:[%s8 + $0x1f4] sm:$0xf]
    %v518 = vld [vmem:[%s8 + $0x1f8] sm:$0xf]
    %v519 = vld [vmem:[%s8 + $0x1fc] sm:$0xf]
    %v648 = vunpack.c.l.b16 %v392
    %v649 = vunpack.c.l.b16 %v393
    %v650 = vunpack.c.l.b16 %v394
    %v651 = vunpack.c.l.b16 %v395
    %v652 = vunpack.c.l.b16 %v396
    %v653 = vunpack.c.l.b16 %v397
    %v654 = vunpack.c.l.b16 %v398
    %v655 = vunpack.c.l.b16 %v399
    %v656 = vunpack.c.l.b16 %v400
    %v657 = vunpack.c.l.b16 %v401
    %v658 = vunpack.c.l.b16 %v402
    %v659 = vunpack.c.l.b16 %v403
    %v660 = vunpack.c.l.b16 %v404
    %v661 = vunpack.c.l.b16 %v405
    %v662 = vunpack.c.l.b16 %v406
    %v663 = vunpack.c.l.b16 %v407
    %v664 = vunpack.c.l.b16 %v408
    %v665 = vunpack.c.l.b16 %v409
    %v666 = vunpack.c.l.b16 %v410
    %v667 = vunpack.c.l.b16 %v411
    %v668 = vunpack.c.l.b16 %v412
    %v669 = vunpack.c.l.b16 %v413
    %v670 = vunpack.c.l.b16 %v414
    %v671 = vunpack.c.l.b16 %v415
    %v672 = vunpack.c.l.b16 %v416
    %v673 = vunpack.c.l.b16 %v417
    %v674 = vunpack.c.l.b16 %v418
    %v675 = vunpack.c.l.b16 %v419
    %v676 = vunpack.c.l.b16 %v420
    %v677 = vunpack.c.l.b16 %v421
    %v678 = vunpack.c.l.b16 %v422
    %v679 = vunpack.c.l.b16 %v423
    %v680 = vunpack.c.l.b16 %v424
    %v681 = vunpack.c.l.b16 %v425
    %v682 = vunpack.c.l.b16 %v426
    %v683 = vunpack.c.l.b16 %v427
    %v684 = vunpack.c.l.b16 %v428
    %v685 = vunpack.c.l.b16 %v429
    %v686 = vunpack.c.l.b16 %v430
    %v687 = vunpack.c.l.b16 %v431
    %v688 = vunpack.c.l.b16 %v432
    %v689 = vunpack.c.l.b16 %v433
    %v690 = vunpack.c.l.b16 %v434
    %v691 = vunpack.c.l.b16 %v435
    %v692 = vunpack.c.l.b16 %v436
    %v693 = vunpack.c.l.b16 %v437
    %v694 = vunpack.c.l.b16 %v438
    %v695 = vunpack.c.l.b16 %v439
    %v696 = vunpack.c.l.b16 %v440
    %v697 = vunpack.c.l.b16 %v441
    %v698 = vunpack.c.l.b16 %v442
    %v699 = vunpack.c.l.b16 %v443
    %v700 = vunpack.c.l.b16 %v444
    %v701 = vunpack.c.l.b16 %v445
    %v702 = vunpack.c.l.b16 %v446
    %v703 = vunpack.c.l.b16 %v447
    %v704 = vunpack.c.l.b16 %v448
    %v705 = vunpack.c.l.b16 %v449
    %v706 = vunpack.c.l.b16 %v450
    %v707 = vunpack.c.l.b16 %v451
    %v708 = vunpack.c.l.b16 %v452
    %v709 = vunpack.c.l.b16 %v453
    %v710 = vunpack.c.l.b16 %v454
    %v711 = vunpack.c.l.b16 %v455
    %v712 = vunpack.c.l.b16 %v456
    %v713 = vunpack.c.l.b16 %v457
    %v714 = vunpack.c.l.b16 %v458
    %v715 = vunpack.c.l.b16 %v459
    %v716 = vunpack.c.l.b16 %v460
    %v717 = vunpack.c.l.b16 %v461
    %v718 = vunpack.c.l.b16 %v462
    %v719 = vunpack.c.l.b16 %v463
    %v720 = vunpack.c.l.b16 %v464
    %v721 = vunpack.c.l.b16 %v465
    %v722 = vunpack.c.l.b16 %v466
    %v723 = vunpack.c.l.b16 %v467
    %v724 = vunpack.c.l.b16 %v468
    %v725 = vunpack.c.l.b16 %v469
    %v726 = vunpack.c.l.b16 %v470
    %v727 = vunpack.c.l.b16 %v471
    %v728 = vunpack.c.l.b16 %v472
    %v729 = vunpack.c.l.b16 %v473
    %v730 = vunpack.c.l.b16 %v474
    %v731 = vunpack.c.l.b16 %v475
    %v732 = vunpack.c.l.b16 %v476
    %v733 = vunpack.c.l.b16 %v477
    %v734 = vunpack.c.l.b16 %v478
    %v735 = vunpack.c.l.b16 %v479
    %v736 = vunpack.c.l.b16 %v480
    %v737 = vunpack.c.l.b16 %v481
    %v738 = vunpack.c.l.b16 %v482
    %v739 = vunpack.c.l.b16 %v483
    %v740 = vunpack.c.l.b16 %v484
    %v741 = vunpack.c.l.b16 %v485
    %v742 = vunpack.c.l.b16 %v486
    %v743 = vunpack.c.l.b16 %v487
    %v744 = vunpack.c.l.b16 %v488
    %v745 = vunpack.c.l.b16 %v489
    %v746 = vunpack.c.l.b16 %v490
    %v747 = vunpack.c.l.b16 %v491
    %v748 = vunpack.c.l.b16 %v492
    %v749 = vunpack.c.l.b16 %v493
    %v750 = vunpack.c.l.b16 %v494
    %v751 = vunpack.c.l.b16 %v495
    %v752 = vunpack.c.l.b16 %v496
    %v753 = vunpack.c.l.b16 %v497
    %v754 = vunpack.c.l.b16 %v498
    %v755 = vunpack.c.l.b16 %v499
    %v756 = vunpack.c.l.b16 %v500
    %v757 = vunpack.c.l.b16 %v501
    %v758 = vunpack.c.l.b16 %v502
    %v759 = vunpack.c.l.b16 %v503
    %v760 = vunpack.c.l.b16 %v504
    %v761 = vunpack.c.l.b16 %v505
    %v762 = vunpack.c.l.b16 %v506
    %v763 = vunpack.c.l.b16 %v507
    %v764 = vunpack.c.l.b16 %v508
    %v765 = vunpack.c.l.b16 %v509
    %v766 = vunpack.c.l.b16 %v510
    %v767 = vunpack.c.l.b16 %v511
    %v768 = vunpack.c.l.b16 %v512
    %v769 = vunpack.c.l.b16 %v513
    %v770 = vunpack.c.l.b16 %v514
    %v771 = vunpack.c.l.b16 %v515
    %v772 = vunpack.c.l.b16 %v516
    %v773 = vunpack.c.l.b16 %v517
    %v774 = vunpack.c.l.b16 %v518
    %v775 = vunpack.c.l.b16 %v519
    %v776 = vpack.c.b16 %v649, %v648
    %v777 = vpack.c.b16 %v651, %v650
    %v778 = vpack.c.b16 %v653, %v652
    %v779 = vpack.c.b16 %v655, %v654
    %v780 = vpack.c.b16 %v657, %v656
    %v781 = vpack.c.b16 %v659, %v658
    %v782 = vpack.c.b16 %v661, %v660
    %v783 = vpack.c.b16 %v663, %v662
    %v784 = vpack.c.b16 %v665, %v664
    %v785 = vpack.c.b16 %v667, %v666
    %v786 = vpack.c.b16 %v669, %v668
    %v787 = vpack.c.b16 %v671, %v670
    %v788 = vpack.c.b16 %v673, %v672
    %v789 = vpack.c.b16 %v675, %v674
    %v790 = vpack.c.b16 %v677, %v676
    %v791 = vpack.c.b16 %v679, %v678
    %v792 = vpack.c.b16 %v681, %v680
    %v793 = vpack.c.b16 %v683, %v682
    %v794 = vpack.c.b16 %v685, %v684
    %v795 = vpack.c.b16 %v687, %v686
    %v796 = vpack.c.b16 %v689, %v688
    %v797 = vpack.c.b16 %v691, %v690
    %v798 = vpack.c.b16 %v693, %v692
    %v799 = vpack.c.b16 %v695, %v694
    %v800 = vpack.c.b16 %v697, %v696
    %v801 = vpack.c.b16 %v699, %v698
    %v802 = vpack.c.b16 %v701, %v700
    %v803 = vpack.c.b16 %v703, %v702
    %v804 = vpack.c.b16 %v705, %v704
    %v805 = vpack.c.b16 %v707, %v706
    %v806 = vpack.c.b16 %v709, %v708
    %v807 = vpack.c.b16 %v711, %v710
    %v808 = vpack.c.b16 %v713, %v712
    %v809 = vpack.c.b16 %v715, %v714
    %v810 = vpack.c.b16 %v717, %v716
    %v811 = vpack.c.b16 %v719, %v718
    %v812 = vpack.c.b16 %v721, %v720
    %v813 = vpack.c.b16 %v723, %v722
    %v814 = vpack.c.b16 %v725, %v724
    %v815 = vpack.c.b16 %v727, %v726
    %v816 = vpack.c.b16 %v729, %v728
    %v817 = vpack.c.b16 %v731, %v730
    %v818 = vpack.c.b16 %v733, %v732
    %v819 = vpack.c.b16 %v735, %v734
    %v820 = vpack.c.b16 %v737, %v736
    %v821 = vpack.c.b16 %v739, %v738
    %v822 = vpack.c.b16 %v741, %v740
    %v823 = vpack.c.b16 %v743, %v742
    %v824 = vpack.c.b16 %v745, %v744
    %v825 = vpack.c.b16 %v747, %v746
    %v826 = vpack.c.b16 %v749, %v748
    %v827 = vpack.c.b16 %v751, %v750
    %v828 = vpack.c.b16 %v753, %v752
    %v829 = vpack.c.b16 %v755, %v754
    %v830 = vpack.c.b16 %v757, %v756
    %v831 = vpack.c.b16 %v759, %v758
    %v832 = vpack.c.b16 %v761, %v760
    %v833 = vpack.c.b16 %v763, %v762
    %v834 = vpack.c.b16 %v765, %v764
    %v835 = vpack.c.b16 %v767, %v766
    %v836 = vpack.c.b16 %v769, %v768
    %v837 = vpack.c.b16 %v771, %v770
    %v838 = vpack.c.b16 %v773, %v772
    %v839 = vpack.c.b16 %v775, %v774
    %904 = vmatprep.subr.bf16.mxu0 0
    %905 = vmatpush1.bf16.msra.mxu0 %v776
    %906 = vmatprep.subr.bf16.mxu0 0
    %907 = vmatpush1.bf16.msra.mxu0 %v777
    %908 = vmatprep.subr.bf16.mxu0 0
    %909 = vmatpush1.bf16.msra.mxu0 %v778
    %910 = vmatprep.subr.bf16.mxu0 0
    %911 = vmatpush1.bf16.msra.mxu0 %v779
    %912 = vmatprep.subr.bf16.mxu0 0
    %913 = vmatpush1.bf16.msra.mxu0 %v780
    %914 = vmatprep.subr.bf16.mxu0 0
    %915 = vmatpush1.bf16.msra.mxu0 %v781
    %916 = vmatprep.subr.bf16.mxu0 0
    %917 = vmatpush1.bf16.msra.mxu0 %v782
    %918 = vmatprep.subr.bf16.mxu0 0
    %919 = vmatpush1.bf16.msra.mxu0 %v783
    %920 = vmatprep.subr.bf16.mxu0 0
    %921 = vmatpush1.bf16.msra.mxu0 %v784
    %922 = vmatprep.subr.bf16.mxu0 0
    %923 = vmatpush1.bf16.msra.mxu0 %v785
    %924 = vmatprep.subr.bf16.mxu0 0
    %925 = vmatpush1.bf16.msra.mxu0 %v786
    %926 = vmatprep.subr.bf16.mxu0 0
    %927 = vmatpush1.bf16.msra.mxu0 %v787
    %928 = vmatprep.subr.bf16.mxu0 0
    %929 = vmatpush1.bf16.msra.mxu0 %v788
    %930 = vmatprep.subr.bf16.mxu0 0
    %931 = vmatpush1.bf16.msra.mxu0 %v789
    %932 = vmatprep.subr.bf16.mxu0 0
    %933 = vmatpush1.bf16.msra.mxu0 %v790
    %934 = vmatprep.subr.bf16.mxu0 0
    %935 = vmatpush1.bf16.msra.mxu0 %v791
    %936 = vmatprep.mubr.bf16.mxu0 %v385
    %937 = vmatmul.mubr.bf16.gmra.mrb[0].mxu0 %v384
    %v938 = vpop.f32.mrb[0].mxu0
    %v939 = vadd.f32 0.0, %v938
    %v940 = vpop.f32.mrb[0].mxu0
    %v941 = vpop.f32.mrb[0].mxu0
    %v942 = vpop.f32.mrb[0].mxu0
    %943 = vdwg.mxu0
    %944 = vmatprep.subr.bf16.mxu0 0
    %945 = vmatpush1.bf16.msra.mxu0 %v792
    %946 = vmatprep.subr.bf16.mxu0 0
    %947 = vmatpush1.bf16.msra.mxu0 %v793
    %948 = vmatprep.subr.bf16.mxu0 0
    %949 = vmatpush1.bf16.msra.mxu0 %v794
    %950 = vmatprep.subr.bf16.mxu0 0
    %951 = vmatpush1.bf16.msra.mxu0 %v795
    %952 = vmatprep.subr.bf16.mxu0 0
    %953 = vmatpush1.bf16.msra.mxu0 %v796
    %954 = vmatprep.subr.bf16.mxu0 0
    %955 = vmatpush1.bf16.msra.mxu0 %v797
    %956 = vmatprep.subr.bf16.mxu0 0
    %957 = vmatpush1.bf16.msra.mxu0 %v798
    %958 = vmatprep.subr.bf16.mxu0 0
    %959 = vmatpush1.bf16.msra.mxu0 %v799
    %960 = vmatprep.subr.bf16.mxu0 0
    %961 = vmatpush1.bf16.msra.mxu0 %v800
    %962 = vmatprep.subr.bf16.mxu0 0
    %963 = vmatpush1.bf16.msra.mxu0 %v801
    %964 = vmatprep.subr.bf16.mxu0 0
    %965 = vmatpush1.bf16.msra.mxu0 %v802
    %966 = vmatprep.subr.bf16.mxu0 0
    %967 = vmatpush1.bf16.msra.mxu0 %v803
    %968 = vmatprep.subr.bf16.mxu0 0
    %969 = vmatpush1.bf16.msra.mxu0 %v804
    %970 = vmatprep.subr.bf16.mxu0 0
    %971 = vmatpush1.bf16.msra.mxu0 %v805
    %972 = vmatprep.subr.bf16.mxu0 0
    %973 = vmatpush1.bf16.msra.mxu0 %v806
    %974 = vmatprep.subr.bf16.mxu0 0
    %975 = vmatpush1.bf16.msra.mxu0 %v807
    %976 = vmatprep.mubr.bf16.mxu0 %v387
    %977 = vmatmul.mubr.bf16.gmra.mrb[0].mxu0 %v386
    %v978 = vpop.f32.mrb[0].mxu0
    %v979 = vadd.f32 %v939, %v978
    %v980 = vpop.f32.mrb[0].mxu0
    %v981 = vpop.f32.mrb[0].mxu0
    %v982 = vpop.f32.mrb[0].mxu0
    %983 = vdwg.mxu0
    %984 = vmatprep.subr.bf16.mxu0 0
    %985 = vmatpush1.bf16.msra.mxu0 %v808
    %986 = vmatprep.subr.bf16.mxu0 0
    %987 = vmatpush1.bf16.msra.mxu0 %v809
    %988 = vmatprep.subr.bf16.mxu0 0
    %989 = vmatpush1.bf16.msra.mxu0 %v810
    %990 = vmatprep.subr.bf16.mxu0 0
    %991 = vmatpush1.bf16.msra.mxu0 %v811
    %992 = vmatprep.subr.bf16.mxu0 0
    %993 = vmatpush1.bf16.msra.mxu0 %v812
    %994 = vmatprep.subr.bf16.mxu0 0
    %995 = vmatpush1.bf16.msra.mxu0 %v813
    %996 = vmatprep.subr.bf16.mxu0 0
    %997 = vmatpush1.bf16.msra.mxu0 %v814
    %998 = vmatprep.subr.bf16.mxu0 0
    %999 = vmatpush1.bf16.msra.mxu0 %v815
    %1000 = vmatprep.subr.bf16.mxu0 0
    %1001 = vmatpush1.bf16.msra.mxu0 %v816
    %1002 = vmatprep.subr.bf16.mxu0 0
    %1003 = vmatpush1.bf16.msra.mxu0 %v817
    %1004 = vmatprep.subr.bf16.mxu0 0
    %1005 = vmatpush1.bf16.msra.mxu0 %v818
    %1006 = vmatprep.subr.bf16.mxu0 0
    %1007 = vmatpush1.bf16.msra.mxu0 %v819
    %1008 = vmatprep.subr.bf16.mxu0 0
    %1009 = vmatpush1.bf16.msra.mxu0 %v820
    %1010 = vmatprep.subr.bf16.mxu0 0
    %1011 = vmatpush1.bf16.msra.mxu0 %v821
    %1012 = vmatprep.subr.bf16.mxu0 0
    %1013 = vmatpush1.bf16.msra.mxu0 %v822
    %1014 = vmatprep.subr.bf16.mxu0 0
    %1015 = vmatpush1.bf16.msra.mxu0 %v823
    %1016 = vmatprep.mubr.bf16.mxu0 %v389
    %1017 = vmatmul.mubr.bf16.gmra.mrb[0].mxu0 %v388
    %v1018 = vpop.f32.mrb[0].mxu0
    %v1019 = vadd.f32 %v979, %v1018
    %v1020 = vpop.f32.mrb[0].mxu0
    %v1021 = vpop.f32.mrb[0].mxu0
    %v1022 = vpop.f32.mrb[0].mxu0
    %1023 = vdwg.mxu0
    %1024 = vmatprep.subr.bf16.mxu0 0
    %1025 = vmatpush1.bf16.msra.mxu0 %v824
    %1026 = vmatprep.subr.bf16.mxu0 0
    %1027 = vmatpush1.bf16.msra.mxu0 %v825
    %1028 = vmatprep.subr.bf16.mxu0 0
    %1029 = vmatpush1.bf16.msra.mxu0 %v826
    %1030 = vmatprep.subr.bf16.mxu0 0
    %1031 = vmatpush1.bf16.msra.mxu0 %v827
    %1032 = vmatprep.subr.bf16.mxu0 0
    %1033 = vmatpush1.bf16.msra.mxu0 %v828
    %1034 = vmatprep.subr.bf16.mxu0 0
    %1035 = vmatpush1.bf16.msra.mxu0 %v829
    %1036 = vmatprep.subr.bf16.mxu0 0
    %1037 = vmatpush1.bf16.msra.mxu0 %v830
    %1038 = vmatprep.subr.bf16.mxu0 0
    %1039 = vmatpush1.bf16.msra.mxu0 %v831
    %1040 = vmatprep.subr.bf16.mxu0 0
    %1041 = vmatpush1.bf16.msra.mxu0 %v832
    %1042 = vmatprep.subr.bf16.mxu0 0
    %1043 = vmatpush1.bf16.msra.mxu0 %v833
    %1044 = vmatprep.subr.bf16.mxu0 0
    %1045 = vmatpush1.bf16.msra.mxu0 %v834
    %1046 = vmatprep.subr.bf16.mxu0 0
    %1047 = vmatpush1.bf16.msra.mxu0 %v835
    %1048 = vmatprep.subr.bf16.mxu0 0
    %1049 = vmatpush1.bf16.msra.mxu0 %v836
    %1050 = vmatprep.subr.bf16.mxu0 0
    %1051 = vmatpush1.bf16.msra.mxu0 %v837
    %1052 = vmatprep.subr.bf16.mxu0 0
    %1053 = vmatpush1.bf16.msra.mxu0 %v838
    %1054 = vmatprep.subr.bf16.mxu0 0
    %1055 = vmatpush1.bf16.msra.mxu0 %v839
    %1056 = vmatprep.mubr.bf16.mxu0 %v391
    %1057 = vmatmul.mubr.bf16.gmra.mrb[0].mxu0 %v390
    %v1058 = vpop.f32.mrb[0].mxu0
    %v1059 = vadd.f32 %v1019, %v1058
    %v1060 = vpop.f32.mrb[0].mxu0
    %v1061 = vpop.f32.mrb[0].mxu0
    %v1062 = vpop.f32.mrb[0].mxu0
    %1063 = vdwg.mxu0
    %v1192 = vunpack.c.l.b16 %v212
    %v1193 = vunpack.c.l.b16 %v213
    %v1194 = vunpack.c.l.b16 %v214
    %v1195 = vunpack.c.l.b16 %v215
    %v1196 = vunpack.c.l.b16 %v216
    %v1197 = vunpack.c.l.b16 %v217
    %v1198 = vunpack.c.l.b16 %v218
    %v1199 = vunpack.c.l.b16 %v219
    %v1200 = vunpack.c.l.b16 %v220
    %v1201 = vunpack.c.l.b16 %v221
    %v1202 = vunpack.c.l.b16 %v222
    %v1203 = vunpack.c.l.b16 %v223
    %v1204 = vunpack.c.l.b16 %v224
    %v1205 = vunpack.c.l.b16 %v225
    %v1206 = vunpack.c.l.b16 %v226
    %v1207 = vunpack.c.l.b16 %v227
    %v1208 = vunpack.c.l.b16 %v228
    %v1209 = vunpack.c.l.b16 %v229
    %v1210 = vunpack.c.l.b16 %v230
    %v1211 = vunpack.c.l.b16 %v231
    %v1212 = vunpack.c.l.b16 %v232
    %v1213 = vunpack.c.l.b16 %v233
    %v1214 = vunpack.c.l.b16 %v234
    %v1215 = vunpack.c.l.b16 %v235
    %v1216 = vunpack.c.l.b16 %v236
    %v1217 = vunpack.c.l.b16 %v237
    %v1218 = vunpack.c.l.b16 %v238
    %v1219 = vunpack.c.l.b16 %v239
    %v1220 = vunpack.c.l.b16 %v240
    %v1221 = vunpack.c.l.b16 %v241
    %v1222 = vunpack.c.l.b16 %v242
    %v1223 = vunpack.c.l.b16 %v243
    %v1224 = vunpack.c.l.b16 %v244
    %v1225 = vunpack.c.l.b16 %v245
    %v1226 = vunpack.c.l.b16 %v246
    %v1227 = vunpack.c.l.b16 %v247
    %v1228 = vunpack.c.l.b16 %v248
    %v1229 = vunpack.c.l.b16 %v249
    %v1230 = vunpack.c.l.b16 %v250
    %v1231 = vunpack.c.l.b16 %v251
    %v1232 = vunpack.c.l.b16 %v252
    %v1233 = vunpack.c.l.b16 %v253
    %v1234 = vunpack.c.l.b16 %v254
    %v1235 = vunpack.c.l.b16 %v255
    %v1236 = vunpack.c.l.b16 %v256
    %v1237 = vunpack.c.l.b16 %v257
    %v1238 = vunpack.c.l.b16 %v258
    %v1239 = vunpack.c.l.b16 %v259
    %v1240 = vunpack.c.l.b16 %v260
    %v1241 = vunpack.c.l.b16 %v261
    %v1242 = vunpack.c.l.b16 %v262
    %v1243 = vunpack.c.l.b16 %v263
    %v1244 = vunpack.c.l.b16 %v264
    %v1245 = vunpack.c.l.b16 %v265
    %v1246 = vunpack.c.l.b16 %v266
    %v1247 = vunpack.c.l.b16 %v267
    %v1248 = vunpack.c.l.b16 %v268
    %v1249 = vunpack.c.l.b16 %v269
    %v1250 = vunpack.c.l.b16 %v270
    %v1251 = vunpack.c.l.b16 %v271
    %v1252 = vunpack.c.l.b16 %v272
    %v1253 = vunpack.c.l.b16 %v273
    %v1254 = vunpack.c.l.b16 %v274
    %v1255 = vunpack.c.l.b16 %v275
    %v1256 = vunpack.c.l.b16 %v276
    %v1257 = vunpack.c.l.b16 %v277
    %v1258 = vunpack.c.l.b16 %v278
    %v1259 = vunpack.c.l.b16 %v279
    %v1260 = vunpack.c.l.b16 %v280
    %v1261 = vunpack.c.l.b16 %v281
    %v1262 = vunpack.c.l.b16 %v282
    %v1263 = vunpack.c.l.b16 %v283
    %v1264 = vunpack.c.l.b16 %v284
    %v1265 = vunpack.c.l.b16 %v285
    %v1266 = vunpack.c.l.b16 %v286
    %v1267 = vunpack.c.l.b16 %v287
    %v1268 = vunpack.c.l.b16 %v288
    %v1269 = vunpack.c.l.b16 %v289
    %v1270 = vunpack.c.l.b16 %v290
    %v1271 = vunpack.c.l.b16 %v291
    %v1272 = vunpack.c.l.b16 %v292
    %v1273 = vunpack.c.l.b16 %v293
    %v1274 = vunpack.c.l.b16 %v294
    %v1275 = vunpack.c.l.b16 %v295
    %v1276 = vunpack.c.l.b16 %v296
    %v1277 = vunpack.c.l.b16 %v297
    %v1278 = vunpack.c.l.b16 %v298
    %v1279 = vunpack.c.l.b16 %v299
    %v1280 = vunpack.c.l.b16 %v300
    %v1281 = vunpack.c.l.b16 %v301
    %v1282 = vunpack.c.l.b16 %v302
    %v1283 = vunpack.c.l.b16 %v303
    %v1284 = vunpack.c.l.b16 %v304
    %v1285 = vunpack.c.l.b16 %v305
    %v1286 = vunpack.c.l.b16 %v306
    %v1287 = vunpack.c.l.b16 %v307
    %v1288 = vunpack.c.l.b16 %v308
    %v1289 = vunpack.c.l.b16 %v309
    %v1290 = vunpack.c.l.b16 %v310
    %v1291 = vunpack.c.l.b16 %v311
    %v1292 = vunpack.c.l.b16 %v312
    %v1293 = vunpack.c.l.b16 %v313
    %v1294 = vunpack.c.l.b16 %v314
    %v1295 = vunpack.c.l.b16 %v315
    %v1296 = vunpack.c.l.b16 %v316
    %v1297 = vunpack.c.l.b16 %v317
    %v1298 = vunpack.c.l.b16 %v318
    %v1299 = vunpack.c.l.b16 %v319
    %v1300 = vunpack.c.l.b16 %v320
    %v1301 = vunpack.c.l.b16 %v321
    %v1302 = vunpack.c.l.b16 %v322
    %v1303 = vunpack.c.l.b16 %v323
    %v1304 = vunpack.c.l.b16 %v324
    %v1305 = vunpack.c.l.b16 %v325
    %v1306 = vunpack.c.l.b16 %v326
    %v1307 = vunpack.c.l.b16 %v327
    %v1308 = vunpack.c.l.b16 %v328
    %v1309 = vunpack.c.l.b16 %v329
    %v1310 = vunpack.c.l.b16 %v330
    %v1311 = vunpack.c.l.b16 %v331
    %v1312 = vunpack.c.l.b16 %v332
    %v1313 = vunpack.c.l.b16 %v333
    %v1314 = vunpack.c.l.b16 %v334
    %v1315 = vunpack.c.l.b16 %v335
    %v1316 = vunpack.c.l.b16 %v336
    %v1317 = vunpack.c.l.b16 %v337
    %v1318 = vunpack.c.l.b16 %v338
    %v1319 = vunpack.c.l.b16 %v339
    %v1320 = vpack.c.b16 %v1193, %v1192
    %v1321 = vpack.c.b16 %v1195, %v1194
    %v1322 = vpack.c.b16 %v1197, %v1196
    %v1323 = vpack.c.b16 %v1199, %v1198
    %v1324 = vpack.c.b16 %v1201, %v1200
    %v1325 = vpack.c.b16 %v1203, %v1202
    %v1326 = vpack.c.b16 %v1205, %v1204
    %v1327 = vpack.c.b16 %v1207, %v1206
    %v1328 = vpack.c.b16 %v1209, %v1208
    %v1329 = vpack.c.b16 %v1211, %v1210
    %v1330 = vpack.c.b16 %v1213, %v1212
    %v1331 = vpack.c.b16 %v1215, %v1214
    %v1332 = vpack.c.b16 %v1217, %v1216
    %v1333 = vpack.c.b16 %v1219, %v1218
    %v1334 = vpack.c.b16 %v1221, %v1220
    %v1335 = vpack.c.b16 %v1223, %v1222
    %v1336 = vpack.c.b16 %v1225, %v1224
    %v1337 = vpack.c.b16 %v1227, %v1226
    %v1338 = vpack.c.b16 %v1229, %v1228
    %v1339 = vpack.c.b16 %v1231, %v1230
    %v1340 = vpack.c.b16 %v1233, %v1232
    %v1341 = vpack.c.b16 %v1235, %v1234
    %v1342 = vpack.c.b16 %v1237, %v1236
    %v1343 = vpack.c.b16 %v1239, %v1238
    %v1344 = vpack.c.b16 %v1241, %v1240
    %v1345 = vpack.c.b16 %v1243, %v1242
    %v1346 = vpack.c.b16 %v1245, %v1244
    %v1347 = vpack.c.b16 %v1247, %v1246
    %v1348 = vpack.c.b16 %v1249, %v1248
    %v1349 = vpack.c.b16 %v1251, %v1250
    %v1350 = vpack.c.b16 %v1253, %v1252
    %v1351 = vpack.c.b16 %v1255, %v1254
    %v1352 = vpack.c.b16 %v1257, %v1256
    %v1353 = vpack.c.b16 %v1259, %v1258
    %v1354 = vpack.c.b16 %v1261, %v1260
    %v1355 = vpack.c.b16 %v1263, %v1262
    %v1356 = vpack.c.b16 %v1265, %v1264
    %v1357 = vpack.c.b16 %v1267, %v1266
    %v1358 = vpack.c.b16 %v1269, %v1268
    %v1359 = vpack.c.b16 %v1271, %v1270
    %v1360 = vpack.c.b16 %v1273, %v1272
    %v1361 = vpack.c.b16 %v1275, %v1274
    %v1362 = vpack.c.b16 %v1277, %v1276
    %v1363 = vpack.c.b16 %v1279, %v1278
    %v1364 = vpack.c.b16 %v1281, %v1280
    %v1365 = vpack.c.b16 %v1283, %v1282
    %v1366 = vpack.c.b16 %v1285, %v1284
    %v1367 = vpack.c.b16 %v1287, %v1286
    %v1368 = vpack.c.b16 %v1289, %v1288
    %v1369 = vpack.c.b16 %v1291, %v1290
    %v1370 = vpack.c.b16 %v1293, %v1292
    %v1371 = vpack.c.b16 %v1295, %v1294
    %v1372 = vpack.c.b16 %v1297, %v1296
    %v1373 = vpack.c.b16 %v1299, %v1298
    %v1374 = vpack.c.b16 %v1301, %v1300
    %v1375 = vpack.c.b16 %v1303, %v1302
    %v1376 = vpack.c.b16 %v1305, %v1304
    %v1377 = vpack.c.b16 %v1307, %v1306
    %v1378 = vpack.c.b16 %v1309, %v1308
    %v1379 = vpack.c.b16 %v1311, %v1310
    %v1380 = vpack.c.b16 %v1313, %v1312
    %v1381 = vpack.c.b16 %v1315, %v1314
    %v1382 = vpack.c.b16 %v1317, %v1316
    %v1383 = vpack.c.b16 %v1319, %v1318
    %1448 = vmatprep.subr.bf16.mxu0 0
    %1449 = vmatpush1.bf16.msra.mxu0 %v1320
    %1450 = vmatprep.subr.bf16.mxu0 0
    %1451 = vmatpush1.bf16.msra.mxu0 %v1321
    %1452 = vmatprep.subr.bf16.mxu0 0
    %1453 = vmatpush1.bf16.msra.mxu0 %v1322
    %1454 = vmatprep.subr.bf16.mxu0 0
    %1455 = vmatpush1.bf16.msra.mxu0 %v1323
    %1456 = vmatprep.subr.bf16.mxu0 0
    %1457 = vmatpush1.bf16.msra.mxu0 %v1324
    %1458 = vmatprep.subr.bf16.mxu0 0
    %1459 = vmatpush1.bf16.msra.mxu0 %v1325
    %1460 = vmatprep.subr.bf16.mxu0 0
    %1461 = vmatpush1.bf16.msra.mxu0 %v1326
    %1462 = vmatprep.subr.bf16.mxu0 0
    %1463 = vmatpush1.bf16.msra.mxu0 %v1327
    %1464 = vmatprep.subr.bf16.mxu0 0
    %1465 = vmatpush1.bf16.msra.mxu0 %v1328
    %1466 = vmatprep.subr.bf16.mxu0 0
    %1467 = vmatpush1.bf16.msra.mxu0 %v1329
    %1468 = vmatprep.subr.bf16.mxu0 0
    %1469 = vmatpush1.bf16.msra.mxu0 %v1330
    %1470 = vmatprep.subr.bf16.mxu0 0
    %1471 = vmatpush1.bf16.msra.mxu0 %v1331
    %1472 = vmatprep.subr.bf16.mxu0 0
    %1473 = vmatpush1.bf16.msra.mxu0 %v1332
    %1474 = vmatprep.subr.bf16.mxu0 0
    %1475 = vmatpush1.bf16.msra.mxu0 %v1333
    %1476 = vmatprep.subr.bf16.mxu0 0
    %1477 = vmatpush1.bf16.msra.mxu0 %v1334
    %1478 = vmatprep.subr.bf16.mxu0 0
    %1479 = vmatpush1.bf16.msra.mxu0 %v1335
    %1480 = vmatprep.mubr.bf16.mxu0 %v205
    %1481 = vmatmul.mubr.bf16.gmra.mrb[0].mxu0 %v204
    %v1482 = vpop.f32.mrb[0].mxu0
    %v1483 = vadd.f32 %v1059, %v1482
    %v1484 = vpop.f32.mrb[0].mxu0
    %v1485 = vpop.f32.mrb[0].mxu0
    %v1486 = vpop.f32.mrb[0].mxu0
    %1487 = vdwg.mxu0
    %1488 = vmatprep.subr.bf16.mxu0 0
    %1489 = vmatpush1.bf16.msra.mxu0 %v1336
    %1490 = vmatprep.subr.bf16.mxu0 0
    %1491 = vmatpush1.bf16.msra.mxu0 %v1337
    %1492 = vmatprep.subr.bf16.mxu0 0
    %1493 = vmatpush1.bf16.msra.mxu0 %v1338
    %1494 = vmatprep.subr.bf16.mxu0 0
    %1495 = vmatpush1.bf16.msra.mxu0 %v1339
    %1496 = vmatprep.subr.bf16.mxu0 0
    %1497 = vmatpush1.bf16.msra.mxu0 %v1340
    %1498 = vmatprep.subr.bf16.mxu0 0
    %1499 = vmatpush1.bf16.msra.mxu0 %v1341
    %1500 = vmatprep.subr.bf16.mxu0 0
    %1501 = vmatpush1.bf16.msra.mxu0 %v1342
    %1502 = vmatprep.subr.bf16.mxu0 0
    %1503 = vmatpush1.bf16.msra.mxu0 %v1343
    %1504 = vmatprep.subr.bf16.mxu0 0
    %1505 = vmatpush1.bf16.msra.mxu0 %v1344
    %1506 = vmatprep.subr.bf16.mxu0 0
    %1507 = vmatpush1.bf16.msra.mxu0 %v1345
    %1508 = vmatprep.subr.bf16.mxu0 0
    %1509 = vmatpush1.bf16.msra.mxu0 %v1346
    %1510 = vmatprep.subr.bf16.mxu0 0
    %1511 = vmatpush1.bf16.msra.mxu0 %v1347
    %1512 = vmatprep.subr.bf16.mxu0 0
    %1513 = vmatpush1.bf16.msra.mxu0 %v1348
    %1514 = vmatprep.subr.bf16.mxu0 0
    %1515 = vmatpush1.bf16.msra.mxu0 %v1349
    %1516 = vmatprep.subr.bf16.mxu0 0
    %1517 = vmatpush1.bf16.msra.mxu0 %v1350
    %1518 = vmatprep.subr.bf16.mxu0 0
    %1519 = vmatpush1.bf16.msra.mxu0 %v1351
    %1520 = vmatprep.mubr.bf16.mxu0 %v207
    %1521 = vmatmul.mubr.bf16.gmra.mrb[0].mxu0 %v206
    %v1522 = vpop.f32.mrb[0].mxu0
    %v1523 = vadd.f32 %v1483, %v1522
    %v1524 = vpop.f32.mrb[0].mxu0
    %v1525 = vpop.f32.mrb[0].mxu0
    %v1526 = vpop.f32.mrb[0].mxu0
    %1527 = vdwg.mxu0
    %1528 = vmatprep.subr.bf16.mxu0 0
    %1529 = vmatpush1.bf16.msra.mxu0 %v1352
    %1530 = vmatprep.subr.bf16.mxu0 0
    %1531 = vmatpush1.bf16.msra.mxu0 %v1353
    %1532 = vmatprep.subr.bf16.mxu0 0
    %1533 = vmatpush1.bf16.msra.mxu0 %v1354
    %1534 = vmatprep.subr.bf16.mxu0 0
    %1535 = vmatpush1.bf16.msra.mxu0 %v1355
    %1536 = vmatprep.subr.bf16.mxu0 0
    %1537 = vmatpush1.bf16.msra.mxu0 %v1356
    %1538 = vmatprep.subr.bf16.mxu0 0
    %1539 = vmatpush1.bf16.msra.mxu0 %v1357
    %1540 = vmatprep.subr.bf16.mxu0 0
    %1541 = vmatpush1.bf16.msra.mxu0 %v1358
    %1542 = vmatprep.subr.bf16.mxu0 0
    %1543 = vmatpush1.bf16.msra.mxu0 %v1359
    %1544 = vmatprep.subr.bf16.mxu0 0
    %1545 = vmatpush1.bf16.msra.mxu0 %v1360
    %1546 = vmatprep.subr.bf16.mxu0 0
    %1547 = vmatpush1.bf16.msra.mxu0 %v1361
    %1548 = vmatprep.subr.bf16.mxu0 0
    %1549 = vmatpush1.bf16.msra.mxu0 %v1362
    %1550 = vmatprep.subr.bf16.mxu0 0
    %1551 = vmatpush1.bf16.msra.mxu0 %v1363
    %1552 = vmatprep.subr.bf16.mxu0 0
    %1553 = vmatpush1.bf16.msra.mxu0 %v1364
    %1554 = vmatprep.subr.bf16.mxu0 0
    %1555 = vmatpush1.bf16.msra.mxu0 %v1365
    %1556 = vmatprep.subr.bf16.mxu0 0
    %1557 = vmatpush1.bf16.msra.mxu0 %v1366
    %1558 = vmatprep.subr.bf16.mxu0 0
    %1559 = vmatpush1.bf16.msra.mxu0 %v1367
    %1560 = vmatprep.mubr.bf16.mxu0 %v209
    %1561 = vmatmul.mubr.bf16.gmra.mrb[0].mxu0 %v208
    %v1562 = vpop.f32.mrb[0].mxu0
    %v1563 = vadd.f32 %v1523, %v1562
    %v1564 = vpop.f32.mrb[0].mxu0
    %v1565 = vpop.f32.mrb[0].mxu0
    %v1566 = vpop.f32.mrb[0].mxu0
    %1567 = vdwg.mxu0
    %1568 = vmatprep.subr.bf16.mxu0 0
    %1569 = vmatpush1.bf16.msra.mxu0 %v1368
    %1570 = vmatprep.subr.bf16.mxu0 0
    %1571 = vmatpush1.bf16.msra.mxu0 %v1369
    %1572 = vmatprep.subr.bf16.mxu0 0
    %1573 = vmatpush1.bf16.msra.mxu0 %v1370
    %1574 = vmatprep.subr.bf16.mxu0 0
    %1575 = vmatpush1.bf16.msra.mxu0 %v1371
    %1576 = vmatprep.subr.bf16.mxu0 0
    %1577 = vmatpush1.bf16.msra.mxu0 %v1372
    %1578 = vmatprep.subr.bf16.mxu0 0
    %1579 = vmatpush1.bf16.msra.mxu0 %v1373
    %1580 = vmatprep.subr.bf16.mxu0 0
    %1581 = vmatpush1.bf16.msra.mxu0 %v1374
    %1582 = vmatprep.subr.bf16.mxu0 0
    %1583 = vmatpush1.bf16.msra.mxu0 %v1375
    %1584 = vmatprep.subr.bf16.mxu0 0
    %1585 = vmatpush1.bf16.msra.mxu0 %v1376
    %1586 = vmatprep.subr.bf16.mxu0 0
    %1587 = vmatpush1.bf16.msra.mxu0 %v1377
    %1588 = vmatprep.subr.bf16.mxu0 0
    %1589 = vmatpush1.bf16.msra.mxu0 %v1378
    %1590 = vmatprep.subr.bf16.mxu0 0
    %1591 = vmatpush1.bf16.msra.mxu0 %v1379
    %1592 = vmatprep.subr.bf16.mxu0 0
    %1593 = vmatpush1.bf16.msra.mxu0 %v1380
    %1594 = vmatprep.subr.bf16.mxu0 0
    %1595 = vmatpush1.bf16.msra.mxu0 %v1381
    %1596 = vmatprep.subr.bf16.mxu0 0
    %1597 = vmatpush1.bf16.msra.mxu0 %v1382
    %1598 = vmatprep.subr.bf16.mxu0 0
    %1599 = vmatpush1.bf16.msra.mxu0 %v1383
    %1600 = vmatprep.mubr.bf16.mxu0 %v211
    %1601 = vmatmul.mubr.bf16.gmra.mrb[0].mxu0 %v210
    %v1602 = vpop.f32.mrb[0].mxu0
    %v1603 = vadd.f32 %v1563, %v1602
    %v1604 = vpop.f32.mrb[0].mxu0
    %v1605 = vpop.f32.mrb[0].mxu0
    %v1606 = vpop.f32.mrb[0].mxu0
    %1607 = vdwg.mxu0
    %v1608 = vld [vmem:[%s9] sm:$0x1]
    %v1610 = vlaneseq
    %v1611 = vshrl.u32 %v1610, 7
    %v1612 = vsub.s32 0, %v1611
    %v1613 = vrot.slane %v1608, %v1612
    %v1615 = vadd.f32 %v1603, %v1613
    %v1616 = vmax.f32 %v1615, 0.0
    %v1617 = vld [vmem:[%s10] sm:$0xff]
    %v1618 = vld [vmem:[%s10 + $0x8] sm:$0xff]
    %v1619 = vld [vmem:[%s10 + $0x10] sm:$0xff]
    %v1620 = vld [vmem:[%s10 + $0x18] sm:$0xff]
    %v1621 = vld [vmem:[%s11] sm:$0x1]
    %v1623 = vlaneseq
    %v1624 = vshrl.u32 %v1623, 7
    %v1625 = vsub.s32 0, %v1624
    %v1626 = vrot.slane %v1621, %v1625
    %vm1628 = vcmask 261120
    %v1630 = vsel %vm1628, %v1616, 0
    %1632 = vmatprep.subr.mxu0 0.0
    %1633 = vmatpush1.msra.mxu0 %v1617
    %1634 = vmatprep.subr.mxu0 0.0
    %1635 = vmatpush1.msra.mxu0 %v1618
    %1636 = vmatprep.subr.mxu0 0.0
    %1637 = vmatpush1.msra.mxu0 %v1619
    %1638 = vmatprep.subr.mxu0 0.0
    %1639 = vmatpush1.msra.mxu0 %v1620
    %1640 = vmatprep.subr.mxu0 0.0
    %1641 = vmatpush1.msra.mxu0 0.0
    %1642 = vmatprep.subr.mxu0 0.0
    %1643 = vmatpush1.msra.mxu0 0.0
    %1644 = vmatprep.subr.mxu0 0.0
    %1645 = vmatpush1.msra.mxu0 0.0
    %1646 = vmatprep.subr.mxu0 0.0
    %1647 = vmatpush1.msra.mxu0 0.0
    %1648 = vmatprep.subr.mxu0 0.0
    %1649 = vmatpush1.msra.mxu0 0.0
    %1650 = vmatprep.subr.mxu0 0.0
    %1651 = vmatpush1.msra.mxu0 0.0
    %1652 = vmatprep.subr.mxu0 0.0
    %1653 = vmatpush1.msra.mxu0 0.0
    %1654 = vmatprep.subr.mxu0 0.0
    %1655 = vmatpush1.msra.mxu0 0.0
    %1656 = vmatprep.subr.mxu0 0.0
    %1657 = vmatpush1.msra.mxu0 0.0
    %1658 = vmatprep.subr.mxu0 0.0
    %1659 = vmatpush1.msra.mxu0 0.0
    %1660 = vmatprep.subr.mxu0 0.0
    %1661 = vmatpush1.msra.mxu0 0.0
    %1662 = vmatprep.subr.mxu0 0.0
    %1663 = vmatpush1.msra.mxu0 0.0
    %1664 = vmatprep.subr.mxu0 0.0
    %1665 = vmatpush1.msra.mxu0 0.0
    %1666 = vmatprep.subr.mxu0 0.0
    %1667 = vmatpush1.msra.mxu0 0.0
    %1668 = vmatprep.subr.mxu0 0.0
    %1669 = vmatpush1.msra.mxu0 0.0
    %1670 = vmatprep.subr.mxu0 0.0
    %1671 = vmatpush1.msra.mxu0 0.0
    %1672 = vmatprep.subr.mxu0 0.0
    %1673 = vmatpush1.msra.mxu0 0.0
    %1674 = vmatprep.subr.mxu0 0.0
    %1675 = vmatpush1.msra.mxu0 0.0
    %1676 = vmatprep.subr.mxu0 0.0
    %1677 = vmatpush1.msra.mxu0 0.0
    %1678 = vmatprep.subr.mxu0 0.0
    %1679 = vmatpush1.msra.mxu0 0.0
    %1680 = vmatprep.subr.mxu0 0.0
    %1681 = vmatpush1.msra.mxu0 0.0
    %1682 = vmatprep.subr.mxu0 0.0
    %1683 = vmatpush1.msra.mxu0 0.0
    %1684 = vmatprep.subr.mxu0 0.0
    %1685 = vmatpush1.msra.mxu0 0.0
    %1686 = vmatprep.subr.mxu0 0.0
    %1687 = vmatpush1.msra.mxu0 0.0
    %1688 = vmatprep.subr.mxu0 0.0
    %1689 = vmatpush1.msra.mxu0 0.0
    %1690 = vmatprep.subr.mxu0 0.0
    %1691 = vmatpush1.msra.mxu0 0.0
    %1692 = vmatprep.subr.mxu0 0.0
    %1693 = vmatpush1.msra.mxu0 0.0
    %1694 = vmatprep.subr.mxu0 0.0
    %1695 = vmatpush1.msra.mxu0 0.0
    %1696 = vmatprep.mubr.f32.mxu0 0.0
    %1697 = vmatmul.mubr.f32.gmra.mrb[0].mxu0 %v1630
    %v1698 = vpop.f32.mrb[0].mxu0
    %v1699 = vadd.f32 %v1626, %v1698
    %v1700 = vpop.f32.mrb[0].mxu0
    %1701 = vdwg.mxu0
    %v1702 = vld [vmem:[%s12] sm:$0xff]
    %v1703 = vld [vmem:[%s12 + $0x8] sm:$0xff]
    %v1704 = vld [vmem:[%s12 + $0x10] sm:$0xff]
    %v1705 = vld [vmem:[%s12 + $0x18] sm:$0xff]
    %v1706 = vld [vmem:[%s13] sm:$0x1]
    %v1708 = vlaneseq
    %v1709 = vshrl.u32 %v1708, 7
    %v1710 = vsub.s32 0, %v1709
    %v1711 = vrot.slane %v1706, %v1710
    %1713 = vmatprep.subr.mxu0 0.0
    %1714 = vmatpush1.msra.mxu0 %v1702
    %1715 = vmatprep.subr.mxu0 0.0
    %1716 = vmatpush1.msra.mxu0 %v1703
    %1717 = vmatprep.subr.mxu0 0.0
    %1718 = vmatpush1.msra.mxu0 %v1704
    %1719 = vmatprep.subr.mxu0 0.0
    %1720 = vmatpush1.msra.mxu0 %v1705
    %1721 = vmatprep.subr.mxu0 0.0
    %1722 = vmatpush1.msra.mxu0 0.0
    %1723 = vmatprep.subr.mxu0 0.0
    %1724 = vmatpush1.msra.mxu0 0.0
    %1725 = vmatprep.subr.mxu0 0.0
    %1726 = vmatpush1.msra.mxu0 0.0
    %1727 = vmatprep.subr.mxu0 0.0
    %1728 = vmatpush1.msra.mxu0 0.0
    %1729 = vmatprep.subr.mxu0 0.0
    %1730 = vmatpush1.msra.mxu0 0.0
    %1731 = vmatprep.subr.mxu0 0.0
    %1732 = vmatpush1.msra.mxu0 0.0
    %1733 = vmatprep.subr.mxu0 0.0
    %1734 = vmatpush1.msra.mxu0 0.0
    %1735 = vmatprep.subr.mxu0 0.0
    %1736 = vmatpush1.msra.mxu0 0.0
    %1737 = vmatprep.subr.mxu0 0.0
    %1738 = vmatpush1.msra.mxu0 0.0
    %1739 = vmatprep.subr.mxu0 0.0
    %1740 = vmatpush1.msra.mxu0 0.0
    %1741 = vmatprep.subr.mxu0 0.0
    %1742 = vmatpush1.msra.mxu0 0.0
    %1743 = vmatprep.subr.mxu0 0.0
    %1744 = vmatpush1.msra.mxu0 0.0
    %1745 = vmatprep.subr.mxu0 0.0
    %1746 = vmatpush1.msra.mxu0 0.0
    %1747 = vmatprep.subr.mxu0 0.0
    %1748 = vmatpush1.msra.mxu0 0.0
    %1749 = vmatprep.subr.mxu0 0.0
    %1750 = vmatpush1.msra.mxu0 0.0
    %1751 = vmatprep.subr.mxu0 0.0
    %1752 = vmatpush1.msra.mxu0 0.0
    %1753 = vmatprep.subr.mxu0 0.0
    %1754 = vmatpush1.msra.mxu0 0.0
    %1755 = vmatprep.subr.mxu0 0.0
    %1756 = vmatpush1.msra.mxu0 0.0
    %1757 = vmatprep.subr.mxu0 0.0
    %1758 = vmatpush1.msra.mxu0 0.0
    %1759 = vmatprep.subr.mxu0 0.0
    %1760 = vmatpush1.msra.mxu0 0.0
    %1761 = vmatprep.subr.mxu0 0.0
    %1762 = vmatpush1.msra.mxu0 0.0
    %1763 = vmatprep.subr.mxu0 0.0
    %1764 = vmatpush1.msra.mxu0 0.0
    %1765 = vmatprep.subr.mxu0 0.0
    %1766 = vmatpush1.msra.mxu0 0.0
    %1767 = vmatprep.subr.mxu0 0.0
    %1768 = vmatpush1.msra.mxu0 0.0
    %1769 = vmatprep.subr.mxu0 0.0
    %1770 = vmatpush1.msra.mxu0 0.0
    %1771 = vmatprep.subr.mxu0 0.0
    %1772 = vmatpush1.msra.mxu0 0.0
    %1773 = vmatprep.subr.mxu0 0.0
    %1774 = vmatpush1.msra.mxu0 0.0
    %1775 = vmatprep.subr.mxu0 0.0
    %1776 = vmatpush1.msra.mxu0 0.0
    %1777 = vmatprep.mubr.f32.mxu0 0.0
    %1778 = vmatmul.mubr.f32.gmra.mrb[0].mxu0 %v1630
    %v1779 = vpop.f32.mrb[0].mxu0
    %v1780 = vadd.f32 %v1711, %v1779
    %v1781 = vpop.f32.mrb[0].mxu0
    %1782 = vdwg.mxu0
    %v1783 = vmul.f32 %v1780, 1.442695
    %v1784 = vpow.pop %v1783
    %v1785 = vld [vmem:[%s4] sm:$0x3]
    %v1786 = vmul.f32 %v1784, %v1785
    %v1787 = vadd.f32 %v1699, %v1786
    %vm1788 = vcmask 58368
    %1789 = vst.msk [vmem:[#allocation2] sm:$0x3] %vm1788, %v1787
    %v1790 = vpack.c.bf16 %v155, %v155
    %v1791 = vld [vmem:[%s14] sm:$0xff]
    %v1792 = vld [vmem:[%s14 + $0x8] sm:$0xff]
    %v1793 = vld [vmem:[%s14 + $0x10] sm:$0xff]
    %v1794 = vld [vmem:[%s14 + $0x18] sm:$0xff]
    %v1795 = vld [vmem:[%s15] sm:$0xff]
    %v1797 = vlaneseq
    %v1798 = vshrl.u32 %v1797, 7
    %v1799 = vsub.s32 0, %v1798
    %v1800 = vrot.slane %v1795, %v1799
    %v1801 = vlaneseq
    %v1802 = vshrl.u32 %v1801, 7
    %v1803 = vsub.s32 1, %v1802
    %v1804 = vrot.slane %v1795, %v1803
    %v1805 = vlaneseq
    %v1806 = vshrl.u32 %v1805, 7
    %v1807 = vsub.s32 2, %v1806
    %v1808 = vrot.slane %v1795, %v1807
    %v1809 = vlaneseq
    %v1810 = vshrl.u32 %v1809, 7
    %v1811 = vsub.s32 3, %v1810
    %v1812 = vrot.slane %v1795, %v1811
    %v1813 = vlaneseq
    %v1814 = vshrl.u32 %v1813, 7
    %v1815 = vsub.s32 4, %v1814
    %v1816 = vrot.slane %v1795, %v1815
    %v1817 = vlaneseq
    %v1818 = vshrl.u32 %v1817, 7
    %v1819 = vsub.s32 5, %v1818
    %v1820 = vrot.slane %v1795, %v1819
    %v1821 = vlaneseq
    %v1822 = vshrl.u32 %v1821, 7
    %v1823 = vsub.s32 6, %v1822
    %v1824 = vrot.slane %v1795, %v1823
    %v1825 = vlaneseq
    %v1826 = vshrl.u32 %v1825, 7
    %v1827 = vsub.s32 7, %v1826
    %v1828 = vrot.slane %v1795, %v1827
    %v1841 = vunpack.c.l.b16 %v1791
    %v1842 = vunpack.c.h.b16 %v1791
    %v1843 = vunpack.c.l.b16 %v1792
    %v1844 = vunpack.c.h.b16 %v1792
    %v1845 = vunpack.c.l.b16 %v1793
    %v1846 = vunpack.c.h.b16 %v1793
    %v1847 = vunpack.c.l.b16 %v1794
    %v1848 = vunpack.c.h.b16 %v1794
    %v1849 = vpack.c.b16 %v1841, %v1841
    %v1850 = vpack.c.b16 %v1842, %v1842
    %v1851 = vpack.c.b16 %v1843, %v1843
    %v1852 = vpack.c.b16 %v1844, %v1844
    %v1853 = vpack.c.b16 %v1845, %v1845
    %v1854 = vpack.c.b16 %v1846, %v1846
    %v1855 = vpack.c.b16 %v1847, %v1847
    %v1856 = vpack.c.b16 %v1848, %v1848
    %vm1857 = vcmask 64512
    %v1859 = vsel %vm1857, %v1790, 0
    %vm1861 = vcmask 1043456
    %v1863 = vsel %vm1861, %v1849, 0
    %v1866 = vsel %vm1861, %v1850, 0
    %v1869 = vsel %vm1861, %v1851, 0
    %v1872 = vsel %vm1861, %v1852, 0
    %v1875 = vsel %vm1861, %v1853, 0
    %v1878 = vsel %vm1861, %v1854, 0
    %v1881 = vsel %vm1861, %v1855, 0
    %v1884 = vsel %vm1861, %v1856, 0
    %1886 = vmatprep.subr.bf16.mxu0 %v1866
    %1887 = vmatpush1.bf16.msra.mxu0 %v1863
    %1888 = vmatprep.subr.bf16.mxu0 0
    %1889 = vmatpush1.bf16.msra.mxu0 0
    %1890 = vmatprep.subr.bf16.mxu0 0
    %1891 = vmatpush1.bf16.msra.mxu0 0
    %1892 = vmatprep.subr.bf16.mxu0 0
    %1893 = vmatpush1.bf16.msra.mxu0 0
    %1894 = vmatprep.subr.bf16.mxu0 0
    %1895 = vmatpush1.bf16.msra.mxu0 0
    %1896 = vmatprep.subr.bf16.mxu0 0
    %1897 = vmatpush1.bf16.msra.mxu0 0
    %1898 = vmatprep.subr.bf16.mxu0 0
    %1899 = vmatpush1.bf16.msra.mxu0 0
    %1900 = vmatprep.subr.bf16.mxu0 0
    %1901 = vmatpush1.bf16.msra.mxu0 0
    %1902 = vmatprep.subr.bf16.mxu0 0
    %1903 = vmatpush1.bf16.msra.mxu0 0
    %1904 = vmatprep.subr.bf16.mxu0 0
    %1905 = vmatpush1.bf16.msra.mxu0 0
    %1906 = vmatprep.subr.bf16.mxu0 0
    %1907 = vmatpush1.bf16.msra.mxu0 0
    %1908 = vmatprep.subr.bf16.mxu0 0
    %1909 = vmatpush1.bf16.msra.mxu0 0
    %1910 = vmatprep.subr.bf16.mxu0 0
    %1911 = vmatpush1.bf16.msra.mxu0 0
    %1912 = vmatprep.subr.bf16.mxu0 0
    %1913 = vmatpush1.bf16.msra.mxu0 0
    %1914 = vmatprep.subr.bf16.mxu0 0
    %1915 = vmatpush1.bf16.msra.mxu0 0
    %1916 = vmatprep.subr.bf16.mxu0 0
    %1917 = vmatpush1.bf16.msra.mxu0 0
    %1918 = vmatprep.mubr.bf16.mxu0 0
    %1919 = vmatmul.mubr.bf16.gmra.mrb[0].mxu0 %v1859
    %v1920 = vpop.f32.mrb[0].mxu0
    %v1921 = vadd.f32 %v1800, %v1920
    %v1922 = vpop.f32.mrb[0].mxu0
    %v1923 = vadd.f32 %v1804, %v1922
    %v1924 = vpop.f32.mrb[0].mxu0
    %v1925 = vpop.f32.mrb[0].mxu0
    %1926 = vdwg.mxu0
    %1927 = vmatprep.subr.bf16.mxu0 %v1872
    %1928 = vmatpush1.bf16.msra.mxu0 %v1869
    %1929 = vmatprep.subr.bf16.mxu0 0
    %1930 = vmatpush1.bf16.msra.mxu0 0
    %1931 = vmatprep.subr.bf16.mxu0 0
    %1932 = vmatpush1.bf16.msra.mxu0 0
    %1933 = vmatprep.subr.bf16.mxu0 0
    %1934 = vmatpush1.bf16.msra.mxu0 0
    %1935 = vmatprep.subr.bf16.mxu0 0
    %1936 = vmatpush1.bf16.msra.mxu0 0
    %1937 = vmatprep.subr.bf16.mxu0 0
    %1938 = vmatpush1.bf16.msra.mxu0 0
    %1939 = vmatprep.subr.bf16.mxu0 0
    %1940 = vmatpush1.bf16.msra.mxu0 0
    %1941 = vmatprep.subr.bf16.mxu0 0
    %1942 = vmatpush1.bf16.msra.mxu0 0
    %1943 = vmatprep.subr.bf16.mxu0 0
    %1944 = vmatpush1.bf16.msra.mxu0 0
    %1945 = vmatprep.subr.bf16.mxu0 0
    %1946 = vmatpush1.bf16.msra.mxu0 0
    %1947 = vmatprep.subr.bf16.mxu0 0
    %1948 = vmatpush1.bf16.msra.mxu0 0
    %1949 = vmatprep.subr.bf16.mxu0 0
    %1950 = vmatpush1.bf16.msra.mxu0 0
    %1951 = vmatprep.subr.bf16.mxu0 0
    %1952 = vmatpush1.bf16.msra.mxu0 0
    %1953 = vmatprep.subr.bf16.mxu0 0
    %1954 = vmatpush1.bf16.msra.mxu0 0
    %1955 = vmatprep.subr.bf16.mxu0 0
    %1956 = vmatpush1.bf16.msra.mxu0 0
    %1957 = vmatprep.subr.bf16.mxu0 0
    %1958 = vmatpush1.bf16.msra.mxu0 0
    %1959 = vmatprep.mubr.bf16.mxu0 0
    %1960 = vmatmul.mubr.bf16.gmra.mrb[0].mxu0 %v1859
    %v1961 = vpop.f32.mrb[0].mxu0
    %v1962 = vadd.f32 %v1808, %v1961
    %v1963 = vpop.f32.mrb[0].mxu0
    %v1964 = vadd.f32 %v1812, %v1963
    %v1965 = vpop.f32.mrb[0].mxu0
    %v1966 = vpop.f32.mrb[0].mxu0
    %1967 = vdwg.mxu0
    %1968 = vmatprep.subr.bf16.mxu0 %v1878
    %1969 = vmatpush1.bf16.msra.mxu0 %v1875
    %1970 = vmatprep.subr.bf16.mxu0 0
    %1971 = vmatpush1.bf16.msra.mxu0 0
    %1972 = vmatprep.subr.bf16.mxu0 0
    %1973 = vmatpush1.bf16.msra.mxu0 0
    %1974 = vmatprep.subr.bf16.mxu0 0
    %1975 = vmatpush1.bf16.msra.mxu0 0
    %1976 = vmatprep.subr.bf16.mxu0 0
    %1977 = vmatpush1.bf16.msra.mxu0 0
    %1978 = vmatprep.subr.bf16.mxu0 0
    %1979 = vmatpush1.bf16.msra.mxu0 0
    %1980 = vmatprep.subr.bf16.mxu0 0
    %1981 = vmatpush1.bf16.msra.mxu0 0
    %1982 = vmatprep.subr.bf16.mxu0 0
    %1983 = vmatpush1.bf16.msra.mxu0 0
    %1984 = vmatprep.subr.bf16.mxu0 0
    %1985 = vmatpush1.bf16.msra.mxu0 0
    %1986 = vmatprep.subr.bf16.mxu0 0
    %1987 = vmatpush1.bf16.msra.mxu0 0
    %1988 = vmatprep.subr.bf16.mxu0 0
    %1989 = vmatpush1.bf16.msra.mxu0 0
    %1990 = vmatprep.subr.bf16.mxu0 0
    %1991 = vmatpush1.bf16.msra.mxu0 0
    %1992 = vmatprep.subr.bf16.mxu0 0
    %1993 = vmatpush1.bf16.msra.mxu0 0
    %1994 = vmatprep.subr.bf16.mxu0 0
    %1995 = vmatpush1.bf16.msra.mxu0 0
    %1996 = vmatprep.subr.bf16.mxu0 0
    %1997 = vmatpush1.bf16.msra.mxu0 0
    %1998 = vmatprep.subr.bf16.mxu0 0
    %1999 = vmatpush1.bf16.msra.mxu0 0
    %2000 = vmatprep.mubr.bf16.mxu0 0
    %2001 = vmatmul.mubr.bf16.gmra.mrb[0].mxu0 %v1859
    %v2002 = vpop.f32.mrb[0].mxu0
    %v2003 = vadd.f32 %v1816, %v2002
    %v2004 = vpop.f32.mrb[0].mxu0
    %v2005 = vadd.f32 %v1820, %v2004
    %v2006 = vpop.f32.mrb[0].mxu0
    %v2007 = vpop.f32.mrb[0].mxu0
    %2008 = vdwg.mxu0
    %2009 = vmatprep.subr.bf16.mxu0 %v1884
    %2010 = vmatpush1.bf16.msra.mxu0 %v1881
    %2011 = vmatprep.subr.bf16.mxu0 0
    %2012 = vmatpush1.bf16.msra.mxu0 0
    %2013 = vmatprep.subr.bf16.mxu0 0
    %2014 = vmatpush1.bf16.msra.mxu0 0
    %2015 = vmatprep.subr.bf16.mxu0 0
    %2016 = vmatpush1.bf16.msra.mxu0 0
    %2017 = vmatprep.subr.bf16.mxu0 0
    %2018 = vmatpush1.bf16.msra.mxu0 0
    %2019 = vmatprep.subr.bf16.mxu0 0
    %2020 = vmatpush1.bf16.msra.mxu0 0
    %2021 = vmatprep.subr.bf16.mxu0 0
    %2022 = vmatpush1.bf16.msra.mxu0 0
    %2023 = vmatprep.subr.bf16.mxu0 0
    %2024 = vmatpush1.bf16.msra.mxu0 0
    %2025 = vmatprep.subr.bf16.mxu0 0
    %2026 = vmatpush1.bf16.msra.mxu0 0
    %2027 = vmatprep.subr.bf16.mxu0 0
    %2028 = vmatpush1.bf16.msra.mxu0 0
    %2029 = vmatprep.subr.bf16.mxu0 0
    %2030 = vmatpush1.bf16.msra.mxu0 0
    %2031 = vmatprep.subr.bf16.mxu0 0
    %2032 = vmatpush1.bf16.msra.mxu0 0
    %2033 = vmatprep.subr.bf16.mxu0 0
    %2034 = vmatpush1.bf16.msra.mxu0 0
    %2035 = vmatprep.subr.bf16.mxu0 0
    %2036 = vmatpush1.bf16.msra.mxu0 0
    %2037 = vmatprep.subr.bf16.mxu0 0
    %2038 = vmatpush1.bf16.msra.mxu0 0
    %2039 = vmatprep.subr.bf16.mxu0 0
    %2040 = vmatpush1.bf16.msra.mxu0 0
    %2041 = vmatprep.mubr.bf16.mxu0 0
    %2042 = vmatmul.mubr.bf16.gmra.mrb[0].mxu0 %v1859
    %v2043 = vpop.f32.mrb[0].mxu0
    %v2044 = vadd.f32 %v1824, %v2043
    %v2045 = vpop.f32.mrb[0].mxu0
    %v2046 = vadd.f32 %v1828, %v2045
    %v2047 = vpop.f32.mrb[0].mxu0
    %v2048 = vpop.f32.mrb[0].mxu0
    %2049 = vdwg.mxu0
    %v2050 = vpack.c.bf16 %v1921, %v1921
    %v2051 = vpack.c.bf16 %v1923, %v1923
    %v2052 = vpack.c.bf16 %v1962, %v1962
    %v2053 = vpack.c.bf16 %v1964, %v1964
    %v2054 = vpack.c.bf16 %v2003, %v2003
    %v2055 = vpack.c.bf16 %v2005, %v2005
    %v2056 = vpack.c.bf16 %v2044, %v2044
    %v2057 = vpack.c.bf16 %v2046, %v2046
    %v2066 = vcombine.low %v2050, %v2051
    %v2067 = vcombine.low %v2052, %v2053
    %v2068 = vcombine.low %v2054, %v2055
    %v2069 = vcombine.low %v2056, %v2057
    %v2071 = vunpack.c.l.s4 1966171168
    %v2072 = vunpack.c.0.s8 %v2071
    %v2073 = vlaneseq
    %v2074 = vshrl.u32 %v2073, 7
    %v2075 = vsub.s32 %v2072, %v2074
    %v2076 = vrot.slane %v2066, %v2075
    %v2078 = vunpack.c.l.s4 1966171168
    %v2079 = vunpack.c.0.s8 %v2078
    %v2080 = vlaneseq
    %v2081 = vshrl.u32 %v2080, 7
    %v2082 = vsub.s32 %v2079, %v2081
    %v2083 = vrot.slane %v2067, %v2082
    %v2085 = vunpack.c.l.s4 1966171168
    %v2086 = vunpack.c.0.s8 %v2085
    %v2087 = vlaneseq
    %v2088 = vshrl.u32 %v2087, 7
    %v2089 = vsub.s32 %v2086, %v2088
    %v2090 = vrot.slane %v2068, %v2089
    %v2092 = vunpack.c.l.s4 1966171168
    %v2093 = vunpack.c.0.s8 %v2092
    %v2094 = vlaneseq
    %v2095 = vshrl.u32 %v2094, 7
    %v2096 = vsub.s32 %v2093, %v2095
    %v2097 = vrot.slane %v2069, %v2096
    %v2098 = vcombine.low %v2076, %v2083
    %v2099 = vcombine.low %v2090, %v2097
    %v2101 = vunpack.c.l.s4 1966171168
    %v2102 = vunpack.c.0.s8 %v2101
    %v2103 = vlaneseq
    %v2104 = vshrl.u32 %v2103, 7
    %v2105 = vsub.s32 %v2102, %v2104
    %v2106 = vrot.slane %v2098, %v2105
    %v2108 = vunpack.c.l.s4 1966171168
    %v2109 = vunpack.c.0.s8 %v2108
    %v2110 = vlaneseq
    %v2111 = vshrl.u32 %v2110, 7
    %v2112 = vsub.s32 %v2109, %v2111
    %v2113 = vrot.slane %v2099, %v2112
    %v2114 = vcombine.low %v2106, %v2113
    %2116 = vst [vmem:[#allocation4] sm:$0xff] %v2114
    %v2117 = vsub.f32 %v1921, %v169
    %v2118 = vsub.f32 %v1923, %v177
    %v2119 = vsub.f32 %v1962, %v176
    %v2120 = vsub.f32 %v1964, %v178
    %v2121 = vsub.f32 %v2003, %v186
    %v2122 = vsub.f32 %v2005, %v194
    %v2123 = vsub.f32 %v2044, %v193
    %v2124 = vsub.f32 %v2046, %v195
    %v2125 = vmul.f32 %v2117, %v2117
    %v2126 = vmul.f32 %v2118, %v2118
    %v2127 = vmul.f32 %v2119, %v2119
    %v2128 = vmul.f32 %v2120, %v2120
    %v2129 = vmul.f32 %v2121, %v2121
    %v2130 = vmul.f32 %v2122, %v2122
    %v2131 = vmul.f32 %v2123, %v2123
    %v2132 = vmul.f32 %v2124, %v2124
    %vm2133 = vcmask 1041408
    %v2134 = vsel %vm2133, %v2125, 0.0
    %v2135 = vsel %vm2133, %v2126, 0.0
    %v2136 = vadd.f32 %v2134, %v2135
    %v2137 = vsel %vm2133, %v2127, 0.0
    %v2138 = vadd.f32 %v2136, %v2137
    %v2139 = vsel %vm2133, %v2128, 0.0
    %v2140 = vadd.f32 %v2138, %v2139
    %v2141 = vsel %vm2133, %v2129, 0.0
    %v2142 = vadd.f32 %v2140, %v2141
    %v2143 = vsel %vm2133, %v2130, 0.0
    %v2144 = vadd.f32 %v2142, %v2143
    %v2145 = vsel %vm2133, %v2131, 0.0
    %v2146 = vadd.f32 %v2144, %v2145
    %v2147 = vsel %vm2133, %v2132, 0.0
    %v2148 = vadd.f32 %v2146, %v2147
    %2149 = vadd.xlane.f32.xlu0 %v2148
    %v2150 = vpop.xlane.xlu0 %2149
    %vm2151 = vcmask 1024
    %v2152 = vsel %vm2151, %v2150, 0.0
    %2153 = vadd.xlane.f32.xlu0 %v2152
    %v2154 = vpop.xlane.xlu0 %2153
    %v2155 = vrot.slane %v2154, 4
    %v2156 = vadd.f32 %v2154, %v2155
    %v2157 = vrot.slane %v2156, 2
    %v2158 = vadd.f32 %v2156, %v2157
    %v2159 = vrot.slane %v2158, 1
    %v2160 = vadd.f32 %v2158, %v2159
    %s2161 = vtos %v2160
    %v2162 = vld [vmem:[%s16] sm:$0xff]
    %v2163 = vld [vmem:[%s16 + $0x8] sm:$0xff]
    %v2164 = vld [vmem:[%s16 + $0x10] sm:$0xff]
    %v2165 = vld [vmem:[%s16 + $0x18] sm:$0xff]
    %v2166 = vld [vmem:[%s17] sm:$0xff]
    %v2168 = vlaneseq
    %v2169 = vshrl.u32 %v2168, 7
    %v2170 = vsub.s32 0, %v2169
    %v2171 = vrot.slane %v2166, %v2170
    %v2172 = vlaneseq
    %v2173 = vshrl.u32 %v2172, 7
    %v2174 = vsub.s32 1, %v2173
    %v2175 = vrot.slane %v2166, %v2174
    %v2176 = vlaneseq
    %v2177 = vshrl.u32 %v2176, 7
    %v2178 = vsub.s32 2, %v2177
    %v2179 = vrot.slane %v2166, %v2178
    %v2180 = vlaneseq
    %v2181 = vshrl.u32 %v2180, 7
    %v2182 = vsub.s32 3, %v2181
    %v2183 = vrot.slane %v2166, %v2182
    %v2184 = vlaneseq
    %v2185 = vshrl.u32 %v2184, 7
    %v2186 = vsub.s32 4, %v2185
    %v2187 = vrot.slane %v2166, %v2186
    %v2188 = vlaneseq
    %v2189 = vshrl.u32 %v2188, 7
    %v2190 = vsub.s32 5, %v2189
    %v2191 = vrot.slane %v2166, %v2190
    %v2192 = vlaneseq
    %v2193 = vshrl.u32 %v2192, 7
    %v2194 = vsub.s32 6, %v2193
    %v2195 = vrot.slane %v2166, %v2194
    %v2196 = vlaneseq
    %v2197 = vshrl.u32 %v2196, 7
    %v2198 = vsub.s32 7, %v2197
    %v2199 = vrot.slane %v2166, %v2198
    %v2212 = vunpack.c.l.b16 %v2162
    %v2213 = vunpack.c.h.b16 %v2162
    %v2214 = vunpack.c.l.b16 %v2163
    %v2215 = vunpack.c.h.b16 %v2163
    %v2216 = vunpack.c.l.b16 %v2164
    %v2217 = vunpack.c.h.b16 %v2164
    %v2218 = vunpack.c.l.b16 %v2165
    %v2219 = vunpack.c.h.b16 %v2165
    %v2220 = vpack.c.b16 %v2212, %v2212
    %v2221 = vpack.c.b16 %v2213, %v2213
    %v2222 = vpack.c.b16 %v2214, %v2214
    %v2223 = vpack.c.b16 %v2215, %v2215
    %v2224 = vpack.c.b16 %v2216, %v2216
    %v2225 = vpack.c.b16 %v2217, %v2217
    %v2226 = vpack.c.b16 %v2218, %v2218
    %v2227 = vpack.c.b16 %v2219, %v2219
    %v2229 = vsel %vm1861, %v2220, 0
    %v2232 = vsel %vm1861, %v2221, 0
    %v2235 = vsel %vm1861, %v2222, 0
    %v2238 = vsel %vm1861, %v2223, 0
    %v2241 = vsel %vm1861, %v2224, 0
    %v2244 = vsel %vm1861, %v2225, 0
    %v2247 = vsel %vm1861, %v2226, 0
    %v2250 = vsel %vm1861, %v2227, 0
    %2252 = vmatprep.subr.bf16.mxu0 %v2232
    %2253 = vmatpush1.bf16.msra.mxu0 %v2229
    %2254 = vmatprep.subr.bf16.mxu0 0
    %2255 = vmatpush1.bf16.msra.mxu0 0
    %2256 = vmatprep.subr.bf16.mxu0 0
    %2257 = vmatpush1.bf16.msra.mxu0 0
    %2258 = vmatprep.subr.bf16.mxu0 0
    %2259 = vmatpush1.bf16.msra.mxu0 0
    %2260 = vmatprep.subr.bf16.mxu0 0
    %2261 = vmatpush1.bf16.msra.mxu0 0
    %2262 = vmatprep.subr.bf16.mxu0 0
    %2263 = vmatpush1.bf16.msra.mxu0 0
    %2264 = vmatprep.subr.bf16.mxu0 0
    %2265 = vmatpush1.bf16.msra.mxu0 0
    %2266 = vmatprep.subr.bf16.mxu0 0
    %2267 = vmatpush1.bf16.msra.mxu0 0
    %2268 = vmatprep.subr.bf16.mxu0 0
    %2269 = vmatpush1.bf16.msra.mxu0 0
    %2270 = vmatprep.subr.bf16.mxu0 0
    %2271 = vmatpush1.bf16.msra.mxu0 0
    %2272 = vmatprep.subr.bf16.mxu0 0
    %2273 = vmatpush1.bf16.msra.mxu0 0
    %2274 = vmatprep.subr.bf16.mxu0 0
    %2275 = vmatpush1.bf16.msra.mxu0 0
    %2276 = vmatprep.subr.bf16.mxu0 0
    %2277 = vmatpush1.bf16.msra.mxu0 0
    %2278 = vmatprep.subr.bf16.mxu0 0
    %2279 = vmatpush1.bf16.msra.mxu0 0
    %2280 = vmatprep.subr.bf16.mxu0 0
    %2281 = vmatpush1.bf16.msra.mxu0 0
    %2282 = vmatprep.subr.bf16.mxu0 0
    %2283 = vmatpush1.bf16.msra.mxu0 0
    %2284 = vmatprep.mubr.bf16.mxu0 0
    %2285 = vmatmul.mubr.bf16.gmra.mrb[0].mxu0 %v1859
    %v2286 = vpop.f32.mrb[0].mxu0
    %v2287 = vadd.f32 %v2171, %v2286
    %v2288 = vpop.f32.mrb[0].mxu0
    %v2289 = vadd.f32 %v2175, %v2288
    %v2290 = vpop.f32.mrb[0].mxu0
    %v2291 = vpop.f32.mrb[0].mxu0
    %2292 = vdwg.mxu0
    %2293 = vmatprep.subr.bf16.mxu0 %v2238
    %2294 = vmatpush1.bf16.msra.mxu0 %v2235
    %2295 = vmatprep.subr.bf16.mxu0 0
    %2296 = vmatpush1.bf16.msra.mxu0 0
    %2297 = vmatprep.subr.bf16.mxu0 0
    %2298 = vmatpush1.bf16.msra.mxu0 0
    %2299 = vmatprep.subr.bf16.mxu0 0
    %2300 = vmatpush1.bf16.msra.mxu0 0
    %2301 = vmatprep.subr.bf16.mxu0 0
    %2302 = vmatpush1.bf16.msra.mxu0 0
    %2303 = vmatprep.subr.bf16.mxu0 0
    %2304 = vmatpush1.bf16.msra.mxu0 0
    %2305 = vmatprep.subr.bf16.mxu0 0
    %2306 = vmatpush1.bf16.msra.mxu0 0
    %2307 = vmatprep.subr.bf16.mxu0 0
    %2308 = vmatpush1.bf16.msra.mxu0 0
    %2309 = vmatprep.subr.bf16.mxu0 0
    %2310 = vmatpush1.bf16.msra.mxu0 0
    %2311 = vmatprep.subr.bf16.mxu0 0
    %2312 = vmatpush1.bf16.msra.mxu0 0
    %2313 = vmatprep.subr.bf16.mxu0 0
    %2314 = vmatpush1.bf16.msra.mxu0 0
    %2315 = vmatprep.subr.bf16.mxu0 0
    %2316 = vmatpush1.bf16.msra.mxu0 0
    %2317 = vmatprep.subr.bf16.mxu0 0
    %2318 = vmatpush1.bf16.msra.mxu0 0
    %2319 = vmatprep.subr.bf16.mxu0 0
    %2320 = vmatpush1.bf16.msra.mxu0 0
    %2321 = vmatprep.subr.bf16.mxu0 0
    %2322 = vmatpush1.bf16.msra.mxu0 0
    %2323 = vmatprep.subr.bf16.mxu0 0
    %2324 = vmatpush1.bf16.msra.mxu0 0
    %2325 = vmatprep.mubr.bf16.mxu0 0
    %2326 = vmatmul.mubr.bf16.gmra.mrb[0].mxu0 %v1859
    %v2327 = vpop.f32.mrb[0].mxu0
    %v2328 = vadd.f32 %v2179, %v2327
    %v2329 = vpop.f32.mrb[0].mxu0
    %v2330 = vadd.f32 %v2183, %v2329
    %v2331 = vpop.f32.mrb[0].mxu0
    %v2332 = vpop.f32.mrb[0].mxu0
    %2333 = vdwg.mxu0
    %2334 = vmatprep.subr.bf16.mxu0 %v2244
    %2335 = vmatpush1.bf16.msra.mxu0 %v2241
    %2336 = vmatprep.subr.bf16.mxu0 0
    %2337 = vmatpush1.bf16.msra.mxu0 0
    %2338 = vmatprep.subr.bf16.mxu0 0
    %2339 = vmatpush1.bf16.msra.mxu0 0
    %2340 = vmatprep.subr.bf16.mxu0 0
    %2341 = vmatpush1.bf16.msra.mxu0 0
    %2342 = vmatprep.subr.bf16.mxu0 0
    %2343 = vmatpush1.bf16.msra.mxu0 0
    %2344 = vmatprep.subr.bf16.mxu0 0
    %2345 = vmatpush1.bf16.msra.mxu0 0
    %2346 = vmatprep.subr.bf16.mxu0 0
    %2347 = vmatpush1.bf16.msra.mxu0 0
    %2348 = vmatprep.subr.bf16.mxu0 0
    %2349 = vmatpush1.bf16.msra.mxu0 0
    %2350 = vmatprep.subr.bf16.mxu0 0
    %2351 = vmatpush1.bf16.msra.mxu0 0
    %2352 = vmatprep.subr.bf16.mxu0 0
    %2353 = vmatpush1.bf16.msra.mxu0 0
    %2354 = vmatprep.subr.bf16.mxu0 0
    %2355 = vmatpush1.bf16.msra.mxu0 0
    %2356 = vmatprep.subr.bf16.mxu0 0
    %2357 = vmatpush1.bf16.msra.mxu0 0
    %2358 = vmatprep.subr.bf16.mxu0 0
    %2359 = vmatpush1.bf16.msra.mxu0 0
    %2360 = vmatprep.subr.bf16.mxu0 0
    %2361 = vmatpush1.bf16.msra.mxu0 0
    %2362 = vmatprep.subr.bf16.mxu0 0
    %2363 = vmatpush1.bf16.msra.mxu0 0
    %2364 = vmatprep.subr.bf16.mxu0 0
    %2365 = vmatpush1.bf16.msra.mxu0 0
    %2366 = vmatprep.mubr.bf16.mxu0 0
    %2367 = vmatmul.mubr.bf16.gmra.mrb[0].mxu0 %v1859
    %v2368 = vpop.f32.mrb[0].mxu0
    %v2369 = vadd.f32 %v2187, %v2368
    %v2370 = vpop.f32.mrb[0].mxu0
    %v2371 = vadd.f32 %v2191, %v2370
    %v2372 = vpop.f32.mrb[0].mxu0
    %v2373 = vpop.f32.mrb[0].mxu0
    %2374 = vdwg.mxu0
    %2375 = vmatprep.subr.bf16.mxu0 %v2250
    %2376 = vmatpush1.bf16.msra.mxu0 %v2247
    %2377 = vmatprep.subr.bf16.mxu0 0
    %2378 = vmatpush1.bf16.msra.mxu0 0
    %2379 = vmatprep.subr.bf16.mxu0 0
    %2380 = vmatpush1.bf16.msra.mxu0 0
    %2381 = vmatprep.subr.bf16.mxu0 0
    %2382 = vmatpush1.bf16.msra.mxu0 0
    %2383 = vmatprep.subr.bf16.mxu0 0
    %2384 = vmatpush1.bf16.msra.mxu0 0
    %2385 = vmatprep.subr.bf16.mxu0 0
    %2386 = vmatpush1.bf16.msra.mxu0 0
    %2387 = vmatprep.subr.bf16.mxu0 0
    %2388 = vmatpush1.bf16.msra.mxu0 0
    %2389 = vmatprep.subr.bf16.mxu0 0
    %2390 = vmatpush1.bf16.msra.mxu0 0
    %2391 = vmatprep.subr.bf16.mxu0 0
    %2392 = vmatpush1.bf16.msra.mxu0 0
    %2393 = vmatprep.subr.bf16.mxu0 0
    %2394 = vmatpush1.bf16.msra.mxu0 0
    %2395 = vmatprep.subr.bf16.mxu0 0
    %2396 = vmatpush1.bf16.msra.mxu0 0
    %2397 = vmatprep.subr.bf16.mxu0 0
    %2398 = vmatpush1.bf16.msra.mxu0 0
    %2399 = vmatprep.subr.bf16.mxu0 0
    %2400 = vmatpush1.bf16.msra.mxu0 0
    %2401 = vmatprep.subr.bf16.mxu0 0
    %2402 = vmatpush1.bf16.msra.mxu0 0
    %2403 = vmatprep.subr.bf16.mxu0 0
    %2404 = vmatpush1.bf16.msra.mxu0 0
    %2405 = vmatprep.subr.bf16.mxu0 0
    %2406 = vmatpush1.bf16.msra.mxu0 0
    %2407 = vmatprep.mubr.bf16.mxu0 0
    %2408 = vmatmul.mubr.bf16.gmra.mrb[0].mxu0 %v1859
    %v2409 = vpop.f32.mrb[0].mxu0
    %v2410 = vadd.f32 %v2195, %v2409
    %v2411 = vpop.f32.mrb[0].mxu0
    %v2412 = vadd.f32 %v2199, %v2411
    %v2413 = vpop.f32.mrb[0].mxu0
    %v2414 = vpop.f32.mrb[0].mxu0
    %2415 = vdwg.mxu0
    %v2416 = vpack.c.bf16 %v2287, %v2287
    %v2417 = vpack.c.bf16 %v2289, %v2289
    %v2418 = vpack.c.bf16 %v2328, %v2328
    %v2419 = vpack.c.bf16 %v2330, %v2330
    %v2420 = vpack.c.bf16 %v2369, %v2369
    %v2421 = vpack.c.bf16 %v2371, %v2371
    %v2422 = vpack.c.bf16 %v2410, %v2410
    %v2423 = vpack.c.bf16 %v2412, %v2412
    %v2432 = vcombine.low %v2416, %v2417
    %v2433 = vcombine.low %v2418, %v2419
    %v2434 = vcombine.low %v2420, %v2421
    %v2435 = vcombine.low %v2422, %v2423
    %v2437 = vunpack.c.l.s4 1966171168
    %v2438 = vunpack.c.0.s8 %v2437
    %v2439 = vlaneseq
    %v2440 = vshrl.u32 %v2439, 7
    %v2441 = vsub.s32 %v2438, %v2440
    %v2442 = vrot.slane %v2432, %v2441
    %v2444 = vunpack.c.l.s4 1966171168
    %v2445 = vunpack.c.0.s8 %v2444
    %v2446 = vlaneseq
    %v2447 = vshrl.u32 %v2446, 7
    %v2448 = vsub.s32 %v2445, %v2447
    %v2449 = vrot.slane %v2433, %v2448
    %v2451 = vunpack.c.l.s4 1966171168
    %v2452 = vunpack.c.0.s8 %v2451
    %v2453 = vlaneseq
    %v2454 = vshrl.u32 %v2453, 7
    %v2455 = vsub.s32 %v2452, %v2454
    %v2456 = vrot.slane %v2434, %v2455
    %v2458 = vunpack.c.l.s4 1966171168
    %v2459 = vunpack.c.0.s8 %v2458
    %v2460 = vlaneseq
    %v2461 = vshrl.u32 %v2460, 7
    %v2462 = vsub.s32 %v2459, %v2461
    %v2463 = vrot.slane %v2435, %v2462
    %v2464 = vcombine.low %v2442, %v2449
    %v2465 = vcombine.low %v2456, %v2463
    %v2467 = vunpack.c.l.s4 1966171168
    %v2468 = vunpack.c.0.s8 %v2467
    %v2469 = vlaneseq
    %v2470 = vshrl.u32 %v2469, 7
    %v2471 = vsub.s32 %v2468, %v2470
    %v2472 = vrot.slane %v2464, %v2471
    %v2474 = vunpack.c.l.s4 1966171168
    %v2475 = vunpack.c.0.s8 %v2474
    %v2476 = vlaneseq
    %v2477 = vshrl.u32 %v2476, 7
    %v2478 = vsub.s32 %v2475, %v2477
    %v2479 = vrot.slane %v2465, %v2478
    %v2480 = vcombine.low %v2472, %v2479
    %2482 = vst [vmem:[#allocation6] sm:$0xff] %v2480
    %v2483 = vsub.f32 %v2287, %v349
    %v2484 = vsub.f32 %v2289, %v357
    %v2485 = vsub.f32 %v2328, %v356
    %v2486 = vsub.f32 %v2330, %v358
    %v2487 = vsub.f32 %v2369, %v366
    %v2488 = vsub.f32 %v2371, %v374
    %v2489 = vsub.f32 %v2410, %v373
    %v2490 = vsub.f32 %v2412, %v375
    %v2491 = vmul.f32 %v2483, %v2483
    %v2492 = vmul.f32 %v2484, %v2484
    %v2493 = vmul.f32 %v2485, %v2485
    %v2494 = vmul.f32 %v2486, %v2486
    %v2495 = vmul.f32 %v2487, %v2487
    %v2496 = vmul.f32 %v2488, %v2488
    %v2497 = vmul.f32 %v2489, %v2489
    %v2498 = vmul.f32 %v2490, %v2490
    %v2499 = vsel %vm2133, %v2491, 0.0
    %v2500 = vsel %vm2133, %v2492, 0.0
    %v2501 = vadd.f32 %v2499, %v2500
    %v2502 = vsel %vm2133, %v2493, 0.0
    %v2503 = vadd.f32 %v2501, %v2502
    %v2504 = vsel %vm2133, %v2494, 0.0
    %v2505 = vadd.f32 %v2503, %v2504
    %v2506 = vsel %vm2133, %v2495, 0.0
    %v2507 = vadd.f32 %v2505, %v2506
    %v2508 = vsel %vm2133, %v2496, 0.0
    %v2509 = vadd.f32 %v2507, %v2508
    %v2510 = vsel %vm2133, %v2497, 0.0
    %v2511 = vadd.f32 %v2509, %v2510
    %v2512 = vsel %vm2133, %v2498, 0.0
    %v2513 = vadd.f32 %v2511, %v2512
    %2514 = vadd.xlane.f32.xlu0 %v2513
    %v2515 = vpop.xlane.xlu0 %2514
    %v2516 = vsel %vm2151, %v2515, 0.0
    %2517 = vadd.xlane.f32.xlu0 %v2516
    %v2518 = vpop.xlane.xlu0 %2517
    %v2519 = vrot.slane %v2518, 4
    %v2520 = vadd.f32 %v2518, %v2519
    %v2521 = vrot.slane %v2520, 2
    %v2522 = vadd.f32 %v2520, %v2521
    %v2523 = vrot.slane %v2522, 1
    %v2524 = vadd.f32 %v2522, %v2523
    %s2525 = vtos %v2524
    %v2527 = vlaneseq
    %v2528 = vshrl.u32 %v2527, 7
    %v2529 = vsub.s32 0, %v2528
    %v2530 = vrot.slane %v144, %v2529
    %v2532 = vsub.f32 %v2530, %v1780
    %v2533 = vmul.f32 %v1784, %v1784
    %v2534 = vsub.f32 %v1699, %v141
    %v2535 = vmul.f32 %v2534, %v2534
    %v2536 = vadd.f32 %v2533, %v2535
    %v2537 = vmul.f32 %v146, 2.0
    %v2538 = vmul.f32 %v2537, %v146
    %v2540 = vlaneseq
    %v2541 = vshrl.u32 %v2540, 7
    %v2542 = vsub.s32 0, %v2541
    %v2543 = vrot.slane %v2538, %v2542
    %v2545 = vrcp.pop %v2543
    %v2546 = vmul.f32 %v2536, %v2545
    %v2547 = vadd.f32 %v2532, %v2546
    %v2548 = vsub.f32 %v2547, 0.5
    %v2549 = vsel %vm1788, %v2548, 0.0
    %2550 = vadd.xlane.f32.xlu0 %v2549
    %v2551 = vpop.xlane.xlu0 %2550
    %v2552 = vsel %vm2151, %v2551, 0.0
    %2553 = vadd.xlane.f32.xlu0 %v2552
    %v2554 = vpop.xlane.xlu0 %2553
    %v2555 = vrot.slane %v2554, 4
    %v2556 = vadd.f32 %v2554, %v2555
    %v2557 = vrot.slane %v2556, 2
    %v2558 = vadd.f32 %v2556, %v2557
    %v2559 = vrot.slane %v2558, 1
    %v2560 = vadd.f32 %v2558, %v2559
    %s2561 = vtos %v2560
    %v2562 = vlaneseq
    %v2563 = vshrl.u32 %v2562, 7
    %v2564 = vlaneseq
    %v2565 = vand.u32 %v2564, 127
    %vm2566 = vcmp.eq.s32.totalorder %v2563, 0
    %vm2567 = vcmp.eq.s32.totalorder %v2565, 0
    %vm2568 = vmand %vm2566, %vm2567
    %v2569 = vstv %s2161
    %v2570 = vsel %vm2568, %v2569, 0.0
    %vm2571 = vcmp.eq.s32.totalorder %v2565, 1
    %vm2572 = vmand %vm2566, %vm2571
    %v2573 = vstv %s2525
    %v2574 = vsel %vm2572, %v2573, %v2570
    %vm2575 = vcmp.eq.s32.totalorder %v2565, 2
    %vm2576 = vmand %vm2566, %vm2575
    %v2577 = vstv %s2561
    %v2578 = vsel %vm2576, %v2577, %v2574
    %2579 = vst [vmem:[#allocation7] sm:$0xff] %v2578
    // Predicated region
    $region74: #{tpu_custom_call.1} parent=1 // pred_check
      _
    $region75: #{tpu_custom_call.1} parent=1 // pred_check_branch
      %2581 = sbr.rel (0) target = $region77
    $region76: #{tpu_custom_call.1} parent=1 // pred_region
      %s2583 = ssub.s32 32, 32
      %2584 = vsyncadd [#allocation3], %s2583
      %s2586 = sshll.u32 [#allocation2], 4
      %s2587 = int_to_ptr.vmem [resolvable:$true] %s2586
      %2589 = dma.vmem_to_hbm [thread:$0]  %s2587, 32, %s18, [#allocation3]
    $region77: #{tpu_custom_call.1} parent=1 // pred_fallthru
      _
    // Predicated region
    $region78: #{tpu_custom_call.1} parent=1 // pred_check
      _
    $region79: #{tpu_custom_call.1} parent=1 // pred_check_branch
      %2591 = sbr.rel (0) target = $region81
    $region80: #{tpu_custom_call.1} parent=1 // pred_region
      %s2593 = ssub.s32 128, 128
      %2594 = vsyncadd [#allocation5], %s2593
      %s2596 = sshll.u32 [#allocation4], 4
      %s2597 = int_to_ptr.vmem [resolvable:$true] %s2596
      %2599 = dma.vmem_to_hbm [thread:$0]  %s2597, 128, %s19, [#allocation5]
    $region81: #{tpu_custom_call.1} parent=1 // pred_fallthru
      _
    // Predicated region
    $region82: #{tpu_custom_call.1} parent=1 // pred_check
      _
    $region83: #{tpu_custom_call.1} parent=1 // pred_check_branch
      %2601 = sbr.rel (0) target = $region85
    $region84: #{tpu_custom_call.1} parent=1 // pred_region
      %s2603 = ssub.s32 128, 128
      %2604 = vsyncadd [#allocation5], %s2603
      %s2606 = sshll.u32 [#allocation6], 4
      %s2607 = int_to_ptr.vmem [resolvable:$true] %s2606
      %2609 = dma.vmem_to_hbm [thread:$0]  %s2607, 128, %s20, [#allocation5]
    $region85: #{tpu_custom_call.1} parent=1 // pred_fallthru
      _
    // Predicated region
    $region86: #{tpu_custom_call.1} parent=1 // pred_check
      _
    $region87: #{tpu_custom_call.1} parent=1 // pred_check_branch
      %2611 = sbr.rel (0) target = $region89
    $region88: #{tpu_custom_call.1} parent=1 // pred_region
      %s2613 = ssub.s32 128, 128
      %2614 = vsyncadd [#allocation8], %s2613
      %s2616 = sshll.u32 [#allocation7], 4
      %s2617 = int_to_ptr.vmem [resolvable:$true] %s2616
      %2619 = dma.vmem_to_hbm [thread:$0]  %s2617, 128, %s21, [#allocation8]
    $region89: #{tpu_custom_call.1} parent=1 // pred_fallthru
      _
    // Predicated region
    $region90: #{tpu_custom_call.1} parent=1 // pred_check
      _
    $region91: #{tpu_custom_call.1} parent=1 // pred_check_branch
      %2621 = sbr.rel (0) target = $region93
    $region92: #{tpu_custom_call.1} parent=1 // pred_region
      %2622 = dma.done [#allocation3], 32
    $region93: #{tpu_custom_call.1} parent=1 // pred_fallthru
      _
    // Predicated region
    $region94: #{tpu_custom_call.1} parent=1 // pred_check
      _
    $region95: #{tpu_custom_call.1} parent=1 // pred_check_branch
      %2624 = sbr.rel (0) target = $region97
    $region96: #{tpu_custom_call.1} parent=1 // pred_region
      %2625 = dma.done [#allocation5], 128
    $region97: #{tpu_custom_call.1} parent=1 // pred_fallthru
      _
    // Predicated region
    $region98: #{tpu_custom_call.1} parent=1 // pred_check
      _
    $region99: #{tpu_custom_call.1} parent=1 // pred_check_branch
      %2627 = sbr.rel (0) target = $region101
    $region100: #{tpu_custom_call.1} parent=1 // pred_region
      %2628 = dma.done [#allocation5], 128
    $region101: #{tpu_custom_call.1} parent=1 // pred_fallthru
      _
    // Predicated region
    $region102: #{tpu_custom_call.1} parent=1 // pred_check
      _
    $region103: #{tpu_custom_call.1} parent=1 // pred_check_branch
      %2630 = sbr.rel (0) target = $region105
    $region104: #{tpu_custom_call.1} parent=1 // pred_region
      %2631 = dma.done [#allocation8], 128
    $region105: #{tpu_custom_call.1} parent=1 // pred_fallthru
      _
    %2632 = vsyncpa [#allocation3], 1
    %2633 = vsyncpa [#allocation5], 1
    %2634 = vsyncpa [#allocation8], 1

</llo_original>
